<compile_context>
chip_gen: v6e
topology: v6e:2x2x1
jax: 0.10.0
libtpu: 0.0.40
codegen_flags: <defaults>
</compile_context>

<pallas_src>
import jax
import jax.numpy as jnp
from jax import lax
from jax.experimental import pallas as pl
from jax.experimental.pallas import tpu as pltpu


def _round_up(x, m):
    return (x + m - 1) // m * m


def _make_rko_kernel(scale, power_it_niter, eps, beta, bjorck_iters, use_wwt,
                     use_bf16_bjorck, fp32_tail, squeeze, full_unroll):
    gamma = float(1.0 + beta)
    P = '' if squeeze else 'g'
    # einsum subscripts; x/w always stay in natural (..., M, N) layout, the tiny
    # u/v vectors are lane-major rows, so the big operand is never transposed.
    e_ux = f'{P}km,{P}mn->{P}kn'    # u_row @ X        -> v_row  (1, N)   (standard)
    e_vx = f'{P}kn,{P}mn->{P}km'    # v_row @ X^T      -> Xv row (1, M)   (contract last dims)
    e_wwt = f'{P}mn,{P}on->{P}mo'   # W W^T            -> gram   (M, M)
    e_wtw = f'{P}mn,{P}mo->{P}no'   # W^T W            -> gram   (N, N)
    e_ab = f'{P}mo,{P}on->{P}mn'    # A @ B (standard) for gram@W / W@gram

    unroll = True if full_unroll else 2

    def l2n_last(a):
        # F.normalize: a / max(||a||, 1e-12) == a * min(rsqrt(||a||^2), 1e12)  (EUP rsqrt)
        nsq = jnp.sum(a * a, axis=-1, keepdims=True)
        return a * jnp.minimum(lax.rsqrt(nsq), jnp.float32(1e12))

    def bjorck_step(w, mm_dtype, c1, c2):
        # w carried in fp32; matmul operands optionally bf16 (fp32 MXU accumulation).
        wm = w.astype(mm_dtype)
        if use_wwt:
            gram = jnp.einsum(e_wwt, wm, wm, preferred_element_type=jnp.float32)
            wwtw = jnp.einsum(e_ab, gram.astype(mm_dtype), wm,
                              preferred_element_type=jnp.float32)
        else:
            gram = jnp.einsum(e_wtw, wm, wm, preferred_element_type=jnp.float32)
            wwtw = jnp.einsum(e_ab, wm, gram.astype(mm_dtype),
                              preferred_element_type=jnp.float32)
        return c1 * w - c2 * wwtw

    def kernel(x_ref, u_ref, o_ref):
        if squeeze:
            x = x_ref[0].astype(jnp.float32)      # (M, N)
            u = u_ref[0].astype(jnp.float32)      # (1, M) row vector
        else:
            x = x_ref[...].astype(jnp.float32)    # (G, M, N)
            u = u_ref[...].astype(jnp.float32)    # (G, 1, M)
        u = l2n_last(u)

        # ---- spectral normalizer: batched power iteration (MXU mat-vecs) ----
        xv = None
        for _ in range(power_it_niter):
            v = l2n_last(jnp.einsum(e_ux, u, x, preferred_element_type=jnp.float32))
            xv = jnp.einsum(e_vx, v, x, preferred_element_type=jnp.float32)
            u = l2n_last(xv)
        # Reuse X.v from the last iteration: sigma = u^T (X v).
        sigma = jnp.sum(u * xv, axis=-1, keepdims=True)              # (..., 1, 1)
        w = x * pl.reciprocal(sigma + jnp.float32(eps), approx=True)

        # ---- orthogonalizer: Bjorck iterations ----
        if bjorck_iters == 0:
            out = w * jnp.float32(scale)
        else:
            tail = max(min(fp32_tail, bjorck_iters), 1) if use_bf16_bjorck else bjorck_iters
            n_bf16 = bjorck_iters - tail        # low-precision matmul iterations
            n_f32_body = tail - 1               # fp32 iterations before the final one
            if n_bf16 > 0:
                w = lax.fori_loop(
                    0, n_bf16,
                    lambda i, w: bjorck_step(w, jnp.bfloat16,
                                             jnp.float32(gamma), jnp.float32(beta)),
                    w, unroll=unroll)
            if n_f32_body > 0:
                w = lax.fori_loop(
                    0, n_f32_body,
                    lambda i, w: bjorck_step(w, jnp.float32,
                                             jnp.float32(gamma), jnp.float32(beta)),
                    w, unroll=unroll)
            # Final fp32 iteration with `scale` folded into the axpy coefficients.
            out = bjorck_step(w, jnp.float32,
                              jnp.float32(gamma * scale), jnp.float32(beta * scale))

        if squeeze:
            o_ref[0] = out.astype(o_ref.dtype)
        else:
            o_ref[...] = out.astype(o_ref.dtype)

    return kernel


def rko_parametrizer_forward(X, u, *, kernel_shape, groups, scale,
                             power_it_niter=3, eps=1e-12,
                             beta=0.5, bjorck_iters=12,
                             use_bf16_bjorck=True, fp32_tail=2):
    out_channels, in_per_group, k1, k2 = kernel_shape
    M = out_channels // groups
    N = in_per_group * k1 * k2
    assert power_it_niter >= 1, "power iteration with 0 iters not supported"

    # --- host-side view + zero-padding to (sublane, lane)-aligned, lane-dense tiles.
    # Zero rows/cols are exact fixed points of both the power iteration and Bjorck.
    m_align = 16 if use_bf16_bjorck else 8
    Mp = _round_up(M, m_align)
    Np = _round_up(N, 128)
    Xg = X.reshape(groups, M, N)
    ug = u.reshape(groups, 1, M)          # (M,1) column -> (1,M) row (pure reshape)
    if (Mp, Np) != (M, N):
        Xg = jnp.pad(Xg, ((0, 0), (0, Mp - M), (0, Np - N)))
        ug = jnp.pad(ug, ((0, 0), (0, 0), (0, Mp - M)))

    itemsize = X.dtype.itemsize
    total_bytes = groups * Mp * Np * itemsize
    batch_all = total_bytes <= (4 << 20)
    if batch_all:
        # Split the tiny-shape fast path into 2 steps so the "parallel" axis can
        # shard across both v7x TensorCores (harmless extra ~0.35us on v5e/v6e).
        n_steps = 2 if (groups >= 2 and groups % 2 == 0) else 1
    else:
        n_steps = groups
    gb = groups // n_steps
    squeeze = (gb == 1)
    # TODO(synk): groups==1 on v7x leaves the second TensorCore idle; an N-column
    # core_map split with a CMEM gram all-reduce would recover ~2x there.

    use_wwt = Mp < Np   # both Bjorck forms are algebraically identical; pick the smaller gram
    kern = _make_rko_kernel(scale, power_it_niter, eps, beta, bjorck_iters, use_wwt,
                            use_bf16_bjorck, fp32_tail, squeeze, full_unroll=batch_all)

    # --- VMEM budgeting / pipelining depth -----------------------------------
    tile_in = gb * Mp * Np * itemsize
    tile_out = gb * Mp * Np * itemsize
    tile_f32 = gb * Mp * Np * 4
    g_dim = Mp if use_wwt else Np
    gram_b = gb * g_dim * g_dim * 4
    bf16_b = (gb * Mp * Np * 2 + gb * g_dim * g_dim * 2) \
        if (use_bf16_bjorck and bjorck_iters > fp32_tail) else 0

    def vmem_est(n_buf):
        # pipelined in/out buffers + fp32 carry/update temporaries + gram (fp32)
        # + bf16 matmul operand copies + slack for u/sigma/registers.
        return (n_buf * (tile_in + tile_out) + 3 * tile_f32
                + 2 * gram_b + bf16_b + (2 << 20))

    try:
        phys_vmem = int(pltpu.get_tpu_info().vmem_capacity_bytes)
    except Exception:
        phys_vmem = 64 << 20                    # conservative (v7x) fallback
    budget = int(phys_vmem * 0.9)

    n_buf = 2
    # 12 Bjorck iterations per step dwarf the next-group DMA, so single buffering
    # is nearly free on huge tiles and saves 2 tiles of VMEM (matters on v7x's 64 MiB).
    single_buffer = (not batch_all) and (tile_in > (16 << 20) or vmem_est(2) > budget)
    if single_buffer:
        n_buf = 1
    est = vmem_est(n_buf)
    if est > budget:
        # TODO(synk): per-group working set exceeds physical VMEM even single-buffered;
        # restructure the Bjorck gram as an N-tiled accumulation (pltpu.emit_pipeline).
        est = budget

    cp_kwargs = dict(dimension_semantics=("parallel",))
    if est > (16 << 20):                        # v5e's default scoped VMEM is only 16 MiB
        cp_kwargs["vmem_limit_bytes"] = int(min(max(est, 32 << 20), budget))

    big_spec_kwargs = dict(pipeline_mode=pl.Buffered(1)) if single_buffer else {}
    in_specs = [pl.BlockSpec((gb, Mp, Np), lambda g: (g, 0, 0), **big_spec_kwargs),
                pl.BlockSpec((gb, 1, Mp), lambda g: (g, 0, 0))]
    out_specs = pl.BlockSpec((gb, Mp, Np), lambda g: (g, 0, 0), **big_spec_kwargs)

    out = pl.pallas_call(
        kern,
        out_shape=jax.ShapeDtypeStruct((groups, Mp, Np), X.dtype),
        grid=(n_steps,),
        in_specs=in_specs,
        out_specs=out_specs,
        compiler_params=pltpu.CompilerParams(**cp_kwargs),
    )(Xg, ug)

    if (Mp, Np) != (M, N):
        out = out[:, :M, :N]
    return out.reshape(out_channels, in_per_group, k1, k2)


def rko_reference(X, u, *, kernel_shape, groups, scale,
                  power_it_niter=3, eps=1e-12, beta=0.5, bjorck_iters=12):
    """Pure-JAX reference mirroring the PyTorch module (for validation)."""
    out_channels, in_per_group, k1, k2 = kernel_shape
    M = out_channels // groups
    N = in_per_group * k1 * k2
    w = X.reshape(groups, M, N).astype(jnp.float32)
    mm = lambda a, b: jnp.matmul(a, b, precision=lax.Precision.HIGHEST)

    def l2n(a):
        n = jnp.sqrt(jnp.sum(a * a, axis=-2, keepdims=True))
        return a / jnp.maximum(n, 1e-12)

    uu = l2n(u.astype(jnp.float32))                                    # (g, M, 1)
    vv = None
    for _ in range(power_it_niter):
        vv = l2n(mm(jnp.swapaxes(w, -1, -2), uu))                      # (g, N, 1)
        uu = l2n(mm(w, vv))                                            # (g, M, 1)
    sigma = mm(jnp.swapaxes(uu, -1, -2), mm(w, vv))                    # (g, 1, 1)
    w = w / (sigma + eps)

    for _ in range(bjorck_iters):
        if M < N:
            wwtw = mm(mm(w, jnp.swapaxes(w, -1, -2)), w)
        else:
            wwtw = mm(w, mm(jnp.swapaxes(w, -1, -2), w))
        w = (1.0 + beta) * w - beta * wwtw

    return (w.reshape(out_channels, in_per_group, k1, k2) * scale).astype(X.dtype)


if __name__ == "__main__":
    key = jax.random.PRNGKey(0)
    kx, ku, kx2, ku2 = jax.random.split(key, 4)

    # ---- Test 1: tiny grouped conv (ragged M=4, N=36 -> padded), batched kernel path.
    groups = 4
    out_channels = 16
    in_per_group = 4
    k1 = k2 = 3
    kernel_shape = (out_channels, in_per_group, k1, k2)
    scale = 1.0 / (k1 * k2)
    M = out_channels // groups
    X = jax.random.normal(kx, kernel_shape, dtype=jnp.float32)
    u = jax.random.normal(ku, (groups, M, 1), dtype=jnp.float32)

    ref = rko_reference(X, u, kernel_shape=kernel_shape, groups=groups, scale=scale)

    out_fp32 = jax.block_until_ready(rko_parametrizer_forward(
        X, u, kernel_shape=kernel_shape, groups=groups, scale=scale,
        use_bf16_bjorck=False))
    assert out_fp32.shape == kernel_shape and out_fp32.dtype == X.dtype
    assert jnp.allclose(out_fp32, ref, rtol=1e-3, atol=1e-4), \
        "fp32 Pallas kernel mismatch vs reference"

    out_def = jax.block_until_ready(rko_parametrizer_forward(
        X, u, kernel_shape=kernel_shape, groups=groups, scale=scale))
    assert float(jnp.max(jnp.abs(out_def - ref))) < 1e-2, \
        "default (bf16 Bjorck) path drifted on tiny shape"

    # ---- Test 2: larger grouped conv -> per-group grid path (gb==1, 2-D matmuls).
    groups2 = 4
    out_channels2 = 512
    in_per_group2 = 256
    kernel_shape2 = (out_channels2, in_per_group2, k1, k2)
    scale2 = 1.0 / (k1 * k2)
    M2 = out_channels2 // groups2
    X2 = jax.random.normal(kx2, kernel_shape2, dtype=jnp.float32)
    u2 = jax.random.normal(ku2, (groups2, M2, 1), dtype=jnp.float32)

    ref2 = rko_reference(X2, u2, kernel_shape=kernel_shape2, groups=groups2, scale=scale2)

    out2_fp32 = jax.block_until_ready(rko_parametrizer_forward(
        X2, u2, kernel_shape=kernel_shape2, groups=groups2, scale=scale2,
        use_bf16_bjorck=False))
    assert jnp.allclose(out2_fp32, ref2, rtol=1e-3, atol=1e-4), \
        "per-group fp32 path mismatch vs reference"

    out2 = jax.block_until_ready(rko_parametrizer_forward(
        X2, u2, kernel_shape=kernel_shape2, groups=groups2, scale=scale2))
    # bf16-Bjorck default: validate near-orthonormality (the module's contract)
    # plus loose agreement with the fp32 reference.
    W2 = (out2.reshape(groups2, M2, -1) / scale2).astype(jnp.float32)
    gram2 = jnp.einsum('gmn,gon->gmo', W2, W2, precision=lax.Precision.HIGHEST)
    eye = jnp.eye(M2, dtype=jnp.float32)[None]
    assert float(jnp.max(jnp.abs(gram2 - eye))) < 3e-2, \
        "bf16 Bjorck output is not near-orthonormal"
    rel = float(jnp.max(jnp.abs(out2 - ref2)) / jnp.max(jnp.abs(ref2)))
    assert rel < 0.1, f"bf16 Bjorck path drifted too far (rel={rel})"

    print("KERNEL_OK")
</pallas_src>

<mosaic_0001>
module attributes {stable_mosaic.version = 11 : i64} {
  func.func @kernel(%arg0: i32, %arg1: memref<2x8x128xf32, #tpu.memory_space<vmem>>, %arg2: memref<2x1x8xf32, #tpu.memory_space<vmem>>, %arg3: memref<2x8x128xf32, #tpu.memory_space<vmem>>) attributes {dimension_semantics = [#tpu.dimension_semantics<parallel>], iteration_bounds = array<i64: 2>, scalar_prefetch = 0 : i64, scratch_operands = 0 : i64, tpu.core_type = #tpu.core_type<tc>, window_params = [{transform_indices = @transform_0, window_bounds = array<i64: 2, 8, 128>}, {transform_indices = @transform_1, window_bounds = array<i64: 2, 1, 8>}, {transform_indices = @transform_2, window_bounds = array<i64: 2, 8, 128>}]} {
    %c0 = arith.constant 0 : index
    %c0_0 = arith.constant 0 : index
    %c0_1 = arith.constant 0 : index
    %0 = vector.load %arg1[%c0, %c0_0, %c0_1] : memref<2x8x128xf32, #tpu.memory_space<vmem>>, vector<2x8x128xf32>
    %c0_2 = arith.constant 0 : index
    %c0_3 = arith.constant 0 : index
    %c0_4 = arith.constant 0 : index
    %1 = vector.load %arg2[%c0_2, %c0_3, %c0_4] : memref<2x1x8xf32, #tpu.memory_space<vmem>>, vector<2x1x8xf32>
    %2 = arith.mulf %1, %1 : vector<2x1x8xf32>
    %cst = arith.constant dense<0.000000e+00> : vector<2x1xf32>
    %3 = vector.multi_reduction <add>, %2, %cst [2] : vector<2x1x8xf32> to vector<2x1xf32>
    %4 = vector.shape_cast %3 : vector<2x1xf32> to vector<2x1x1xf32>
    %5 = math.rsqrt %4 : vector<2x1x1xf32>
    %cst_5 = arith.constant 9.99999995E+11 : f32
    %6 = vector.broadcast %cst_5 : f32 to vector<2x1x1xf32>
    %7 = arith.minimumf %5, %6 : vector<2x1x1xf32>
    %8 = vector.broadcast %7 : vector<2x1x1xf32> to vector<2x1x8xf32>
    %9 = arith.mulf %1, %8 : vector<2x1x8xf32>
    "tpu.trace_start"() <{level = 10 : i32, message = "gkm,gmn->gkn"}> : () -> ()
    %cst_6 = arith.constant dense<0.000000e+00> : vector<2x1x128xf32>
    %10 = tpu.matmul %9, %0, %cst_6 {dimension_numbers = #tpu.dot_dimension_numbers<[2], [1], [1], [2], [0, 0, 0, 1, 1, 2], [0], [0]>} : vector<2x1x8xf32>, vector<2x8x128xf32>, vector<2x1x128xf32> -> vector<2x1x128xf32>
    "tpu.trace_stop"() : () -> ()
    %11 = arith.mulf %10, %10 : vector<2x1x128xf32>
    %cst_7 = arith.constant dense<0.000000e+00> : vector<2x1xf32>
    %12 = vector.multi_reduction <add>, %11, %cst_7 [2] : vector<2x1x128xf32> to vector<2x1xf32>
    %13 = vector.shape_cast %12 : vector<2x1xf32> to vector<2x1x1xf32>
    %14 = math.rsqrt %13 : vector<2x1x1xf32>
    %cst_8 = arith.constant 9.99999995E+11 : f32
    %15 = vector.broadcast %cst_8 : f32 to vector<2x1x1xf32>
    %16 = arith.minimumf %14, %15 : vector<2x1x1xf32>
    %17 = vector.broadcast %16 : vector<2x1x1xf32> to vector<2x1x128xf32>
    %18 = arith.mulf %10, %17 : vector<2x1x128xf32>
    "tpu.trace_start"() <{level = 10 : i32, message = "gkn,gmn->gkm"}> : () -> ()
    %cst_9 = arith.constant dense<0.000000e+00> : vector<2x1x8xf32>
    %19 = tpu.matmul %18, %0, %cst_9 {dimension_numbers = #tpu.dot_dimension_numbers<[2], [2], [1], [1], [0, 0, 0, 1, 1, 1], [0], [0]>} : vector<2x1x128xf32>, vector<2x8x128xf32>, vector<2x1x8xf32> -> vector<2x1x8xf32>
    "tpu.trace_stop"() : () -> ()
    %20 = arith.mulf %19, %19 : vector<2x1x8xf32>
    %cst_10 = arith.constant dense<0.000000e+00> : vector<2x1xf32>
    %21 = vector.multi_reduction <add>, %20, %cst_10 [2] : vector<2x1x8xf32> to vector<2x1xf32>
    %22 = vector.shape_cast %21 : vector<2x1xf32> to vector<2x1x1xf32>
    %23 = math.rsqrt %22 : vector<2x1x1xf32>
    %cst_11 = arith.constant 9.99999995E+11 : f32
    %24 = vector.broadcast %cst_11 : f32 to vector<2x1x1xf32>
    %25 = arith.minimumf %23, %24 : vector<2x1x1xf32>
    %26 = vector.broadcast %25 : vector<2x1x1xf32> to vector<2x1x8xf32>
    %27 = arith.mulf %19, %26 : vector<2x1x8xf32>
    "tpu.trace_start"() <{level = 10 : i32, message = "gkm,gmn->gkn"}> : () -> ()
    %cst_12 = arith.constant dense<0.000000e+00> : vector<2x1x128xf32>
    %28 = tpu.matmul %27, %0, %cst_12 {dimension_numbers = #tpu.dot_dimension_numbers<[2], [1], [1], [2], [0, 0, 0, 1, 1, 2], [0], [0]>} : vector<2x1x8xf32>, vector<2x8x128xf32>, vector<2x1x128xf32> -> vector<2x1x128xf32>
    "tpu.trace_stop"() : () -> ()
    %29 = arith.mulf %28, %28 : vector<2x1x128xf32>
    %cst_13 = arith.constant dense<0.000000e+00> : vector<2x1xf32>
    %30 = vector.multi_reduction <add>, %29, %cst_13 [2] : vector<2x1x128xf32> to vector<2x1xf32>
    %31 = vector.shape_cast %30 : vector<2x1xf32> to vector<2x1x1xf32>
    %32 = math.rsqrt %31 : vector<2x1x1xf32>
    %cst_14 = arith.constant 9.99999995E+11 : f32
    %33 = vector.broadcast %cst_14 : f32 to vector<2x1x1xf32>
    %34 = arith.minimumf %32, %33 : vector<2x1x1xf32>
    %35 = vector.broadcast %34 : vector<2x1x1xf32> to vector<2x1x128xf32>
    %36 = arith.mulf %28, %35 : vector<2x1x128xf32>
    "tpu.trace_start"() <{level = 10 : i32, message = "gkn,gmn->gkm"}> : () -> ()
    %cst_15 = arith.constant dense<0.000000e+00> : vector<2x1x8xf32>
    %37 = tpu.matmul %36, %0, %cst_15 {dimension_numbers = #tpu.dot_dimension_numbers<[2], [2], [1], [1], [0, 0, 0, 1, 1, 1], [0], [0]>} : vector<2x1x128xf32>, vector<2x8x128xf32>, vector<2x1x8xf32> -> vector<2x1x8xf32>
    "tpu.trace_stop"() : () -> ()
    %38 = arith.mulf %37, %37 : vector<2x1x8xf32>
    %cst_16 = arith.constant dense<0.000000e+00> : vector<2x1xf32>
    %39 = vector.multi_reduction <add>, %38, %cst_16 [2] : vector<2x1x8xf32> to vector<2x1xf32>
    %40 = vector.shape_cast %39 : vector<2x1xf32> to vector<2x1x1xf32>
    %41 = math.rsqrt %40 : vector<2x1x1xf32>
    %cst_17 = arith.constant 9.99999995E+11 : f32
    %42 = vector.broadcast %cst_17 : f32 to vector<2x1x1xf32>
    %43 = arith.minimumf %41, %42 : vector<2x1x1xf32>
    %44 = vector.broadcast %43 : vector<2x1x1xf32> to vector<2x1x8xf32>
    %45 = arith.mulf %37, %44 : vector<2x1x8xf32>
    "tpu.trace_start"() <{level = 10 : i32, message = "gkm,gmn->gkn"}> : () -> ()
    %cst_18 = arith.constant dense<0.000000e+00> : vector<2x1x128xf32>
    %46 = tpu.matmul %45, %0, %cst_18 {dimension_numbers = #tpu.dot_dimension_numbers<[2], [1], [1], [2], [0, 0, 0, 1, 1, 2], [0], [0]>} : vector<2x1x8xf32>, vector<2x8x128xf32>, vector<2x1x128xf32> -> vector<2x1x128xf32>
    "tpu.trace_stop"() : () -> ()
    %47 = arith.mulf %46, %46 : vector<2x1x128xf32>
    %cst_19 = arith.constant dense<0.000000e+00> : vector<2x1xf32>
    %48 = vector.multi_reduction <add>, %47, %cst_19 [2] : vector<2x1x128xf32> to vector<2x1xf32>
    %49 = vector.shape_cast %48 : vector<2x1xf32> to vector<2x1x1xf32>
    %50 = math.rsqrt %49 : vector<2x1x1xf32>
    %cst_20 = arith.constant 9.99999995E+11 : f32
    %51 = vector.broadcast %cst_20 : f32 to vector<2x1x1xf32>
    %52 = arith.minimumf %50, %51 : vector<2x1x1xf32>
    %53 = vector.broadcast %52 : vector<2x1x1xf32> to vector<2x1x128xf32>
    %54 = arith.mulf %46, %53 : vector<2x1x128xf32>
    "tpu.trace_start"() <{level = 10 : i32, message = "gkn,gmn->gkm"}> : () -> ()
    %cst_21 = arith.constant dense<0.000000e+00> : vector<2x1x8xf32>
    %55 = tpu.matmul %54, %0, %cst_21 {dimension_numbers = #tpu.dot_dimension_numbers<[2], [2], [1], [1], [0, 0, 0, 1, 1, 1], [0], [0]>} : vector<2x1x128xf32>, vector<2x8x128xf32>, vector<2x1x8xf32> -> vector<2x1x8xf32>
    "tpu.trace_stop"() : () -> ()
    %56 = arith.mulf %55, %55 : vector<2x1x8xf32>
    %cst_22 = arith.constant dense<0.000000e+00> : vector<2x1xf32>
    %57 = vector.multi_reduction <add>, %56, %cst_22 [2] : vector<2x1x8xf32> to vector<2x1xf32>
    %58 = vector.shape_cast %57 : vector<2x1xf32> to vector<2x1x1xf32>
    %59 = math.rsqrt %58 : vector<2x1x1xf32>
    %cst_23 = arith.constant 9.99999995E+11 : f32
    %60 = vector.broadcast %cst_23 : f32 to vector<2x1x1xf32>
    %61 = arith.minimumf %59, %60 : vector<2x1x1xf32>
    %62 = vector.broadcast %61 : vector<2x1x1xf32> to vector<2x1x8xf32>
    %63 = arith.mulf %55, %62 : vector<2x1x8xf32>
    %64 = arith.mulf %63, %55 : vector<2x1x8xf32>
    %cst_24 = arith.constant dense<0.000000e+00> : vector<2x1xf32>
    %65 = vector.multi_reduction <add>, %64, %cst_24 [2] : vector<2x1x8xf32> to vector<2x1xf32>
    %66 = vector.shape_cast %65 : vector<2x1xf32> to vector<2x1x1xf32>
    %cst_25 = arith.constant 9.99999996E-13 : f32
    %67 = vector.broadcast %cst_25 : f32 to vector<2x1x1xf32>
    %68 = arith.addf %66, %67 : vector<2x1x1xf32>
    %69 = tpu.reciprocal %68 {approx = true} : vector<2x1x1xf32> -> vector<2x1x1xf32>
    %70 = vector.broadcast %69 : vector<2x1x1xf32> to vector<2x8x128xf32>
    %71 = arith.mulf %0, %70 : vector<2x8x128xf32>
    %c0_i32 = arith.constant 0 : i32
    "tpu.trace_start"() <{level = 10 : i32, message = "gmn,gon->gmo"}> : () -> ()
    %cst_26 = arith.constant dense<0.000000e+00> : vector<2x8x8xf32>
    %72 = tpu.matmul %71, %71, %cst_26 {dimension_numbers = #tpu.dot_dimension_numbers<[2], [2], [1], [1], [0, 0, 0, 1, 1, 1], [0], [0]>} : vector<2x8x128xf32>, vector<2x8x128xf32>, vector<2x8x8xf32> -> vector<2x8x8xf32>
    "tpu.trace_stop"() : () -> ()
    "tpu.trace_start"() <{level = 10 : i32, message = "gmo,gon->gmn"}> : () -> ()
    %cst_27 = arith.constant dense<0.000000e+00> : vector<2x8x128xf32>
    %73 = tpu.matmul %72, %71, %cst_27 {dimension_numbers = #tpu.dot_dimension_numbers<[2], [1], [1], [2], [0, 0, 0, 1, 1, 2], [0], [0]>} : vector<2x8x8xf32>, vector<2x8x128xf32>, vector<2x8x128xf32> -> vector<2x8x128xf32>
    "tpu.trace_stop"() : () -> ()
    %cst_28 = arith.constant 1.500000e+00 : f32
    %74 = vector.broadcast %cst_28 : f32 to vector<2x8x128xf32>
    %75 = arith.mulf %74, %71 : vector<2x8x128xf32>
    %cst_29 = arith.constant 5.000000e-01 : f32
    %76 = vector.broadcast %cst_29 : f32 to vector<2x8x128xf32>
    %77 = arith.mulf %76, %73 : vector<2x8x128xf32>
    %78 = arith.subf %75, %77 : vector<2x8x128xf32>
    %c1_i32 = arith.constant 1 : i32
    "tpu.trace_start"() <{level = 10 : i32, message = "gmn,gon->gmo"}> : () -> ()
    %cst_30 = arith.constant dense<0.000000e+00> : vector<2x8x8xf32>
    %79 = tpu.matmul %78, %78, %cst_30 {dimension_numbers = #tpu.dot_dimension_numbers<[2], [2], [1], [1], [0, 0, 0, 1, 1, 1], [0], [0]>} : vector<2x8x128xf32>, vector<2x8x128xf32>, vector<2x8x8xf32> -> vector<2x8x8xf32>
    "tpu.trace_stop"() : () -> ()
    "tpu.trace_start"() <{level = 10 : i32, message = "gmo,gon->gmn"}> : () -> ()
    %cst_31 = arith.constant dense<0.000000e+00> : vector<2x8x128xf32>
    %80 = tpu.matmul %79, %78, %cst_31 {dimension_numbers = #tpu.dot_dimension_numbers<[2], [1], [1], [2], [0, 0, 0, 1, 1, 2], [0], [0]>} : vector<2x8x8xf32>, vector<2x8x128xf32>, vector<2x8x128xf32> -> vector<2x8x128xf32>
    "tpu.trace_stop"() : () -> ()
    %cst_32 = arith.constant 1.500000e+00 : f32
    %81 = vector.broadcast %cst_32 : f32 to vector<2x8x128xf32>
    %82 = arith.mulf %81, %78 : vector<2x8x128xf32>
    %cst_33 = arith.constant 5.000000e-01 : f32
    %83 = vector.broadcast %cst_33 : f32 to vector<2x8x128xf32>
    %84 = arith.mulf %83, %80 : vector<2x8x128xf32>
    %85 = arith.subf %82, %84 : vector<2x8x128xf32>
    %c2_i32 = arith.constant 2 : i32
    "tpu.trace_start"() <{level = 10 : i32, message = "gmn,gon->gmo"}> : () -> ()
    %cst_34 = arith.constant dense<0.000000e+00> : vector<2x8x8xf32>
    %86 = tpu.matmul %85, %85, %cst_34 {dimension_numbers = #tpu.dot_dimension_numbers<[2], [2], [1], [1], [0, 0, 0, 1, 1, 1], [0], [0]>} : vector<2x8x128xf32>, vector<2x8x128xf32>, vector<2x8x8xf32> -> vector<2x8x8xf32>
    "tpu.trace_stop"() : () -> ()
    "tpu.trace_start"() <{level = 10 : i32, message = "gmo,gon->gmn"}> : () -> ()
    %cst_35 = arith.constant dense<0.000000e+00> : vector<2x8x128xf32>
    %87 = tpu.matmul %86, %85, %cst_35 {dimension_numbers = #tpu.dot_dimension_numbers<[2], [1], [1], [2], [0, 0, 0, 1, 1, 2], [0], [0]>} : vector<2x8x8xf32>, vector<2x8x128xf32>, vector<2x8x128xf32> -> vector<2x8x128xf32>
    "tpu.trace_stop"() : () -> ()
    %cst_36 = arith.constant 1.500000e+00 : f32
    %88 = vector.broadcast %cst_36 : f32 to vector<2x8x128xf32>
    %89 = arith.mulf %88, %85 : vector<2x8x128xf32>
    %cst_37 = arith.constant 5.000000e-01 : f32
    %90 = vector.broadcast %cst_37 : f32 to vector<2x8x128xf32>
    %91 = arith.mulf %90, %87 : vector<2x8x128xf32>
    %92 = arith.subf %89, %91 : vector<2x8x128xf32>
    %c3_i32 = arith.constant 3 : i32
    "tpu.trace_start"() <{level = 10 : i32, message = "gmn,gon->gmo"}> : () -> ()
    %cst_38 = arith.constant dense<0.000000e+00> : vector<2x8x8xf32>
    %93 = tpu.matmul %92, %92, %cst_38 {dimension_numbers = #tpu.dot_dimension_numbers<[2], [2], [1], [1], [0, 0, 0, 1, 1, 1], [0], [0]>} : vector<2x8x128xf32>, vector<2x8x128xf32>, vector<2x8x8xf32> -> vector<2x8x8xf32>
    "tpu.trace_stop"() : () -> ()
    "tpu.trace_start"() <{level = 10 : i32, message = "gmo,gon->gmn"}> : () -> ()
    %cst_39 = arith.constant dense<0.000000e+00> : vector<2x8x128xf32>
    %94 = tpu.matmul %93, %92, %cst_39 {dimension_numbers = #tpu.dot_dimension_numbers<[2], [1], [1], [2], [0, 0, 0, 1, 1, 2], [0], [0]>} : vector<2x8x8xf32>, vector<2x8x128xf32>, vector<2x8x128xf32> -> vector<2x8x128xf32>
    "tpu.trace_stop"() : () -> ()
    %cst_40 = arith.constant 1.500000e+00 : f32
    %95 = vector.broadcast %cst_40 : f32 to vector<2x8x128xf32>
    %96 = arith.mulf %95, %92 : vector<2x8x128xf32>
    %cst_41 = arith.constant 5.000000e-01 : f32
    %97 = vector.broadcast %cst_41 : f32 to vector<2x8x128xf32>
    %98 = arith.mulf %97, %94 : vector<2x8x128xf32>
    %99 = arith.subf %96, %98 : vector<2x8x128xf32>
    %c4_i32 = arith.constant 4 : i32
    "tpu.trace_start"() <{level = 10 : i32, message = "gmn,gon->gmo"}> : () -> ()
    %cst_42 = arith.constant dense<0.000000e+00> : vector<2x8x8xf32>
    %100 = tpu.matmul %99, %99, %cst_42 {dimension_numbers = #tpu.dot_dimension_numbers<[2], [2], [1], [1], [0, 0, 0, 1, 1, 1], [0], [0]>} : vector<2x8x128xf32>, vector<2x8x128xf32>, vector<2x8x8xf32> -> vector<2x8x8xf32>
    "tpu.trace_stop"() : () -> ()
    "tpu.trace_start"() <{level = 10 : i32, message = "gmo,gon->gmn"}> : () -> ()
    %cst_43 = arith.constant dense<0.000000e+00> : vector<2x8x128xf32>
    %101 = tpu.matmul %100, %99, %cst_43 {dimension_numbers = #tpu.dot_dimension_numbers<[2], [1], [1], [2], [0, 0, 0, 1, 1, 2], [0], [0]>} : vector<2x8x8xf32>, vector<2x8x128xf32>, vector<2x8x128xf32> -> vector<2x8x128xf32>
    "tpu.trace_stop"() : () -> ()
    %cst_44 = arith.constant 1.500000e+00 : f32
    %102 = vector.broadcast %cst_44 : f32 to vector<2x8x128xf32>
    %103 = arith.mulf %102, %99 : vector<2x8x128xf32>
    %cst_45 = arith.constant 5.000000e-01 : f32
    %104 = vector.broadcast %cst_45 : f32 to vector<2x8x128xf32>
    %105 = arith.mulf %104, %101 : vector<2x8x128xf32>
    %106 = arith.subf %103, %105 : vector<2x8x128xf32>
    %c5_i32 = arith.constant 5 : i32
    "tpu.trace_start"() <{level = 10 : i32, message = "gmn,gon->gmo"}> : () -> ()
    %cst_46 = arith.constant dense<0.000000e+00> : vector<2x8x8xf32>
    %107 = tpu.matmul %106, %106, %cst_46 {dimension_numbers = #tpu.dot_dimension_numbers<[2], [2], [1], [1], [0, 0, 0, 1, 1, 1], [0], [0]>} : vector<2x8x128xf32>, vector<2x8x128xf32>, vector<2x8x8xf32> -> vector<2x8x8xf32>
    "tpu.trace_stop"() : () -> ()
    "tpu.trace_start"() <{level = 10 : i32, message = "gmo,gon->gmn"}> : () -> ()
    %cst_47 = arith.constant dense<0.000000e+00> : vector<2x8x128xf32>
    %108 = tpu.matmul %107, %106, %cst_47 {dimension_numbers = #tpu.dot_dimension_numbers<[2], [1], [1], [2], [0, 0, 0, 1, 1, 2], [0], [0]>} : vector<2x8x8xf32>, vector<2x8x128xf32>, vector<2x8x128xf32> -> vector<2x8x128xf32>
    "tpu.trace_stop"() : () -> ()
    %cst_48 = arith.constant 1.500000e+00 : f32
    %109 = vector.broadcast %cst_48 : f32 to vector<2x8x128xf32>
    %110 = arith.mulf %109, %106 : vector<2x8x128xf32>
    %cst_49 = arith.constant 5.000000e-01 : f32
    %111 = vector.broadcast %cst_49 : f32 to vector<2x8x128xf32>
    %112 = arith.mulf %111, %108 : vector<2x8x128xf32>
    %113 = arith.subf %110, %112 : vector<2x8x128xf32>
    %c6_i32 = arith.constant 6 : i32
    "tpu.trace_start"() <{level = 10 : i32, message = "gmn,gon->gmo"}> : () -> ()
    %cst_50 = arith.constant dense<0.000000e+00> : vector<2x8x8xf32>
    %114 = tpu.matmul %113, %113, %cst_50 {dimension_numbers = #tpu.dot_dimension_numbers<[2], [2], [1], [1], [0, 0, 0, 1, 1, 1], [0], [0]>} : vector<2x8x128xf32>, vector<2x8x128xf32>, vector<2x8x8xf32> -> vector<2x8x8xf32>
    "tpu.trace_stop"() : () -> ()
    "tpu.trace_start"() <{level = 10 : i32, message = "gmo,gon->gmn"}> : () -> ()
    %cst_51 = arith.constant dense<0.000000e+00> : vector<2x8x128xf32>
    %115 = tpu.matmul %114, %113, %cst_51 {dimension_numbers = #tpu.dot_dimension_numbers<[2], [1], [1], [2], [0, 0, 0, 1, 1, 2], [0], [0]>} : vector<2x8x8xf32>, vector<2x8x128xf32>, vector<2x8x128xf32> -> vector<2x8x128xf32>
    "tpu.trace_stop"() : () -> ()
    %cst_52 = arith.constant 1.500000e+00 : f32
    %116 = vector.broadcast %cst_52 : f32 to vector<2x8x128xf32>
    %117 = arith.mulf %116, %113 : vector<2x8x128xf32>
    %cst_53 = arith.constant 5.000000e-01 : f32
    %118 = vector.broadcast %cst_53 : f32 to vector<2x8x128xf32>
    %119 = arith.mulf %118, %115 : vector<2x8x128xf32>
    %120 = arith.subf %117, %119 : vector<2x8x128xf32>
    %c7_i32 = arith.constant 7 : i32
    "tpu.trace_start"() <{level = 10 : i32, message = "gmn,gon->gmo"}> : () -> ()
    %cst_54 = arith.constant dense<0.000000e+00> : vector<2x8x8xf32>
    %121 = tpu.matmul %120, %120, %cst_54 {dimension_numbers = #tpu.dot_dimension_numbers<[2], [2], [1], [1], [0, 0, 0, 1, 1, 1], [0], [0]>} : vector<2x8x128xf32>, vector<2x8x128xf32>, vector<2x8x8xf32> -> vector<2x8x8xf32>
    "tpu.trace_stop"() : () -> ()
    "tpu.trace_start"() <{level = 10 : i32, message = "gmo,gon->gmn"}> : () -> ()
    %cst_55 = arith.constant dense<0.000000e+00> : vector<2x8x128xf32>
    %122 = tpu.matmul %121, %120, %cst_55 {dimension_numbers = #tpu.dot_dimension_numbers<[2], [1], [1], [2], [0, 0, 0, 1, 1, 2], [0], [0]>} : vector<2x8x8xf32>, vector<2x8x128xf32>, vector<2x8x128xf32> -> vector<2x8x128xf32>
    "tpu.trace_stop"() : () -> ()
    %cst_56 = arith.constant 1.500000e+00 : f32
    %123 = vector.broadcast %cst_56 : f32 to vector<2x8x128xf32>
    %124 = arith.mulf %123, %120 : vector<2x8x128xf32>
    %cst_57 = arith.constant 5.000000e-01 : f32
    %125 = vector.broadcast %cst_57 : f32 to vector<2x8x128xf32>
    %126 = arith.mulf %125, %122 : vector<2x8x128xf32>
    %127 = arith.subf %124, %126 : vector<2x8x128xf32>
    %c8_i32 = arith.constant 8 : i32
    "tpu.trace_start"() <{level = 10 : i32, message = "gmn,gon->gmo"}> : () -> ()
    %cst_58 = arith.constant dense<0.000000e+00> : vector<2x8x8xf32>
    %128 = tpu.matmul %127, %127, %cst_58 {dimension_numbers = #tpu.dot_dimension_numbers<[2], [2], [1], [1], [0, 0, 0, 1, 1, 1], [0], [0]>} : vector<2x8x128xf32>, vector<2x8x128xf32>, vector<2x8x8xf32> -> vector<2x8x8xf32>
    "tpu.trace_stop"() : () -> ()
    "tpu.trace_start"() <{level = 10 : i32, message = "gmo,gon->gmn"}> : () -> ()
    %cst_59 = arith.constant dense<0.000000e+00> : vector<2x8x128xf32>
    %129 = tpu.matmul %128, %127, %cst_59 {dimension_numbers = #tpu.dot_dimension_numbers<[2], [1], [1], [2], [0, 0, 0, 1, 1, 2], [0], [0]>} : vector<2x8x8xf32>, vector<2x8x128xf32>, vector<2x8x128xf32> -> vector<2x8x128xf32>
    "tpu.trace_stop"() : () -> ()
    %cst_60 = arith.constant 1.500000e+00 : f32
    %130 = vector.broadcast %cst_60 : f32 to vector<2x8x128xf32>
    %131 = arith.mulf %130, %127 : vector<2x8x128xf32>
    %cst_61 = arith.constant 5.000000e-01 : f32
    %132 = vector.broadcast %cst_61 : f32 to vector<2x8x128xf32>
    %133 = arith.mulf %132, %129 : vector<2x8x128xf32>
    %134 = arith.subf %131, %133 : vector<2x8x128xf32>
    %c9_i32 = arith.constant 9 : i32
    "tpu.trace_start"() <{level = 10 : i32, message = "gmn,gon->gmo"}> : () -> ()
    %cst_62 = arith.constant dense<0.000000e+00> : vector<2x8x8xf32>
    %135 = tpu.matmul %134, %134, %cst_62 {dimension_numbers = #tpu.dot_dimension_numbers<[2], [2], [1], [1], [0, 0, 0, 1, 1, 1], [0], [0]>} : vector<2x8x128xf32>, vector<2x8x128xf32>, vector<2x8x8xf32> -> vector<2x8x8xf32>
    "tpu.trace_stop"() : () -> ()
    "tpu.trace_start"() <{level = 10 : i32, message = "gmo,gon->gmn"}> : () -> ()
    %cst_63 = arith.constant dense<0.000000e+00> : vector<2x8x128xf32>
    %136 = tpu.matmul %135, %134, %cst_63 {dimension_numbers = #tpu.dot_dimension_numbers<[2], [1], [1], [2], [0, 0, 0, 1, 1, 2], [0], [0]>} : vector<2x8x8xf32>, vector<2x8x128xf32>, vector<2x8x128xf32> -> vector<2x8x128xf32>
    "tpu.trace_stop"() : () -> ()
    %cst_64 = arith.constant 1.500000e+00 : f32
    %137 = vector.broadcast %cst_64 : f32 to vector<2x8x128xf32>
    %138 = arith.mulf %137, %134 : vector<2x8x128xf32>
    %cst_65 = arith.constant 5.000000e-01 : f32
    %139 = vector.broadcast %cst_65 : f32 to vector<2x8x128xf32>
    %140 = arith.mulf %139, %136 : vector<2x8x128xf32>
    %141 = arith.subf %138, %140 : vector<2x8x128xf32>
    %c10_i32 = arith.constant 10 : i32
    "tpu.trace_start"() <{level = 10 : i32, message = "gmn,gon->gmo"}> : () -> ()
    %cst_66 = arith.constant dense<0.000000e+00> : vector<2x8x8xf32>
    %142 = tpu.matmul %141, %141, %cst_66 {dimension_numbers = #tpu.dot_dimension_numbers<[2], [2], [1], [1], [0, 0, 0, 1, 1, 1], [0], [0]>} : vector<2x8x128xf32>, vector<2x8x128xf32>, vector<2x8x8xf32> -> vector<2x8x8xf32>
    "tpu.trace_stop"() : () -> ()
    "tpu.trace_start"() <{level = 10 : i32, message = "gmo,gon->gmn"}> : () -> ()
    %cst_67 = arith.constant dense<0.000000e+00> : vector<2x8x128xf32>
    %143 = tpu.matmul %142, %141, %cst_67 {dimension_numbers = #tpu.dot_dimension_numbers<[2], [1], [1], [2], [0, 0, 0, 1, 1, 2], [0], [0]>} : vector<2x8x8xf32>, vector<2x8x128xf32>, vector<2x8x128xf32> -> vector<2x8x128xf32>
    "tpu.trace_stop"() : () -> ()
    %cst_68 = arith.constant 1.500000e+00 : f32
    %144 = vector.broadcast %cst_68 : f32 to vector<2x8x128xf32>
    %145 = arith.mulf %144, %141 : vector<2x8x128xf32>
    %cst_69 = arith.constant 5.000000e-01 : f32
    %146 = vector.broadcast %cst_69 : f32 to vector<2x8x128xf32>
    %147 = arith.mulf %146, %143 : vector<2x8x128xf32>
    %148 = arith.subf %145, %147 : vector<2x8x128xf32>
    "tpu.trace_start"() <{level = 10 : i32, message = "gmn,gon->gmo"}> : () -> ()
    %cst_70 = arith.constant dense<0.000000e+00> : vector<2x8x8xf32>
    %149 = tpu.matmul %148, %148, %cst_70 {dimension_numbers = #tpu.dot_dimension_numbers<[2], [2], [1], [1], [0, 0, 0, 1, 1, 1], [0], [0]>} : vector<2x8x128xf32>, vector<2x8x128xf32>, vector<2x8x8xf32> -> vector<2x8x8xf32>
    "tpu.trace_stop"() : () -> ()
    "tpu.trace_start"() <{level = 10 : i32, message = "gmo,gon->gmn"}> : () -> ()
    %cst_71 = arith.constant dense<0.000000e+00> : vector<2x8x128xf32>
    %150 = tpu.matmul %149, %148, %cst_71 {dimension_numbers = #tpu.dot_dimension_numbers<[2], [1], [1], [2], [0, 0, 0, 1, 1, 2], [0], [0]>} : vector<2x8x8xf32>, vector<2x8x128xf32>, vector<2x8x128xf32> -> vector<2x8x128xf32>
    "tpu.trace_stop"() : () -> ()
    %cst_72 = arith.constant 0.166666672 : f32
    %151 = vector.broadcast %cst_72 : f32 to vector<2x8x128xf32>
    %152 = arith.mulf %151, %148 : vector<2x8x128xf32>
    %cst_73 = arith.constant 0.055555556 : f32
    %153 = vector.broadcast %cst_73 : f32 to vector<2x8x128xf32>
    %154 = arith.mulf %153, %150 : vector<2x8x128xf32>
    %155 = arith.subf %152, %154 : vector<2x8x128xf32>
    %c0_74 = arith.constant 0 : index
    %c0_75 = arith.constant 0 : index
    %c0_76 = arith.constant 0 : index
    %156 = vector.load %arg3[%c0_74, %c0_75, %c0_76] : memref<2x8x128xf32, #tpu.memory_space<vmem>>, vector<2x8x128xf32>
    tpu.vector_store %arg3[%c0_74, %c0_75, %c0_76], %155 {strides = array<i32>} : memref<2x8x128xf32, #tpu.memory_space<vmem>>, vector<2x8x128xf32>,
    return
  }
  func.func @transform_0(%arg0: i32) -> (i32, i32, i32) {
    %c0_i32 = arith.constant 0 : i32
    %c0_i32_0 = arith.constant 0 : i32
    %c0_i32_1 = arith.constant 0 : i32
    return %arg0, %c0_i32, %c0_i32_0 : i32, i32, i32
  }
  func.func @transform_1(%arg0: i32) -> (i32, i32, i32) {
    %c0_i32 = arith.constant 0 : i32
    %c0_i32_0 = arith.constant 0 : i32
    %c0_i32_1 = arith.constant 0 : i32
    return %arg0, %c0_i32, %c0_i32_0 : i32, i32, i32
  }
  func.func @transform_2(%arg0: i32) -> (i32, i32, i32) {
    %c0_i32 = arith.constant 0 : i32
    %c0_i32_0 = arith.constant 0 : i32
    %c0_i32_1 = arith.constant 0 : i32
    return %arg0, %c0_i32, %c0_i32_0 : i32, i32, i32
  }
}

</mosaic_0001>

<llo_original>
// kernel: tpu_custom_call.1
$region0: #{tpu_custom_call.1}
  #allocation0 [shape = 'u32[]', space=smem, size = 0x4, offset = 0x4, fixed_abs, tag = 'smem constant byte address 0x4 - core index']
  #allocation1 [shape = 'u32[144,128]{1,0:T(1,128)}', space=vmem, size = 0x12000, scoped, tag = 'internal scratch']
  %s0 = inlined_call_operand.hbm [shape: f32[4,8,128], index: 0, kind: input, shape index: {}]
  %s1 = inlined_call_operand.hbm [shape: f32[4,1,8], index: 1, kind: input, shape index: {}]
  %s2 = inlined_call_operand.hbm [shape: f32[4,8,128], index: 2, kind: output, shape index: {}]
  %s3 = sld [smem:[#allocation0]]
  $region49: #{tpu_custom_call.1} parent=0
    _
  %s5 = ssub.s32 1, %s3
  %s6 = scalar_select 0, %s5, %s3
  $region1: #{tpu_custom_call.1} parent=0
    #allocation2 [shape = 'u8[16384]{0}', space=vmem, size = 0x4000, scoped, tag = 'input window, operand 0']
    #allocation3 [shape = 's32[2]{0}', space=sflag, size = 0x8, scoped, tag = 'scoped memory for tpu_custom_call.1']
    #allocation4 [shape = 's32[2]{0}', space=sflag, size = 0x8, scoped, tag = 'scoped memory for tpu_custom_call.1']
    #allocation5 [shape = 'u8[2048]{0}', space=vmem, size = 0x800, scoped, tag = 'input window, operand 1']
    #allocation6 [shape = 's32[2]{0}', space=sflag, size = 0x8, scoped, tag = 'scoped memory for tpu_custom_call.1']
    #allocation7 [shape = 'u8[16384]{0}', space=vmem, size = 0x4000, scoped, tag = 'output window, operand 0']
    %7 = vsyncpa [#allocation3], 0
    %s8 = scalar_lea.sflag [#allocation3], 1
    %9 = vsyncpa %s8, 0
    %10 = vsyncpa [#allocation6], 0
    %s11 = scalar_lea.sflag [#allocation6], 1
    %12 = vsyncpa %s11, 0
    %13 = vsyncpa [#allocation4], 0
    %s14 = scalar_lea.sflag [#allocation4], 1
    %15 = vsyncpa %s14, 0
    loop: start=0, step=1, limit=4
    $region2: #{tpu_custom_call.1} parent=1 // loop_pre_header
      _
    $region3: #{tpu_custom_call.1} parent=1 // loop_header
      %s17 = sphi 0, %s21
      %p18 = scmp.ge.s32.totalorder %s17, 4
      %s27 = sphi 0, %s29
      %s30 = sphi 0, %s27
      %s31 = sphi 0, %s30
      %s47 = sphi 0, %s31
      %s53 = sphi 0, %s55
      %s56 = sphi 0, %s53
      %s57 = sphi 0, %s56
      %s73 = sphi 0, %s57
      %s79 = sphi 0, %s81
      %s82 = sphi 0, %s79
      %s83 = sphi 0, %s82
      %s99 = sphi 0, %s83
    $region4: #{tpu_custom_call.1} parent=1 // loop_header_branch
      %20 = sbr.rel (%p18) target = $region8
    $region5: #{tpu_custom_call.1} parent=1 // loop_body
      %s22 = ssub.s32 %s17, 1
      %s23 = ssub.s32 %s17, 2
      %s24 = sadd.s32 %s17, 1
      %s25 = ssub.s32 %s17, %s24
      %p26 = scmp.eq.s32.totalorder %s25, 0
      %s28 = sadd.s32 %s27, 1
      %s29 = scalar_select %p26, %s27, %s28
      %p32 = pneg %p26
      %p33 = scmp.eq.s32.totalorder %s17, 1
      %p34 = por %p32, %p33
      %p35 = scmp.ne.s32.totalorder %s27, %s30
      %p36 = scmp.eq.s32.totalorder %s17, 0
      %p37 = por %p35, %p36
      %p38 = scmp.ne.s32.totalorder %s27, %s30
      %p39 = scmp.eq.s32.totalorder %s22, 1
      %p40 = por %p38, %p39
      %p41 = scmp.ne.s32.totalorder %s30, %s31
      %p42 = scmp.eq.s32.totalorder %s22, 0
      %p43 = por %p41, %p42
      %p44 = scmp.ne.s32.totalorder %s30, %s31
      %p45 = scmp.eq.s32.totalorder %s23, 1
      %p46 = por %p44, %p45
      %p48 = scmp.ne.s32.totalorder %s31, %s47
      %p49 = scmp.eq.s32.totalorder %s23, 0
      %p50 = por %p48, %p49
      %s51 = ssub.s32 %s17, %s24
      %p52 = scmp.eq.s32.totalorder %s51, 0
      %s54 = sadd.s32 %s53, 1
      %s55 = scalar_select %p52, %s53, %s54
      %p58 = pneg %p52
      %p59 = scmp.eq.s32.totalorder %s17, 1
      %p60 = por %p58, %p59
      %p61 = scmp.ne.s32.totalorder %s53, %s56
      %p62 = scmp.eq.s32.totalorder %s17, 0
      %p63 = por %p61, %p62
      %p64 = scmp.ne.s32.totalorder %s53, %s56
      %p65 = scmp.eq.s32.totalorder %s22, 1
      %p66 = por %p64, %p65
      %p67 = scmp.ne.s32.totalorder %s56, %s57
      %p68 = scmp.eq.s32.totalorder %s22, 0
      %p69 = por %p67, %p68
      %p70 = scmp.ne.s32.totalorder %s56, %s57
      %p71 = scmp.eq.s32.totalorder %s23, 1
      %p72 = por %p70, %p71
      %p74 = scmp.ne.s32.totalorder %s57, %s73
      %p75 = scmp.eq.s32.totalorder %s23, 0
      %p76 = por %p74, %p75
      %s77 = ssub.s32 %s17, %s24
      %p78 = scmp.eq.s32.totalorder %s77, 0
      %s80 = sadd.s32 %s79, 1
      %s81 = scalar_select %p78, %s79, %s80
      %p84 = pneg %p78
      %p85 = scmp.eq.s32.totalorder %s17, 1
      %p86 = por %p84, %p85
      %p87 = scmp.ne.s32.totalorder %s79, %s82
      %p88 = scmp.eq.s32.totalorder %s17, 0
      %p89 = por %p87, %p88
      %p90 = scmp.ne.s32.totalorder %s79, %s82
      %p91 = scmp.eq.s32.totalorder %s22, 1
      %p92 = por %p90, %p91
      %p93 = scmp.ne.s32.totalorder %s82, %s83
      %p94 = scmp.eq.s32.totalorder %s22, 0
      %p95 = por %p93, %p94
      %p96 = scmp.ne.s32.totalorder %s82, %s83
      %p97 = scmp.eq.s32.totalorder %s23, 1
      %p98 = por %p96, %p97
      %p100 = scmp.ne.s32.totalorder %s83, %s99
      %p101 = scmp.eq.s32.totalorder %s23, 0
      %p102 = por %p100, %p101
      %p103 = scmp.le.s32.totalorder 1, %s17
      %p104 = scmp.lt.s32.totalorder %s17, 3
      %p105 = pnand %p103, %p104
      %p106 = pneg %p105
      // Predicated region
      $region9: #{tpu_custom_call.1} parent=5 // pred_check
        _
      $region10: #{tpu_custom_call.1} parent=5 // pred_check_branch
        %108 = sbr.rel (%p105) target = $region12
      $region11: #{tpu_custom_call.1} parent=5 // pred_region
        %s109 = ssub.s32 %s17, 1
      $region12: #{tpu_custom_call.1} parent=5 // pred_fallthru
        _
      %p110 = scmp.lt.s32.totalorder %s17, 2
      // Predicated region
      $region13: #{tpu_custom_call.1} parent=5 // pred_check
        %p111 = pneg %p110
      $region14: #{tpu_custom_call.1} parent=5 // pred_check_branch
        %113 = sbr.rel (%p111) target = $region16
      $region15: #{tpu_custom_call.1} parent=5 // pred_region
        // Predicated region
        $region17: #{tpu_custom_call.1} parent=15 // pred_check
          %p114 = pneg %p37
        $region18: #{tpu_custom_call.1} parent=15 // pred_check_branch
          %116 = sbr.rel (%p114) target = $region20
        $region19: #{tpu_custom_call.1} parent=15 // pred_region
          %s117 = sand.u32 %s27, 1
          %s118 = scalar_lea.sflag [#allocation3], %s117
          %s119 = sand.u32 %s27, 1
          %s120 = smul.addr %s119, 16
          %s121 = scalar_lea.vmem [#allocation2], %s120
          %s122 = smul.u32 2, %s17
          %s124 = ssub.s32 256, 256
          %125 = vsyncadd %s118, %s124
          %s126 = smul.addr %s122, 128
          %s127 = scalar_lea.hbm %s0, %s126
          %s128 = sshll.u32 %s121, 4
          %s129 = int_to_ptr.vmem [resolvable:$true] %s128
          %134 = dma.hbm_to_vmem [thread:$0]  %s127, 256, %s129, %s118, 128, 128, 8
        $region20: #{tpu_custom_call.1} parent=15 // pred_fallthru
          _
        // Predicated region
        $region21: #{tpu_custom_call.1} parent=15 // pred_check
          %p135 = pneg %p63
        $region22: #{tpu_custom_call.1} parent=15 // pred_check_branch
          %137 = sbr.rel (%p135) target = $region24
        $region23: #{tpu_custom_call.1} parent=15 // pred_region
          %s138 = sand.u32 %s53, 1
          %s139 = scalar_lea.sflag [#allocation6], %s138
          %s140 = sand.u32 %s53, 1
          %s141 = smul.addr %s140, 2
          %s142 = scalar_lea.vmem [#allocation5], %s141
          %s143 = smul.u32 2, %s17
          %s145 = ssub.s32 32, 32
          %146 = vsyncadd %s139, %s145
          %s147 = smul.addr %s143, 16
          %s148 = scalar_lea.hbm %s1, %s147
          %s149 = sshll.u32 %s142, 4
          %s150 = int_to_ptr.vmem [resolvable:$true] %s149
          %155 = dma.hbm_to_vmem [thread:$0]  %s148, 32, %s150, %s139, 16, 16, 1
        $region24: #{tpu_custom_call.1} parent=15 // pred_fallthru
          _
      $region16: #{tpu_custom_call.1} parent=5 // pred_fallthru
        _
      %p156 = scmp.le.s32.totalorder 1, %s17
      %p157 = scmp.lt.s32.totalorder %s17, 3
      %p158 = pnand %p156, %p157
      %p159 = pneg %p158
      // Predicated region
      $region25: #{tpu_custom_call.1} parent=5 // pred_check
        _
      $region26: #{tpu_custom_call.1} parent=5 // pred_check_branch
        %161 = sbr.rel (%p158) target = $region28
      $region27: #{tpu_custom_call.1} parent=5 // pred_region
        %s162 = ssub.s32 %s17, 1
        %s163 = sand.u32 %s30, 1
        %s164 = scalar_lea.sflag [#allocation3], %s163
        %s165 = sand.u32 %s30, 1
        %s166 = smul.addr %s165, 16
        %s167 = scalar_lea.vmem [#allocation2], %s166
        // Predicated region
        $region29: #{tpu_custom_call.1} parent=27 // pred_check
          %p168 = pneg %p43
        $region30: #{tpu_custom_call.1} parent=27 // pred_check_branch
          %170 = sbr.rel (%p168) target = $region32
        $region31: #{tpu_custom_call.1} parent=27 // pred_region
          %171 = dma.done %s164, 256
        $region32: #{tpu_custom_call.1} parent=27 // pred_fallthru
          _
        %s172 = sand.u32 %s56, 1
        %s173 = scalar_lea.sflag [#allocation6], %s172
        %s174 = sand.u32 %s56, 1
        %s175 = smul.addr %s174, 2
        %s176 = scalar_lea.vmem [#allocation5], %s175
        // Predicated region
        $region33: #{tpu_custom_call.1} parent=27 // pred_check
          %p177 = pneg %p69
        $region34: #{tpu_custom_call.1} parent=27 // pred_check_branch
          %179 = sbr.rel (%p177) target = $region36
        $region35: #{tpu_custom_call.1} parent=27 // pred_region
          %180 = dma.done %s173, 32
        $region36: #{tpu_custom_call.1} parent=27 // pred_fallthru
          _
        %s181 = sand.u32 %s30, 1
        %s182 = scalar_lea.sflag [#allocation3], %s181
        %s183 = sand.u32 %s30, 1
        %s184 = smul.addr %s183, 16
        %s185 = scalar_lea.vmem [#allocation2], %s184
        %p186 = pneg %p43
        %p187 = pneg %p40
        %s188 = sand.u32 %s56, 1
        %s189 = scalar_lea.sflag [#allocation6], %s188
        %s190 = sand.u32 %s56, 1
        %s191 = smul.addr %s190, 2
        %s192 = scalar_lea.vmem [#allocation5], %s191
        %p193 = pneg %p69
        %p194 = pneg %p66
        %p195 = pneg %p95
        %p196 = pneg %p92
        %s197 = sand.u32 %s82, 1
        %s198 = scalar_lea.sflag [#allocation4], %s197
        %s199 = sand.u32 %s82, 1
        %s200 = smul.addr %s199, 16
        %s201 = scalar_lea.vmem [#allocation7], %s200
        %s202 = smul.u32 2, %s22
        %s203 = smul.u32 2, %s22
        %s204 = smul.u32 2, %s22
        %v205 = vld [vmem:[%s167] sm:$0xff]
        %v206 = vld [vmem:[%s167 + $0x8] sm:$0xff]
        %v207 = vld [vmem:[%s176] sm:$0x1]
        %v208 = vld [vmem:[%s176 + $0x1] sm:$0x1]
        %v209 = vmul.f32 %v207, %v207
        %v210 = vmul.f32 %v208, %v208
        %vm211 = vcmask 57344
        %v212 = vsel %vm211, %v209, 0.0
        %213 = vadd.xlane.f32.xlu0 %v212
        %v214 = vpop.xlane.xlu0 %213
        %v215 = vsel %vm211, %v210, 0.0
        %216 = vadd.xlane.f32.xlu0 %v215
        %v217 = vpop.xlane.xlu0 %216
        %v218 = vrsqrt.pop %v214
        %v219 = vrsqrt.pop %v217
        %v220 = vmin.f32 %v218, 1e+12
        %v221 = vmin.f32 %v219, 1e+12
        %v222 = vmul.f32 %v207, %v220
        %v223 = vmul.f32 %v208, %v221
        %vm224 = vcmask 64512
        %v226 = vsel %vm224, %v222, 0
        %228 = vmatprep.subr.mxu0 0.0
        %229 = vmatpush1.msra.mxu0 0.0
        %230 = vmatprep.subr.mxu0 0.0
        %231 = vmatpush1.msra.mxu0 0.0
        %232 = vmatprep.subr.mxu0 0.0
        %233 = vmatpush1.msra.mxu0 0.0
        %234 = vmatprep.subr.mxu0 0.0
        %235 = vmatpush1.msra.mxu0 0.0
        %236 = vmatprep.subr.mxu0 0.0
        %237 = vmatpush1.msra.mxu0 0.0
        %238 = vmatprep.subr.mxu0 0.0
        %239 = vmatpush1.msra.mxu0 0.0
        %240 = vmatprep.subr.mxu0 0.0
        %241 = vmatpush1.msra.mxu0 0.0
        %242 = vmatprep.subr.mxu0 0.0
        %243 = vmatpush1.msra.mxu0 0.0
        %244 = vmatprep.subr.mxu0 0.0
        %245 = vmatpush1.msra.mxu0 0.0
        %246 = vmatprep.subr.mxu0 0.0
        %247 = vmatpush1.msra.mxu0 0.0
        %248 = vmatprep.subr.mxu0 0.0
        %249 = vmatpush1.msra.mxu0 0.0
        %250 = vmatprep.subr.mxu0 0.0
        %251 = vmatpush1.msra.mxu0 0.0
        %252 = vmatprep.subr.mxu0 0.0
        %253 = vmatpush1.msra.mxu0 0.0
        %254 = vmatprep.subr.mxu0 0.0
        %255 = vmatpush1.msra.mxu0 0.0
        %256 = vmatprep.subr.mxu0 0.0
        %257 = vmatpush1.msra.mxu0 0.0
        %258 = vmatprep.subr.mxu0 0.0
        %259 = vmatpush1.msra.mxu0 %v205
        %260 = vmatprep.subr.mxu0 0.0
        %261 = vmatpush2.msra.mxu0 0.0
        %262 = vmatprep.subr.mxu0 0.0
        %263 = vmatpush2.msra.mxu0 0.0
        %264 = vmatprep.subr.mxu0 0.0
        %265 = vmatpush2.msra.mxu0 0.0
        %266 = vmatprep.subr.mxu0 0.0
        %267 = vmatpush2.msra.mxu0 0.0
        %268 = vmatprep.subr.mxu0 0.0
        %269 = vmatpush2.msra.mxu0 0.0
        %270 = vmatprep.subr.mxu0 0.0
        %271 = vmatpush2.msra.mxu0 0.0
        %272 = vmatprep.subr.mxu0 0.0
        %273 = vmatpush2.msra.mxu0 0.0
        %274 = vmatprep.subr.mxu0 0.0
        %275 = vmatpush2.msra.mxu0 0.0
        %276 = vmatprep.subr.mxu0 0.0
        %277 = vmatpush2.msra.mxu0 0.0
        %278 = vmatprep.subr.mxu0 0.0
        %279 = vmatpush2.msra.mxu0 0.0
        %280 = vmatprep.subr.mxu0 0.0
        %281 = vmatpush2.msra.mxu0 0.0
        %282 = vmatprep.subr.mxu0 0.0
        %283 = vmatpush2.msra.mxu0 0.0
        %284 = vmatprep.subr.mxu0 0.0
        %285 = vmatpush2.msra.mxu0 0.0
        %286 = vmatprep.subr.mxu0 0.0
        %287 = vmatpush2.msra.mxu0 0.0
        %288 = vmatprep.subr.mxu0 0.0
        %289 = vmatpush2.msra.mxu0 0.0
        %290 = vmatprep.subr.mxu0 0.0
        %291 = vmatpush2.msra.mxu0 0.0
        %292 = vmatprep.mubr.f32.mxu0 0.0
        %293 = vmatmul.mubr.f32.gmra.mxu0 %v226
        %v294 = vpop.f32.mrf.mxu0
        %v295 = vadd.f32 0.0, %v294
        %v296 = vpop.f32.mrf.mxu0
        %297 = vdwg.mxu0
        %v299 = vsel %vm224, %v223, 0
        %301 = vmatprep.subr.mxu0 0.0
        %302 = vmatpush1.msra.mxu0 0.0
        %303 = vmatprep.subr.mxu0 0.0
        %304 = vmatpush1.msra.mxu0 0.0
        %305 = vmatprep.subr.mxu0 0.0
        %306 = vmatpush1.msra.mxu0 0.0
        %307 = vmatprep.subr.mxu0 0.0
        %308 = vmatpush1.msra.mxu0 0.0
        %309 = vmatprep.subr.mxu0 0.0
        %310 = vmatpush1.msra.mxu0 0.0
        %311 = vmatprep.subr.mxu0 0.0
        %312 = vmatpush1.msra.mxu0 0.0
        %313 = vmatprep.subr.mxu0 0.0
        %314 = vmatpush1.msra.mxu0 0.0
        %315 = vmatprep.subr.mxu0 0.0
        %316 = vmatpush1.msra.mxu0 0.0
        %317 = vmatprep.subr.mxu0 0.0
        %318 = vmatpush1.msra.mxu0 0.0
        %319 = vmatprep.subr.mxu0 0.0
        %320 = vmatpush1.msra.mxu0 0.0
        %321 = vmatprep.subr.mxu0 0.0
        %322 = vmatpush1.msra.mxu0 0.0
        %323 = vmatprep.subr.mxu0 0.0
        %324 = vmatpush1.msra.mxu0 0.0
        %325 = vmatprep.subr.mxu0 0.0
        %326 = vmatpush1.msra.mxu0 0.0
        %327 = vmatprep.subr.mxu0 0.0
        %328 = vmatpush1.msra.mxu0 0.0
        %329 = vmatprep.subr.mxu0 0.0
        %330 = vmatpush1.msra.mxu0 0.0
        %331 = vmatprep.subr.mxu0 0.0
        %332 = vmatpush1.msra.mxu0 %v206
        %333 = vmatprep.subr.mxu0 0.0
        %334 = vmatpush2.msra.mxu0 0.0
        %335 = vmatprep.subr.mxu0 0.0
        %336 = vmatpush2.msra.mxu0 0.0
        %337 = vmatprep.subr.mxu0 0.0
        %338 = vmatpush2.msra.mxu0 0.0
        %339 = vmatprep.subr.mxu0 0.0
        %340 = vmatpush2.msra.mxu0 0.0
        %341 = vmatprep.subr.mxu0 0.0
        %342 = vmatpush2.msra.mxu0 0.0
        %343 = vmatprep.subr.mxu0 0.0
        %344 = vmatpush2.msra.mxu0 0.0
        %345 = vmatprep.subr.mxu0 0.0
        %346 = vmatpush2.msra.mxu0 0.0
        %347 = vmatprep.subr.mxu0 0.0
        %348 = vmatpush2.msra.mxu0 0.0
        %349 = vmatprep.subr.mxu0 0.0
        %350 = vmatpush2.msra.mxu0 0.0
        %351 = vmatprep.subr.mxu0 0.0
        %352 = vmatpush2.msra.mxu0 0.0
        %353 = vmatprep.subr.mxu0 0.0
        %354 = vmatpush2.msra.mxu0 0.0
        %355 = vmatprep.subr.mxu0 0.0
        %356 = vmatpush2.msra.mxu0 0.0
        %357 = vmatprep.subr.mxu0 0.0
        %358 = vmatpush2.msra.mxu0 0.0
        %359 = vmatprep.subr.mxu0 0.0
        %360 = vmatpush2.msra.mxu0 0.0
        %361 = vmatprep.subr.mxu0 0.0
        %362 = vmatpush2.msra.mxu0 0.0
        %363 = vmatprep.subr.mxu0 0.0
        %364 = vmatpush2.msra.mxu0 0.0
        %365 = vmatprep.mubr.f32.mxu0 0.0
        %366 = vmatmul.mubr.f32.gmra.mxu0 %v299
        %v367 = vpop.f32.mrf.mxu0
        %v368 = vadd.f32 0.0, %v367
        %v369 = vpop.f32.mrf.mxu0
        %370 = vdwg.mxu0
        %v371 = vmul.f32 %v295, %v295
        %v372 = vmul.f32 %v368, %v368
        %vm373 = vcmask 1040384
        %v374 = vsel %vm373, %v371, 0.0
        %375 = vadd.xlane.f32.xlu0 %v374
        %v376 = vpop.xlane.xlu0 %375
        %v377 = vsel %vm373, %v372, 0.0
        %378 = vadd.xlane.f32.xlu0 %v377
        %v379 = vpop.xlane.xlu0 %378
        %v380 = vrsqrt.pop %v376
        %v381 = vrsqrt.pop %v379
        %v382 = vmin.f32 %v380, 1e+12
        %v383 = vmin.f32 %v381, 1e+12
        %v384 = vmul.f32 %v295, %v382
        %v385 = vmul.f32 %v368, %v383
        %386 = vmatprep.subr.mxu0 0.0
        %387 = vmatpush1.xpose.msra.mxu0 0.0
        %388 = vmatprep.subr.mxu0 0.0
        %389 = vmatpush1.xpose.msra.mxu0 0.0
        %390 = vmatprep.subr.mxu0 0.0
        %391 = vmatpush1.xpose.msra.mxu0 0.0
        %392 = vmatprep.subr.mxu0 0.0
        %393 = vmatpush1.xpose.msra.mxu0 0.0
        %394 = vmatprep.subr.mxu0 0.0
        %395 = vmatpush1.xpose.msra.mxu0 0.0
        %396 = vmatprep.subr.mxu0 0.0
        %397 = vmatpush1.xpose.msra.mxu0 0.0
        %398 = vmatprep.subr.mxu0 0.0
        %399 = vmatpush1.xpose.msra.mxu0 0.0
        %400 = vmatprep.subr.mxu0 0.0
        %401 = vmatpush1.xpose.msra.mxu0 0.0
        %402 = vmatprep.subr.mxu0 0.0
        %403 = vmatpush1.xpose.msra.mxu0 0.0
        %404 = vmatprep.subr.mxu0 0.0
        %405 = vmatpush1.xpose.msra.mxu0 0.0
        %406 = vmatprep.subr.mxu0 0.0
        %407 = vmatpush1.xpose.msra.mxu0 0.0
        %408 = vmatprep.subr.mxu0 0.0
        %409 = vmatpush1.xpose.msra.mxu0 0.0
        %410 = vmatprep.subr.mxu0 0.0
        %411 = vmatpush1.xpose.msra.mxu0 0.0
        %412 = vmatprep.subr.mxu0 0.0
        %413 = vmatpush1.xpose.msra.mxu0 0.0
        %414 = vmatprep.subr.mxu0 0.0
        %415 = vmatpush1.xpose.msra.mxu0 0.0
        %416 = vmatprep.subr.mxu0 0.0
        %417 = vmatpush1.xpose.msra.mxu0 %v205
        %418 = vmatprep.subr.mxu0 0.0
        %419 = vmatpush2.xpose.msra.mxu0 0.0
        %420 = vmatprep.subr.mxu0 0.0
        %421 = vmatpush2.xpose.msra.mxu0 0.0
        %422 = vmatprep.subr.mxu0 0.0
        %423 = vmatpush2.xpose.msra.mxu0 0.0
        %424 = vmatprep.subr.mxu0 0.0
        %425 = vmatpush2.xpose.msra.mxu0 0.0
        %426 = vmatprep.subr.mxu0 0.0
        %427 = vmatpush2.xpose.msra.mxu0 0.0
        %428 = vmatprep.subr.mxu0 0.0
        %429 = vmatpush2.xpose.msra.mxu0 0.0
        %430 = vmatprep.subr.mxu0 0.0
        %431 = vmatpush2.xpose.msra.mxu0 0.0
        %432 = vmatprep.subr.mxu0 0.0
        %433 = vmatpush2.xpose.msra.mxu0 0.0
        %434 = vmatprep.subr.mxu0 0.0
        %435 = vmatpush2.xpose.msra.mxu0 0.0
        %436 = vmatprep.subr.mxu0 0.0
        %437 = vmatpush2.xpose.msra.mxu0 0.0
        %438 = vmatprep.subr.mxu0 0.0
        %439 = vmatpush2.xpose.msra.mxu0 0.0
        %440 = vmatprep.subr.mxu0 0.0
        %441 = vmatpush2.xpose.msra.mxu0 0.0
        %442 = vmatprep.subr.mxu0 0.0
        %443 = vmatpush2.xpose.msra.mxu0 0.0
        %444 = vmatprep.subr.mxu0 0.0
        %445 = vmatpush2.xpose.msra.mxu0 0.0
        %446 = vmatprep.subr.mxu0 0.0
        %447 = vmatpush2.xpose.msra.mxu0 0.0
        %448 = vmatprep.subr.mxu0 0.0
        %449 = vmatpush2.xpose.msra.mxu0 0.0
        %450 = vmatprep.mubr.f32.mxu0 0.0
        %451 = vmatmul.mubr.f32.gmra.mxu0 %v384
        %v452 = vpop.f32.mrf.mxu0
        %v453 = vadd.f32 0.0, %v452
        %v454 = vpop.f32.mrf.mxu0
        %455 = vdwg.mxu0
        %456 = vmatprep.subr.mxu0 0.0
        %457 = vmatpush1.xpose.msra.mxu0 0.0
        %458 = vmatprep.subr.mxu0 0.0
        %459 = vmatpush1.xpose.msra.mxu0 0.0
        %460 = vmatprep.subr.mxu0 0.0
        %461 = vmatpush1.xpose.msra.mxu0 0.0
        %462 = vmatprep.subr.mxu0 0.0
        %463 = vmatpush1.xpose.msra.mxu0 0.0
        %464 = vmatprep.subr.mxu0 0.0
        %465 = vmatpush1.xpose.msra.mxu0 0.0
        %466 = vmatprep.subr.mxu0 0.0
        %467 = vmatpush1.xpose.msra.mxu0 0.0
        %468 = vmatprep.subr.mxu0 0.0
        %469 = vmatpush1.xpose.msra.mxu0 0.0
        %470 = vmatprep.subr.mxu0 0.0
        %471 = vmatpush1.xpose.msra.mxu0 0.0
        %472 = vmatprep.subr.mxu0 0.0
        %473 = vmatpush1.xpose.msra.mxu0 0.0
        %474 = vmatprep.subr.mxu0 0.0
        %475 = vmatpush1.xpose.msra.mxu0 0.0
        %476 = vmatprep.subr.mxu0 0.0
        %477 = vmatpush1.xpose.msra.mxu0 0.0
        %478 = vmatprep.subr.mxu0 0.0
        %479 = vmatpush1.xpose.msra.mxu0 0.0
        %480 = vmatprep.subr.mxu0 0.0
        %481 = vmatpush1.xpose.msra.mxu0 0.0
        %482 = vmatprep.subr.mxu0 0.0
        %483 = vmatpush1.xpose.msra.mxu0 0.0
        %484 = vmatprep.subr.mxu0 0.0
        %485 = vmatpush1.xpose.msra.mxu0 0.0
        %486 = vmatprep.subr.mxu0 0.0
        %487 = vmatpush1.xpose.msra.mxu0 %v206
        %488 = vmatprep.subr.mxu0 0.0
        %489 = vmatpush2.xpose.msra.mxu0 0.0
        %490 = vmatprep.subr.mxu0 0.0
        %491 = vmatpush2.xpose.msra.mxu0 0.0
        %492 = vmatprep.subr.mxu0 0.0
        %493 = vmatpush2.xpose.msra.mxu0 0.0
        %494 = vmatprep.subr.mxu0 0.0
        %495 = vmatpush2.xpose.msra.mxu0 0.0
        %496 = vmatprep.subr.mxu0 0.0
        %497 = vmatpush2.xpose.msra.mxu0 0.0
        %498 = vmatprep.subr.mxu0 0.0
        %499 = vmatpush2.xpose.msra.mxu0 0.0
        %500 = vmatprep.subr.mxu0 0.0
        %501 = vmatpush2.xpose.msra.mxu0 0.0
        %502 = vmatprep.subr.mxu0 0.0
        %503 = vmatpush2.xpose.msra.mxu0 0.0
        %504 = vmatprep.subr.mxu0 0.0
        %505 = vmatpush2.xpose.msra.mxu0 0.0
        %506 = vmatprep.subr.mxu0 0.0
        %507 = vmatpush2.xpose.msra.mxu0 0.0
        %508 = vmatprep.subr.mxu0 0.0
        %509 = vmatpush2.xpose.msra.mxu0 0.0
        %510 = vmatprep.subr.mxu0 0.0
        %511 = vmatpush2.xpose.msra.mxu0 0.0
        %512 = vmatprep.subr.mxu0 0.0
        %513 = vmatpush2.xpose.msra.mxu0 0.0
        %514 = vmatprep.subr.mxu0 0.0
        %515 = vmatpush2.xpose.msra.mxu0 0.0
        %516 = vmatprep.subr.mxu0 0.0
        %517 = vmatpush2.xpose.msra.mxu0 0.0
        %518 = vmatprep.subr.mxu0 0.0
        %519 = vmatpush2.xpose.msra.mxu0 0.0
        %520 = vmatprep.mubr.f32.mxu0 0.0
        %521 = vmatmul.mubr.f32.gmra.mxu0 %v385
        %v522 = vpop.f32.mrf.mxu0
        %v523 = vadd.f32 0.0, %v522
        %v524 = vpop.f32.mrf.mxu0
        %525 = vdwg.mxu0
        %v526 = vmul.f32 %v453, %v453
        %v527 = vmul.f32 %v523, %v523
        %v528 = vsel %vm211, %v526, 0.0
        %529 = vadd.xlane.f32.xlu0 %v528
        %v530 = vpop.xlane.xlu0 %529
        %v531 = vsel %vm211, %v527, 0.0
        %532 = vadd.xlane.f32.xlu0 %v531
        %v533 = vpop.xlane.xlu0 %532
        %v534 = vrsqrt.pop %v530
        %v535 = vrsqrt.pop %v533
        %v536 = vmin.f32 %v534, 1e+12
        %v537 = vmin.f32 %v535, 1e+12
        %v538 = vmul.f32 %v453, %v536
        %v539 = vmul.f32 %v523, %v537
        %v541 = vsel %vm224, %v538, 0
        %543 = vmatprep.subr.mxu0 0.0
        %544 = vmatpush1.msra.mxu0 0.0
        %545 = vmatprep.subr.mxu0 0.0
        %546 = vmatpush1.msra.mxu0 0.0
        %547 = vmatprep.subr.mxu0 0.0
        %548 = vmatpush1.msra.mxu0 0.0
        %549 = vmatprep.subr.mxu0 0.0
        %550 = vmatpush1.msra.mxu0 0.0
        %551 = vmatprep.subr.mxu0 0.0
        %552 = vmatpush1.msra.mxu0 0.0
        %553 = vmatprep.subr.mxu0 0.0
        %554 = vmatpush1.msra.mxu0 0.0
        %555 = vmatprep.subr.mxu0 0.0
        %556 = vmatpush1.msra.mxu0 0.0
        %557 = vmatprep.subr.mxu0 0.0
        %558 = vmatpush1.msra.mxu0 0.0
        %559 = vmatprep.subr.mxu0 0.0
        %560 = vmatpush1.msra.mxu0 0.0
        %561 = vmatprep.subr.mxu0 0.0
        %562 = vmatpush1.msra.mxu0 0.0
        %563 = vmatprep.subr.mxu0 0.0
        %564 = vmatpush1.msra.mxu0 0.0
        %565 = vmatprep.subr.mxu0 0.0
        %566 = vmatpush1.msra.mxu0 0.0
        %567 = vmatprep.subr.mxu0 0.0
        %568 = vmatpush1.msra.mxu0 0.0
        %569 = vmatprep.subr.mxu0 0.0
        %570 = vmatpush1.msra.mxu0 0.0
        %571 = vmatprep.subr.mxu0 0.0
        %572 = vmatpush1.msra.mxu0 0.0
        %573 = vmatprep.subr.mxu0 0.0
        %574 = vmatpush1.msra.mxu0 %v205
        %575 = vmatprep.subr.mxu0 0.0
        %576 = vmatpush2.msra.mxu0 0.0
        %577 = vmatprep.subr.mxu0 0.0
        %578 = vmatpush2.msra.mxu0 0.0
        %579 = vmatprep.subr.mxu0 0.0
        %580 = vmatpush2.msra.mxu0 0.0
        %581 = vmatprep.subr.mxu0 0.0
        %582 = vmatpush2.msra.mxu0 0.0
        %583 = vmatprep.subr.mxu0 0.0
        %584 = vmatpush2.msra.mxu0 0.0
        %585 = vmatprep.subr.mxu0 0.0
        %586 = vmatpush2.msra.mxu0 0.0
        %587 = vmatprep.subr.mxu0 0.0
        %588 = vmatpush2.msra.mxu0 0.0
        %589 = vmatprep.subr.mxu0 0.0
        %590 = vmatpush2.msra.mxu0 0.0
        %591 = vmatprep.subr.mxu0 0.0
        %592 = vmatpush2.msra.mxu0 0.0
        %593 = vmatprep.subr.mxu0 0.0
        %594 = vmatpush2.msra.mxu0 0.0
        %595 = vmatprep.subr.mxu0 0.0
        %596 = vmatpush2.msra.mxu0 0.0
        %597 = vmatprep.subr.mxu0 0.0
        %598 = vmatpush2.msra.mxu0 0.0
        %599 = vmatprep.subr.mxu0 0.0
        %600 = vmatpush2.msra.mxu0 0.0
        %601 = vmatprep.subr.mxu0 0.0
        %602 = vmatpush2.msra.mxu0 0.0
        %603 = vmatprep.subr.mxu0 0.0
        %604 = vmatpush2.msra.mxu0 0.0
        %605 = vmatprep.subr.mxu0 0.0
        %606 = vmatpush2.msra.mxu0 0.0
        %607 = vmatprep.mubr.f32.mxu0 0.0
        %608 = vmatmul.mubr.f32.gmra.mxu0 %v541
        %v609 = vpop.f32.mrf.mxu0
        %v610 = vadd.f32 0.0, %v609
        %v611 = vpop.f32.mrf.mxu0
        %612 = vdwg.mxu0
        %v614 = vsel %vm224, %v539, 0
        %616 = vmatprep.subr.mxu0 0.0
        %617 = vmatpush1.msra.mxu0 0.0
        %618 = vmatprep.subr.mxu0 0.0
        %619 = vmatpush1.msra.mxu0 0.0
        %620 = vmatprep.subr.mxu0 0.0
        %621 = vmatpush1.msra.mxu0 0.0
        %622 = vmatprep.subr.mxu0 0.0
        %623 = vmatpush1.msra.mxu0 0.0
        %624 = vmatprep.subr.mxu0 0.0
        %625 = vmatpush1.msra.mxu0 0.0
        %626 = vmatprep.subr.mxu0 0.0
        %627 = vmatpush1.msra.mxu0 0.0
        %628 = vmatprep.subr.mxu0 0.0
        %629 = vmatpush1.msra.mxu0 0.0
        %630 = vmatprep.subr.mxu0 0.0
        %631 = vmatpush1.msra.mxu0 0.0
        %632 = vmatprep.subr.mxu0 0.0
        %633 = vmatpush1.msra.mxu0 0.0
        %634 = vmatprep.subr.mxu0 0.0
        %635 = vmatpush1.msra.mxu0 0.0
        %636 = vmatprep.subr.mxu0 0.0
        %637 = vmatpush1.msra.mxu0 0.0
        %638 = vmatprep.subr.mxu0 0.0
        %639 = vmatpush1.msra.mxu0 0.0
        %640 = vmatprep.subr.mxu0 0.0
        %641 = vmatpush1.msra.mxu0 0.0
        %642 = vmatprep.subr.mxu0 0.0
        %643 = vmatpush1.msra.mxu0 0.0
        %644 = vmatprep.subr.mxu0 0.0
        %645 = vmatpush1.msra.mxu0 0.0
        %646 = vmatprep.subr.mxu0 0.0
        %647 = vmatpush1.msra.mxu0 %v206
        %648 = vmatprep.subr.mxu0 0.0
        %649 = vmatpush2.msra.mxu0 0.0
        %650 = vmatprep.subr.mxu0 0.0
        %651 = vmatpush2.msra.mxu0 0.0
        %652 = vmatprep.subr.mxu0 0.0
        %653 = vmatpush2.msra.mxu0 0.0
        %654 = vmatprep.subr.mxu0 0.0
        %655 = vmatpush2.msra.mxu0 0.0
        %656 = vmatprep.subr.mxu0 0.0
        %657 = vmatpush2.msra.mxu0 0.0
        %658 = vmatprep.subr.mxu0 0.0
        %659 = vmatpush2.msra.mxu0 0.0
        %660 = vmatprep.subr.mxu0 0.0
        %661 = vmatpush2.msra.mxu0 0.0
        %662 = vmatprep.subr.mxu0 0.0
        %663 = vmatpush2.msra.mxu0 0.0
        %664 = vmatprep.subr.mxu0 0.0
        %665 = vmatpush2.msra.mxu0 0.0
        %666 = vmatprep.subr.mxu0 0.0
        %667 = vmatpush2.msra.mxu0 0.0
        %668 = vmatprep.subr.mxu0 0.0
        %669 = vmatpush2.msra.mxu0 0.0
        %670 = vmatprep.subr.mxu0 0.0
        %671 = vmatpush2.msra.mxu0 0.0
        %672 = vmatprep.subr.mxu0 0.0
        %673 = vmatpush2.msra.mxu0 0.0
        %674 = vmatprep.subr.mxu0 0.0
        %675 = vmatpush2.msra.mxu0 0.0
        %676 = vmatprep.subr.mxu0 0.0
        %677 = vmatpush2.msra.mxu0 0.0
        %678 = vmatprep.subr.mxu0 0.0
        %679 = vmatpush2.msra.mxu0 0.0
        %680 = vmatprep.mubr.f32.mxu0 0.0
        %681 = vmatmul.mubr.f32.gmra.mxu0 %v614
        %v682 = vpop.f32.mrf.mxu0
        %v683 = vadd.f32 0.0, %v682
        %v684 = vpop.f32.mrf.mxu0
        %685 = vdwg.mxu0
        %v686 = vmul.f32 %v610, %v610
        %v687 = vmul.f32 %v683, %v683
        %v688 = vsel %vm373, %v686, 0.0
        %689 = vadd.xlane.f32.xlu0 %v688
        %v690 = vpop.xlane.xlu0 %689
        %v691 = vsel %vm373, %v687, 0.0
        %692 = vadd.xlane.f32.xlu0 %v691
        %v693 = vpop.xlane.xlu0 %692
        %v694 = vrsqrt.pop %v690
        %v695 = vrsqrt.pop %v693
        %v696 = vmin.f32 %v694, 1e+12
        %v697 = vmin.f32 %v695, 1e+12
        %v698 = vmul.f32 %v610, %v696
        %v699 = vmul.f32 %v683, %v697
        %700 = vmatprep.subr.mxu0 0.0
        %701 = vmatpush1.xpose.msra.mxu0 0.0
        %702 = vmatprep.subr.mxu0 0.0
        %703 = vmatpush1.xpose.msra.mxu0 0.0
        %704 = vmatprep.subr.mxu0 0.0
        %705 = vmatpush1.xpose.msra.mxu0 0.0
        %706 = vmatprep.subr.mxu0 0.0
        %707 = vmatpush1.xpose.msra.mxu0 0.0
        %708 = vmatprep.subr.mxu0 0.0
        %709 = vmatpush1.xpose.msra.mxu0 0.0
        %710 = vmatprep.subr.mxu0 0.0
        %711 = vmatpush1.xpose.msra.mxu0 0.0
        %712 = vmatprep.subr.mxu0 0.0
        %713 = vmatpush1.xpose.msra.mxu0 0.0
        %714 = vmatprep.subr.mxu0 0.0
        %715 = vmatpush1.xpose.msra.mxu0 0.0
        %716 = vmatprep.subr.mxu0 0.0
        %717 = vmatpush1.xpose.msra.mxu0 0.0
        %718 = vmatprep.subr.mxu0 0.0
        %719 = vmatpush1.xpose.msra.mxu0 0.0
        %720 = vmatprep.subr.mxu0 0.0
        %721 = vmatpush1.xpose.msra.mxu0 0.0
        %722 = vmatprep.subr.mxu0 0.0
        %723 = vmatpush1.xpose.msra.mxu0 0.0
        %724 = vmatprep.subr.mxu0 0.0
        %725 = vmatpush1.xpose.msra.mxu0 0.0
        %726 = vmatprep.subr.mxu0 0.0
        %727 = vmatpush1.xpose.msra.mxu0 0.0
        %728 = vmatprep.subr.mxu0 0.0
        %729 = vmatpush1.xpose.msra.mxu0 0.0
        %730 = vmatprep.subr.mxu0 0.0
        %731 = vmatpush1.xpose.msra.mxu0 %v205
        %732 = vmatprep.subr.mxu0 0.0
        %733 = vmatpush2.xpose.msra.mxu0 0.0
        %734 = vmatprep.subr.mxu0 0.0
        %735 = vmatpush2.xpose.msra.mxu0 0.0
        %736 = vmatprep.subr.mxu0 0.0
        %737 = vmatpush2.xpose.msra.mxu0 0.0
        %738 = vmatprep.subr.mxu0 0.0
        %739 = vmatpush2.xpose.msra.mxu0 0.0
        %740 = vmatprep.subr.mxu0 0.0
        %741 = vmatpush2.xpose.msra.mxu0 0.0
        %742 = vmatprep.subr.mxu0 0.0
        %743 = vmatpush2.xpose.msra.mxu0 0.0
        %744 = vmatprep.subr.mxu0 0.0
        %745 = vmatpush2.xpose.msra.mxu0 0.0
        %746 = vmatprep.subr.mxu0 0.0
        %747 = vmatpush2.xpose.msra.mxu0 0.0
        %748 = vmatprep.subr.mxu0 0.0
        %749 = vmatpush2.xpose.msra.mxu0 0.0
        %750 = vmatprep.subr.mxu0 0.0
        %751 = vmatpush2.xpose.msra.mxu0 0.0
        %752 = vmatprep.subr.mxu0 0.0
        %753 = vmatpush2.xpose.msra.mxu0 0.0
        %754 = vmatprep.subr.mxu0 0.0
        %755 = vmatpush2.xpose.msra.mxu0 0.0
        %756 = vmatprep.subr.mxu0 0.0
        %757 = vmatpush2.xpose.msra.mxu0 0.0
        %758 = vmatprep.subr.mxu0 0.0
        %759 = vmatpush2.xpose.msra.mxu0 0.0
        %760 = vmatprep.subr.mxu0 0.0
        %761 = vmatpush2.xpose.msra.mxu0 0.0
        %762 = vmatprep.subr.mxu0 0.0
        %763 = vmatpush2.xpose.msra.mxu0 0.0
        %764 = vmatprep.mubr.f32.mxu0 0.0
        %765 = vmatmul.mubr.f32.gmra.mxu0 %v698
        %v766 = vpop.f32.mrf.mxu0
        %v767 = vadd.f32 0.0, %v766
        %v768 = vpop.f32.mrf.mxu0
        %769 = vdwg.mxu0
        %770 = vmatprep.subr.mxu0 0.0
        %771 = vmatpush1.xpose.msra.mxu0 0.0
        %772 = vmatprep.subr.mxu0 0.0
        %773 = vmatpush1.xpose.msra.mxu0 0.0
        %774 = vmatprep.subr.mxu0 0.0
        %775 = vmatpush1.xpose.msra.mxu0 0.0
        %776 = vmatprep.subr.mxu0 0.0
        %777 = vmatpush1.xpose.msra.mxu0 0.0
        %778 = vmatprep.subr.mxu0 0.0
        %779 = vmatpush1.xpose.msra.mxu0 0.0
        %780 = vmatprep.subr.mxu0 0.0
        %781 = vmatpush1.xpose.msra.mxu0 0.0
        %782 = vmatprep.subr.mxu0 0.0
        %783 = vmatpush1.xpose.msra.mxu0 0.0
        %784 = vmatprep.subr.mxu0 0.0
        %785 = vmatpush1.xpose.msra.mxu0 0.0
        %786 = vmatprep.subr.mxu0 0.0
        %787 = vmatpush1.xpose.msra.mxu0 0.0
        %788 = vmatprep.subr.mxu0 0.0
        %789 = vmatpush1.xpose.msra.mxu0 0.0
        %790 = vmatprep.subr.mxu0 0.0
        %791 = vmatpush1.xpose.msra.mxu0 0.0
        %792 = vmatprep.subr.mxu0 0.0
        %793 = vmatpush1.xpose.msra.mxu0 0.0
        %794 = vmatprep.subr.mxu0 0.0
        %795 = vmatpush1.xpose.msra.mxu0 0.0
        %796 = vmatprep.subr.mxu0 0.0
        %797 = vmatpush1.xpose.msra.mxu0 0.0
        %798 = vmatprep.subr.mxu0 0.0
        %799 = vmatpush1.xpose.msra.mxu0 0.0
        %800 = vmatprep.subr.mxu0 0.0
        %801 = vmatpush1.xpose.msra.mxu0 %v206
        %802 = vmatprep.subr.mxu0 0.0
        %803 = vmatpush2.xpose.msra.mxu0 0.0
        %804 = vmatprep.subr.mxu0 0.0
        %805 = vmatpush2.xpose.msra.mxu0 0.0
        %806 = vmatprep.subr.mxu0 0.0
        %807 = vmatpush2.xpose.msra.mxu0 0.0
        %808 = vmatprep.subr.mxu0 0.0
        %809 = vmatpush2.xpose.msra.mxu0 0.0
        %810 = vmatprep.subr.mxu0 0.0
        %811 = vmatpush2.xpose.msra.mxu0 0.0
        %812 = vmatprep.subr.mxu0 0.0
        %813 = vmatpush2.xpose.msra.mxu0 0.0
        %814 = vmatprep.subr.mxu0 0.0
        %815 = vmatpush2.xpose.msra.mxu0 0.0
        %816 = vmatprep.subr.mxu0 0.0
        %817 = vmatpush2.xpose.msra.mxu0 0.0
        %818 = vmatprep.subr.mxu0 0.0
        %819 = vmatpush2.xpose.msra.mxu0 0.0
        %820 = vmatprep.subr.mxu0 0.0
        %821 = vmatpush2.xpose.msra.mxu0 0.0
        %822 = vmatprep.subr.mxu0 0.0
        %823 = vmatpush2.xpose.msra.mxu0 0.0
        %824 = vmatprep.subr.mxu0 0.0
        %825 = vmatpush2.xpose.msra.mxu0 0.0
        %826 = vmatprep.subr.mxu0 0.0
        %827 = vmatpush2.xpose.msra.mxu0 0.0
        %828 = vmatprep.subr.mxu0 0.0
        %829 = vmatpush2.xpose.msra.mxu0 0.0
        %830 = vmatprep.subr.mxu0 0.0
        %831 = vmatpush2.xpose.msra.mxu0 0.0
        %832 = vmatprep.subr.mxu0 0.0
        %833 = vmatpush2.xpose.msra.mxu0 0.0
        %834 = vmatprep.mubr.f32.mxu0 0.0
        %835 = vmatmul.mubr.f32.gmra.mxu0 %v699
        %v836 = vpop.f32.mrf.mxu0
        %v837 = vadd.f32 0.0, %v836
        %v838 = vpop.f32.mrf.mxu0
        %839 = vdwg.mxu0
        %v840 = vmul.f32 %v767, %v767
        %v841 = vmul.f32 %v837, %v837
        %v842 = vsel %vm211, %v840, 0.0
        %843 = vadd.xlane.f32.xlu0 %v842
        %v844 = vpop.xlane.xlu0 %843
        %v845 = vsel %vm211, %v841, 0.0
        %846 = vadd.xlane.f32.xlu0 %v845
        %v847 = vpop.xlane.xlu0 %846
        %v848 = vrsqrt.pop %v844
        %v849 = vrsqrt.pop %v847
        %v850 = vmin.f32 %v848, 1e+12
        %v851 = vmin.f32 %v849, 1e+12
        %v852 = vmul.f32 %v767, %v850
        %v853 = vmul.f32 %v837, %v851
        %v855 = vsel %vm224, %v852, 0
        %857 = vmatprep.subr.mxu0 0.0
        %858 = vmatpush1.msra.mxu0 0.0
        %859 = vmatprep.subr.mxu0 0.0
        %860 = vmatpush1.msra.mxu0 0.0
        %861 = vmatprep.subr.mxu0 0.0
        %862 = vmatpush1.msra.mxu0 0.0
        %863 = vmatprep.subr.mxu0 0.0
        %864 = vmatpush1.msra.mxu0 0.0
        %865 = vmatprep.subr.mxu0 0.0
        %866 = vmatpush1.msra.mxu0 0.0
        %867 = vmatprep.subr.mxu0 0.0
        %868 = vmatpush1.msra.mxu0 0.0
        %869 = vmatprep.subr.mxu0 0.0
        %870 = vmatpush1.msra.mxu0 0.0
        %871 = vmatprep.subr.mxu0 0.0
        %872 = vmatpush1.msra.mxu0 0.0
        %873 = vmatprep.subr.mxu0 0.0
        %874 = vmatpush1.msra.mxu0 0.0
        %875 = vmatprep.subr.mxu0 0.0
        %876 = vmatpush1.msra.mxu0 0.0
        %877 = vmatprep.subr.mxu0 0.0
        %878 = vmatpush1.msra.mxu0 0.0
        %879 = vmatprep.subr.mxu0 0.0
        %880 = vmatpush1.msra.mxu0 0.0
        %881 = vmatprep.subr.mxu0 0.0
        %882 = vmatpush1.msra.mxu0 0.0
        %883 = vmatprep.subr.mxu0 0.0
        %884 = vmatpush1.msra.mxu0 0.0
        %885 = vmatprep.subr.mxu0 0.0
        %886 = vmatpush1.msra.mxu0 0.0
        %887 = vmatprep.subr.mxu0 0.0
        %888 = vmatpush1.msra.mxu0 %v205
        %889 = vmatprep.subr.mxu0 0.0
        %890 = vmatpush2.msra.mxu0 0.0
        %891 = vmatprep.subr.mxu0 0.0
        %892 = vmatpush2.msra.mxu0 0.0
        %893 = vmatprep.subr.mxu0 0.0
        %894 = vmatpush2.msra.mxu0 0.0
        %895 = vmatprep.subr.mxu0 0.0
        %896 = vmatpush2.msra.mxu0 0.0
        %897 = vmatprep.subr.mxu0 0.0
        %898 = vmatpush2.msra.mxu0 0.0
        %899 = vmatprep.subr.mxu0 0.0
        %900 = vmatpush2.msra.mxu0 0.0
        %901 = vmatprep.subr.mxu0 0.0
        %902 = vmatpush2.msra.mxu0 0.0
        %903 = vmatprep.subr.mxu0 0.0
        %904 = vmatpush2.msra.mxu0 0.0
        %905 = vmatprep.subr.mxu0 0.0
        %906 = vmatpush2.msra.mxu0 0.0
        %907 = vmatprep.subr.mxu0 0.0
        %908 = vmatpush2.msra.mxu0 0.0
        %909 = vmatprep.subr.mxu0 0.0
        %910 = vmatpush2.msra.mxu0 0.0
        %911 = vmatprep.subr.mxu0 0.0
        %912 = vmatpush2.msra.mxu0 0.0
        %913 = vmatprep.subr.mxu0 0.0
        %914 = vmatpush2.msra.mxu0 0.0
        %915 = vmatprep.subr.mxu0 0.0
        %916 = vmatpush2.msra.mxu0 0.0
        %917 = vmatprep.subr.mxu0 0.0
        %918 = vmatpush2.msra.mxu0 0.0
        %919 = vmatprep.subr.mxu0 0.0
        %920 = vmatpush2.msra.mxu0 0.0
        %921 = vmatprep.mubr.f32.mxu0 0.0
        %922 = vmatmul.mubr.f32.gmra.mxu0 %v855
        %v923 = vpop.f32.mrf.mxu0
        %v924 = vadd.f32 0.0, %v923
        %v925 = vpop.f32.mrf.mxu0
        %926 = vdwg.mxu0
        %v928 = vsel %vm224, %v853, 0
        %930 = vmatprep.subr.mxu0 0.0
        %931 = vmatpush1.msra.mxu0 0.0
        %932 = vmatprep.subr.mxu0 0.0
        %933 = vmatpush1.msra.mxu0 0.0
        %934 = vmatprep.subr.mxu0 0.0
        %935 = vmatpush1.msra.mxu0 0.0
        %936 = vmatprep.subr.mxu0 0.0
        %937 = vmatpush1.msra.mxu0 0.0
        %938 = vmatprep.subr.mxu0 0.0
        %939 = vmatpush1.msra.mxu0 0.0
        %940 = vmatprep.subr.mxu0 0.0
        %941 = vmatpush1.msra.mxu0 0.0
        %942 = vmatprep.subr.mxu0 0.0
        %943 = vmatpush1.msra.mxu0 0.0
        %944 = vmatprep.subr.mxu0 0.0
        %945 = vmatpush1.msra.mxu0 0.0
        %946 = vmatprep.subr.mxu0 0.0
        %947 = vmatpush1.msra.mxu0 0.0
        %948 = vmatprep.subr.mxu0 0.0
        %949 = vmatpush1.msra.mxu0 0.0
        %950 = vmatprep.subr.mxu0 0.0
        %951 = vmatpush1.msra.mxu0 0.0
        %952 = vmatprep.subr.mxu0 0.0
        %953 = vmatpush1.msra.mxu0 0.0
        %954 = vmatprep.subr.mxu0 0.0
        %955 = vmatpush1.msra.mxu0 0.0
        %956 = vmatprep.subr.mxu0 0.0
        %957 = vmatpush1.msra.mxu0 0.0
        %958 = vmatprep.subr.mxu0 0.0
        %959 = vmatpush1.msra.mxu0 0.0
        %960 = vmatprep.subr.mxu0 0.0
        %961 = vmatpush1.msra.mxu0 %v206
        %962 = vmatprep.subr.mxu0 0.0
        %963 = vmatpush2.msra.mxu0 0.0
        %964 = vmatprep.subr.mxu0 0.0
        %965 = vmatpush2.msra.mxu0 0.0
        %966 = vmatprep.subr.mxu0 0.0
        %967 = vmatpush2.msra.mxu0 0.0
        %968 = vmatprep.subr.mxu0 0.0
        %969 = vmatpush2.msra.mxu0 0.0
        %970 = vmatprep.subr.mxu0 0.0
        %971 = vmatpush2.msra.mxu0 0.0
        %972 = vmatprep.subr.mxu0 0.0
        %973 = vmatpush2.msra.mxu0 0.0
        %974 = vmatprep.subr.mxu0 0.0
        %975 = vmatpush2.msra.mxu0 0.0
        %976 = vmatprep.subr.mxu0 0.0
        %977 = vmatpush2.msra.mxu0 0.0
        %978 = vmatprep.subr.mxu0 0.0
        %979 = vmatpush2.msra.mxu0 0.0
        %980 = vmatprep.subr.mxu0 0.0
        %981 = vmatpush2.msra.mxu0 0.0
        %982 = vmatprep.subr.mxu0 0.0
        %983 = vmatpush2.msra.mxu0 0.0
        %984 = vmatprep.subr.mxu0 0.0
        %985 = vmatpush2.msra.mxu0 0.0
        %986 = vmatprep.subr.mxu0 0.0
        %987 = vmatpush2.msra.mxu0 0.0
        %988 = vmatprep.subr.mxu0 0.0
        %989 = vmatpush2.msra.mxu0 0.0
        %990 = vmatprep.subr.mxu0 0.0
        %991 = vmatpush2.msra.mxu0 0.0
        %992 = vmatprep.subr.mxu0 0.0
        %993 = vmatpush2.msra.mxu0 0.0
        %994 = vmatprep.mubr.f32.mxu0 0.0
        %995 = vmatmul.mubr.f32.gmra.mxu0 %v928
        %v996 = vpop.f32.mrf.mxu0
        %v997 = vadd.f32 0.0, %v996
        %v998 = vpop.f32.mrf.mxu0
        %999 = vdwg.mxu0
        %v1000 = vmul.f32 %v924, %v924
        %v1001 = vmul.f32 %v997, %v997
        %v1002 = vsel %vm373, %v1000, 0.0
        %1003 = vadd.xlane.f32.xlu0 %v1002
        %v1004 = vpop.xlane.xlu0 %1003
        %v1005 = vsel %vm373, %v1001, 0.0
        %1006 = vadd.xlane.f32.xlu0 %v1005
        %v1007 = vpop.xlane.xlu0 %1006
        %v1008 = vrsqrt.pop %v1004
        %v1009 = vrsqrt.pop %v1007
        %v1010 = vmin.f32 %v1008, 1e+12
        %v1011 = vmin.f32 %v1009, 1e+12
        %v1012 = vmul.f32 %v924, %v1010
        %v1013 = vmul.f32 %v997, %v1011
        %1014 = vmatprep.subr.mxu0 0.0
        %1015 = vmatpush1.xpose.msra.mxu0 0.0
        %1016 = vmatprep.subr.mxu0 0.0
        %1017 = vmatpush1.xpose.msra.mxu0 0.0
        %1018 = vmatprep.subr.mxu0 0.0
        %1019 = vmatpush1.xpose.msra.mxu0 0.0
        %1020 = vmatprep.subr.mxu0 0.0
        %1021 = vmatpush1.xpose.msra.mxu0 0.0
        %1022 = vmatprep.subr.mxu0 0.0
        %1023 = vmatpush1.xpose.msra.mxu0 0.0
        %1024 = vmatprep.subr.mxu0 0.0
        %1025 = vmatpush1.xpose.msra.mxu0 0.0
        %1026 = vmatprep.subr.mxu0 0.0
        %1027 = vmatpush1.xpose.msra.mxu0 0.0
        %1028 = vmatprep.subr.mxu0 0.0
        %1029 = vmatpush1.xpose.msra.mxu0 0.0
        %1030 = vmatprep.subr.mxu0 0.0
        %1031 = vmatpush1.xpose.msra.mxu0 0.0
        %1032 = vmatprep.subr.mxu0 0.0
        %1033 = vmatpush1.xpose.msra.mxu0 0.0
        %1034 = vmatprep.subr.mxu0 0.0
        %1035 = vmatpush1.xpose.msra.mxu0 0.0
        %1036 = vmatprep.subr.mxu0 0.0
        %1037 = vmatpush1.xpose.msra.mxu0 0.0
        %1038 = vmatprep.subr.mxu0 0.0
        %1039 = vmatpush1.xpose.msra.mxu0 0.0
        %1040 = vmatprep.subr.mxu0 0.0
        %1041 = vmatpush1.xpose.msra.mxu0 0.0
        %1042 = vmatprep.subr.mxu0 0.0
        %1043 = vmatpush1.xpose.msra.mxu0 0.0
        %1044 = vmatprep.subr.mxu0 0.0
        %1045 = vmatpush1.xpose.msra.mxu0 %v205
        %1046 = vmatprep.subr.mxu0 0.0
        %1047 = vmatpush2.xpose.msra.mxu0 0.0
        %1048 = vmatprep.subr.mxu0 0.0
        %1049 = vmatpush2.xpose.msra.mxu0 0.0
        %1050 = vmatprep.subr.mxu0 0.0
        %1051 = vmatpush2.xpose.msra.mxu0 0.0
        %1052 = vmatprep.subr.mxu0 0.0
        %1053 = vmatpush2.xpose.msra.mxu0 0.0
        %1054 = vmatprep.subr.mxu0 0.0
        %1055 = vmatpush2.xpose.msra.mxu0 0.0
        %1056 = vmatprep.subr.mxu0 0.0
        %1057 = vmatpush2.xpose.msra.mxu0 0.0
        %1058 = vmatprep.subr.mxu0 0.0
        %1059 = vmatpush2.xpose.msra.mxu0 0.0
        %1060 = vmatprep.subr.mxu0 0.0
        %1061 = vmatpush2.xpose.msra.mxu0 0.0
        %1062 = vmatprep.subr.mxu0 0.0
        %1063 = vmatpush2.xpose.msra.mxu0 0.0
        %1064 = vmatprep.subr.mxu0 0.0
        %1065 = vmatpush2.xpose.msra.mxu0 0.0
        %1066 = vmatprep.subr.mxu0 0.0
        %1067 = vmatpush2.xpose.msra.mxu0 0.0
        %1068 = vmatprep.subr.mxu0 0.0
        %1069 = vmatpush2.xpose.msra.mxu0 0.0
        %1070 = vmatprep.subr.mxu0 0.0
        %1071 = vmatpush2.xpose.msra.mxu0 0.0
        %1072 = vmatprep.subr.mxu0 0.0
        %1073 = vmatpush2.xpose.msra.mxu0 0.0
        %1074 = vmatprep.subr.mxu0 0.0
        %1075 = vmatpush2.xpose.msra.mxu0 0.0
        %1076 = vmatprep.subr.mxu0 0.0
        %1077 = vmatpush2.xpose.msra.mxu0 0.0
        %1078 = vmatprep.mubr.f32.mxu0 0.0
        %1079 = vmatmul.mubr.f32.gmra.mxu0 %v1012
        %v1080 = vpop.f32.mrf.mxu0
        %v1081 = vadd.f32 0.0, %v1080
        %v1082 = vpop.f32.mrf.mxu0
        %1083 = vdwg.mxu0
        %1084 = vmatprep.subr.mxu0 0.0
        %1085 = vmatpush1.xpose.msra.mxu0 0.0
        %1086 = vmatprep.subr.mxu0 0.0
        %1087 = vmatpush1.xpose.msra.mxu0 0.0
        %1088 = vmatprep.subr.mxu0 0.0
        %1089 = vmatpush1.xpose.msra.mxu0 0.0
        %1090 = vmatprep.subr.mxu0 0.0
        %1091 = vmatpush1.xpose.msra.mxu0 0.0
        %1092 = vmatprep.subr.mxu0 0.0
        %1093 = vmatpush1.xpose.msra.mxu0 0.0
        %1094 = vmatprep.subr.mxu0 0.0
        %1095 = vmatpush1.xpose.msra.mxu0 0.0
        %1096 = vmatprep.subr.mxu0 0.0
        %1097 = vmatpush1.xpose.msra.mxu0 0.0
        %1098 = vmatprep.subr.mxu0 0.0
        %1099 = vmatpush1.xpose.msra.mxu0 0.0
        %1100 = vmatprep.subr.mxu0 0.0
        %1101 = vmatpush1.xpose.msra.mxu0 0.0
        %1102 = vmatprep.subr.mxu0 0.0
        %1103 = vmatpush1.xpose.msra.mxu0 0.0
        %1104 = vmatprep.subr.mxu0 0.0
        %1105 = vmatpush1.xpose.msra.mxu0 0.0
        %1106 = vmatprep.subr.mxu0 0.0
        %1107 = vmatpush1.xpose.msra.mxu0 0.0
        %1108 = vmatprep.subr.mxu0 0.0
        %1109 = vmatpush1.xpose.msra.mxu0 0.0
        %1110 = vmatprep.subr.mxu0 0.0
        %1111 = vmatpush1.xpose.msra.mxu0 0.0
        %1112 = vmatprep.subr.mxu0 0.0
        %1113 = vmatpush1.xpose.msra.mxu0 0.0
        %1114 = vmatprep.subr.mxu0 0.0
        %1115 = vmatpush1.xpose.msra.mxu0 %v206
        %1116 = vmatprep.subr.mxu0 0.0
        %1117 = vmatpush2.xpose.msra.mxu0 0.0
        %1118 = vmatprep.subr.mxu0 0.0
        %1119 = vmatpush2.xpose.msra.mxu0 0.0
        %1120 = vmatprep.subr.mxu0 0.0
        %1121 = vmatpush2.xpose.msra.mxu0 0.0
        %1122 = vmatprep.subr.mxu0 0.0
        %1123 = vmatpush2.xpose.msra.mxu0 0.0
        %1124 = vmatprep.subr.mxu0 0.0
        %1125 = vmatpush2.xpose.msra.mxu0 0.0
        %1126 = vmatprep.subr.mxu0 0.0
        %1127 = vmatpush2.xpose.msra.mxu0 0.0
        %1128 = vmatprep.subr.mxu0 0.0
        %1129 = vmatpush2.xpose.msra.mxu0 0.0
        %1130 = vmatprep.subr.mxu0 0.0
        %1131 = vmatpush2.xpose.msra.mxu0 0.0
        %1132 = vmatprep.subr.mxu0 0.0
        %1133 = vmatpush2.xpose.msra.mxu0 0.0
        %1134 = vmatprep.subr.mxu0 0.0
        %1135 = vmatpush2.xpose.msra.mxu0 0.0
        %1136 = vmatprep.subr.mxu0 0.0
        %1137 = vmatpush2.xpose.msra.mxu0 0.0
        %1138 = vmatprep.subr.mxu0 0.0
        %1139 = vmatpush2.xpose.msra.mxu0 0.0
        %1140 = vmatprep.subr.mxu0 0.0
        %1141 = vmatpush2.xpose.msra.mxu0 0.0
        %1142 = vmatprep.subr.mxu0 0.0
        %1143 = vmatpush2.xpose.msra.mxu0 0.0
        %1144 = vmatprep.subr.mxu0 0.0
        %1145 = vmatpush2.xpose.msra.mxu0 0.0
        %1146 = vmatprep.subr.mxu0 0.0
        %1147 = vmatpush2.xpose.msra.mxu0 0.0
        %1148 = vmatprep.mubr.f32.mxu0 0.0
        %1149 = vmatmul.mubr.f32.gmra.mxu0 %v1013
        %v1150 = vpop.f32.mrf.mxu0
        %v1151 = vadd.f32 0.0, %v1150
        %v1152 = vpop.f32.mrf.mxu0
        %1153 = vdwg.mxu0
        %v1154 = vmul.f32 %v1081, %v1081
        %v1155 = vmul.f32 %v1151, %v1151
        %v1156 = vsel %vm211, %v1154, 0.0
        %1157 = vadd.xlane.f32.xlu0 %v1156
        %v1158 = vpop.xlane.xlu0 %1157
        %v1159 = vsel %vm211, %v1155, 0.0
        %1160 = vadd.xlane.f32.xlu0 %v1159
        %v1161 = vpop.xlane.xlu0 %1160
        %v1162 = vrsqrt.pop %v1158
        %v1163 = vrsqrt.pop %v1161
        %v1164 = vmin.f32 %v1162, 1e+12
        %v1165 = vmin.f32 %v1163, 1e+12
        %v1166 = vmul.f32 %v1081, %v1164
        %v1167 = vmul.f32 %v1151, %v1165
        %v1168 = vmul.f32 %v1166, %v1081
        %v1169 = vmul.f32 %v1167, %v1151
        %v1170 = vsel %vm211, %v1168, 0.0
        %1171 = vadd.xlane.f32.xlu0 %v1170
        %v1172 = vpop.xlane.xlu0 %1171
        %v1173 = vsel %vm211, %v1169, 0.0
        %1174 = vadd.xlane.f32.xlu0 %v1173
        %v1175 = vpop.xlane.xlu0 %1174
        %v1176 = vadd.f32 %v1172, 1e-12
        %v1177 = vadd.f32 %v1175, 1e-12
        %v1178 = vrcp.pop %v1176
        %v1179 = vrcp.pop %v1177
        %v1180 = vlaneseq
        %v1181 = vshrl.u32 %v1180, 7
        %v1182 = vsub.s32 0, %v1181
        %v1183 = vrot.slane %v1178, %v1182
        %v1184 = vlaneseq
        %v1185 = vshrl.u32 %v1184, 7
        %v1186 = vsub.s32 0, %v1185
        %v1187 = vrot.slane %v1179, %v1186
        %v1188 = vmul.f32 %v205, %v1183
        %v1189 = vmul.f32 %v206, %v1187
        %1190 = vmatprep.subr.mxu0 0.0
        %1191 = vmatpush1.xpose.msra.mxu0 0.0
        %1192 = vmatprep.subr.mxu0 0.0
        %1193 = vmatpush1.xpose.msra.mxu0 0.0
        %1194 = vmatprep.subr.mxu0 0.0
        %1195 = vmatpush1.xpose.msra.mxu0 0.0
        %1196 = vmatprep.subr.mxu0 0.0
        %1197 = vmatpush1.xpose.msra.mxu0 0.0
        %1198 = vmatprep.subr.mxu0 0.0
        %1199 = vmatpush1.xpose.msra.mxu0 0.0
        %1200 = vmatprep.subr.mxu0 0.0
        %1201 = vmatpush1.xpose.msra.mxu0 0.0
        %1202 = vmatprep.subr.mxu0 0.0
        %1203 = vmatpush1.xpose.msra.mxu0 0.0
        %1204 = vmatprep.subr.mxu0 0.0
        %1205 = vmatpush1.xpose.msra.mxu0 0.0
        %1206 = vmatprep.subr.mxu0 0.0
        %1207 = vmatpush1.xpose.msra.mxu0 0.0
        %1208 = vmatprep.subr.mxu0 0.0
        %1209 = vmatpush1.xpose.msra.mxu0 0.0
        %1210 = vmatprep.subr.mxu0 0.0
        %1211 = vmatpush1.xpose.msra.mxu0 0.0
        %1212 = vmatprep.subr.mxu0 0.0
        %1213 = vmatpush1.xpose.msra.mxu0 0.0
        %1214 = vmatprep.subr.mxu0 0.0
        %1215 = vmatpush1.xpose.msra.mxu0 0.0
        %1216 = vmatprep.subr.mxu0 0.0
        %1217 = vmatpush1.xpose.msra.mxu0 0.0
        %1218 = vmatprep.subr.mxu0 0.0
        %1219 = vmatpush1.xpose.msra.mxu0 0.0
        %1220 = vmatprep.subr.mxu0 0.0
        %1221 = vmatpush1.xpose.msra.mxu0 %v1188
        %1222 = vmatprep.subr.mxu0 0.0
        %1223 = vmatpush2.xpose.msra.mxu0 0.0
        %1224 = vmatprep.subr.mxu0 0.0
        %1225 = vmatpush2.xpose.msra.mxu0 0.0
        %1226 = vmatprep.subr.mxu0 0.0
        %1227 = vmatpush2.xpose.msra.mxu0 0.0
        %1228 = vmatprep.subr.mxu0 0.0
        %1229 = vmatpush2.xpose.msra.mxu0 0.0
        %1230 = vmatprep.subr.mxu0 0.0
        %1231 = vmatpush2.xpose.msra.mxu0 0.0
        %1232 = vmatprep.subr.mxu0 0.0
        %1233 = vmatpush2.xpose.msra.mxu0 0.0
        %1234 = vmatprep.subr.mxu0 0.0
        %1235 = vmatpush2.xpose.msra.mxu0 0.0
        %1236 = vmatprep.subr.mxu0 0.0
        %1237 = vmatpush2.xpose.msra.mxu0 0.0
        %1238 = vmatprep.subr.mxu0 0.0
        %1239 = vmatpush2.xpose.msra.mxu0 0.0
        %1240 = vmatprep.subr.mxu0 0.0
        %1241 = vmatpush2.xpose.msra.mxu0 0.0
        %1242 = vmatprep.subr.mxu0 0.0
        %1243 = vmatpush2.xpose.msra.mxu0 0.0
        %1244 = vmatprep.subr.mxu0 0.0
        %1245 = vmatpush2.xpose.msra.mxu0 0.0
        %1246 = vmatprep.subr.mxu0 0.0
        %1247 = vmatpush2.xpose.msra.mxu0 0.0
        %1248 = vmatprep.subr.mxu0 0.0
        %1249 = vmatpush2.xpose.msra.mxu0 0.0
        %1250 = vmatprep.subr.mxu0 0.0
        %1251 = vmatpush2.xpose.msra.mxu0 0.0
        %1252 = vmatprep.subr.mxu0 0.0
        %1253 = vmatpush2.xpose.msra.mxu0 0.0
        %1254 = vmatprep.mubr.f32.mxu0 0.0
        %1255 = vmatmul.mubr.f32.gmra.mxu0 %v1188
        %v1256 = vpop.f32.mrf.mxu0
        %v1257 = vadd.f32 0.0, %v1256
        %v1258 = vpop.f32.mrf.mxu0
        %1259 = vdwg.mxu0
        %1260 = vmatprep.subr.mxu0 0.0
        %1261 = vmatpush1.xpose.msra.mxu0 0.0
        %1262 = vmatprep.subr.mxu0 0.0
        %1263 = vmatpush1.xpose.msra.mxu0 0.0
        %1264 = vmatprep.subr.mxu0 0.0
        %1265 = vmatpush1.xpose.msra.mxu0 0.0
        %1266 = vmatprep.subr.mxu0 0.0
        %1267 = vmatpush1.xpose.msra.mxu0 0.0
        %1268 = vmatprep.subr.mxu0 0.0
        %1269 = vmatpush1.xpose.msra.mxu0 0.0
        %1270 = vmatprep.subr.mxu0 0.0
        %1271 = vmatpush1.xpose.msra.mxu0 0.0
        %1272 = vmatprep.subr.mxu0 0.0
        %1273 = vmatpush1.xpose.msra.mxu0 0.0
        %1274 = vmatprep.subr.mxu0 0.0
        %1275 = vmatpush1.xpose.msra.mxu0 0.0
        %1276 = vmatprep.subr.mxu0 0.0
        %1277 = vmatpush1.xpose.msra.mxu0 0.0
        %1278 = vmatprep.subr.mxu0 0.0
        %1279 = vmatpush1.xpose.msra.mxu0 0.0
        %1280 = vmatprep.subr.mxu0 0.0
        %1281 = vmatpush1.xpose.msra.mxu0 0.0
        %1282 = vmatprep.subr.mxu0 0.0
        %1283 = vmatpush1.xpose.msra.mxu0 0.0
        %1284 = vmatprep.subr.mxu0 0.0
        %1285 = vmatpush1.xpose.msra.mxu0 0.0
        %1286 = vmatprep.subr.mxu0 0.0
        %1287 = vmatpush1.xpose.msra.mxu0 0.0
        %1288 = vmatprep.subr.mxu0 0.0
        %1289 = vmatpush1.xpose.msra.mxu0 0.0
        %1290 = vmatprep.subr.mxu0 0.0
        %1291 = vmatpush1.xpose.msra.mxu0 %v1189
        %1292 = vmatprep.subr.mxu0 0.0
        %1293 = vmatpush2.xpose.msra.mxu0 0.0
        %1294 = vmatprep.subr.mxu0 0.0
        %1295 = vmatpush2.xpose.msra.mxu0 0.0
        %1296 = vmatprep.subr.mxu0 0.0
        %1297 = vmatpush2.xpose.msra.mxu0 0.0
        %1298 = vmatprep.subr.mxu0 0.0
        %1299 = vmatpush2.xpose.msra.mxu0 0.0
        %1300 = vmatprep.subr.mxu0 0.0
        %1301 = vmatpush2.xpose.msra.mxu0 0.0
        %1302 = vmatprep.subr.mxu0 0.0
        %1303 = vmatpush2.xpose.msra.mxu0 0.0
        %1304 = vmatprep.subr.mxu0 0.0
        %1305 = vmatpush2.xpose.msra.mxu0 0.0
        %1306 = vmatprep.subr.mxu0 0.0
        %1307 = vmatpush2.xpose.msra.mxu0 0.0
        %1308 = vmatprep.subr.mxu0 0.0
        %1309 = vmatpush2.xpose.msra.mxu0 0.0
        %1310 = vmatprep.subr.mxu0 0.0
        %1311 = vmatpush2.xpose.msra.mxu0 0.0
        %1312 = vmatprep.subr.mxu0 0.0
        %1313 = vmatpush2.xpose.msra.mxu0 0.0
        %1314 = vmatprep.subr.mxu0 0.0
        %1315 = vmatpush2.xpose.msra.mxu0 0.0
        %1316 = vmatprep.subr.mxu0 0.0
        %1317 = vmatpush2.xpose.msra.mxu0 0.0
        %1318 = vmatprep.subr.mxu0 0.0
        %1319 = vmatpush2.xpose.msra.mxu0 0.0
        %1320 = vmatprep.subr.mxu0 0.0
        %1321 = vmatpush2.xpose.msra.mxu0 0.0
        %1322 = vmatprep.subr.mxu0 0.0
        %1323 = vmatpush2.xpose.msra.mxu0 0.0
        %1324 = vmatprep.mubr.f32.mxu0 0.0
        %1325 = vmatmul.mubr.f32.gmra.mxu0 %v1189
        %v1326 = vpop.f32.mrf.mxu0
        %v1327 = vadd.f32 0.0, %v1326
        %v1328 = vpop.f32.mrf.mxu0
        %1329 = vdwg.mxu0
        %v1331 = vsel %vm224, %v1257, 0
        %1333 = vmatprep.subr.mxu0 0.0
        %1334 = vmatpush1.msra.mxu0 0.0
        %1335 = vmatprep.subr.mxu0 0.0
        %1336 = vmatpush1.msra.mxu0 0.0
        %1337 = vmatprep.subr.mxu0 0.0
        %1338 = vmatpush1.msra.mxu0 0.0
        %1339 = vmatprep.subr.mxu0 0.0
        %1340 = vmatpush1.msra.mxu0 0.0
        %1341 = vmatprep.subr.mxu0 0.0
        %1342 = vmatpush1.msra.mxu0 0.0
        %1343 = vmatprep.subr.mxu0 0.0
        %1344 = vmatpush1.msra.mxu0 0.0
        %1345 = vmatprep.subr.mxu0 0.0
        %1346 = vmatpush1.msra.mxu0 0.0
        %1347 = vmatprep.subr.mxu0 0.0
        %1348 = vmatpush1.msra.mxu0 0.0
        %1349 = vmatprep.subr.mxu0 0.0
        %1350 = vmatpush1.msra.mxu0 0.0
        %1351 = vmatprep.subr.mxu0 0.0
        %1352 = vmatpush1.msra.mxu0 0.0
        %1353 = vmatprep.subr.mxu0 0.0
        %1354 = vmatpush1.msra.mxu0 0.0
        %1355 = vmatprep.subr.mxu0 0.0
        %1356 = vmatpush1.msra.mxu0 0.0
        %1357 = vmatprep.subr.mxu0 0.0
        %1358 = vmatpush1.msra.mxu0 0.0
        %1359 = vmatprep.subr.mxu0 0.0
        %1360 = vmatpush1.msra.mxu0 0.0
        %1361 = vmatprep.subr.mxu0 0.0
        %1362 = vmatpush1.msra.mxu0 0.0
        %1363 = vmatprep.subr.mxu0 0.0
        %1364 = vmatpush1.msra.mxu0 %v1188
        %1365 = vmatprep.subr.mxu0 0.0
        %1366 = vmatpush2.msra.mxu0 0.0
        %1367 = vmatprep.subr.mxu0 0.0
        %1368 = vmatpush2.msra.mxu0 0.0
        %1369 = vmatprep.subr.mxu0 0.0
        %1370 = vmatpush2.msra.mxu0 0.0
        %1371 = vmatprep.subr.mxu0 0.0
        %1372 = vmatpush2.msra.mxu0 0.0
        %1373 = vmatprep.subr.mxu0 0.0
        %1374 = vmatpush2.msra.mxu0 0.0
        %1375 = vmatprep.subr.mxu0 0.0
        %1376 = vmatpush2.msra.mxu0 0.0
        %1377 = vmatprep.subr.mxu0 0.0
        %1378 = vmatpush2.msra.mxu0 0.0
        %1379 = vmatprep.subr.mxu0 0.0
        %1380 = vmatpush2.msra.mxu0 0.0
        %1381 = vmatprep.subr.mxu0 0.0
        %1382 = vmatpush2.msra.mxu0 0.0
        %1383 = vmatprep.subr.mxu0 0.0
        %1384 = vmatpush2.msra.mxu0 0.0
        %1385 = vmatprep.subr.mxu0 0.0
        %1386 = vmatpush2.msra.mxu0 0.0
        %1387 = vmatprep.subr.mxu0 0.0
        %1388 = vmatpush2.msra.mxu0 0.0
        %1389 = vmatprep.subr.mxu0 0.0
        %1390 = vmatpush2.msra.mxu0 0.0
        %1391 = vmatprep.subr.mxu0 0.0
        %1392 = vmatpush2.msra.mxu0 0.0
        %1393 = vmatprep.subr.mxu0 0.0
        %1394 = vmatpush2.msra.mxu0 0.0
        %1395 = vmatprep.subr.mxu0 0.0
        %1396 = vmatpush2.msra.mxu0 0.0
        %1397 = vmatprep.mubr.f32.mxu0 0.0
        %1398 = vmatmul.mubr.f32.gmra.mxu0 %v1331
        %v1399 = vpop.f32.mrf.mxu0
        %v1400 = vadd.f32 0.0, %v1399
        %v1401 = vpop.f32.mrf.mxu0
        %1402 = vdwg.mxu0
        %v1404 = vsel %vm224, %v1327, 0
        %1406 = vmatprep.subr.mxu0 0.0
        %1407 = vmatpush1.msra.mxu0 0.0
        %1408 = vmatprep.subr.mxu0 0.0
        %1409 = vmatpush1.msra.mxu0 0.0
        %1410 = vmatprep.subr.mxu0 0.0
        %1411 = vmatpush1.msra.mxu0 0.0
        %1412 = vmatprep.subr.mxu0 0.0
        %1413 = vmatpush1.msra.mxu0 0.0
        %1414 = vmatprep.subr.mxu0 0.0
        %1415 = vmatpush1.msra.mxu0 0.0
        %1416 = vmatprep.subr.mxu0 0.0
        %1417 = vmatpush1.msra.mxu0 0.0
        %1418 = vmatprep.subr.mxu0 0.0
        %1419 = vmatpush1.msra.mxu0 0.0
        %1420 = vmatprep.subr.mxu0 0.0
        %1421 = vmatpush1.msra.mxu0 0.0
        %1422 = vmatprep.subr.mxu0 0.0
        %1423 = vmatpush1.msra.mxu0 0.0
        %1424 = vmatprep.subr.mxu0 0.0
        %1425 = vmatpush1.msra.mxu0 0.0
        %1426 = vmatprep.subr.mxu0 0.0
        %1427 = vmatpush1.msra.mxu0 0.0
        %1428 = vmatprep.subr.mxu0 0.0
        %1429 = vmatpush1.msra.mxu0 0.0
        %1430 = vmatprep.subr.mxu0 0.0
        %1431 = vmatpush1.msra.mxu0 0.0
        %1432 = vmatprep.subr.mxu0 0.0
        %1433 = vmatpush1.msra.mxu0 0.0
        %1434 = vmatprep.subr.mxu0 0.0
        %1435 = vmatpush1.msra.mxu0 0.0
        %1436 = vmatprep.subr.mxu0 0.0
        %1437 = vmatpush1.msra.mxu0 %v1189
        %1438 = vmatprep.subr.mxu0 0.0
        %1439 = vmatpush2.msra.mxu0 0.0
        %1440 = vmatprep.subr.mxu0 0.0
        %1441 = vmatpush2.msra.mxu0 0.0
        %1442 = vmatprep.subr.mxu0 0.0
        %1443 = vmatpush2.msra.mxu0 0.0
        %1444 = vmatprep.subr.mxu0 0.0
        %1445 = vmatpush2.msra.mxu0 0.0
        %1446 = vmatprep.subr.mxu0 0.0
        %1447 = vmatpush2.msra.mxu0 0.0
        %1448 = vmatprep.subr.mxu0 0.0
        %1449 = vmatpush2.msra.mxu0 0.0
        %1450 = vmatprep.subr.mxu0 0.0
        %1451 = vmatpush2.msra.mxu0 0.0
        %1452 = vmatprep.subr.mxu0 0.0
        %1453 = vmatpush2.msra.mxu0 0.0
        %1454 = vmatprep.subr.mxu0 0.0
        %1455 = vmatpush2.msra.mxu0 0.0
        %1456 = vmatprep.subr.mxu0 0.0
        %1457 = vmatpush2.msra.mxu0 0.0
        %1458 = vmatprep.subr.mxu0 0.0
        %1459 = vmatpush2.msra.mxu0 0.0
        %1460 = vmatprep.subr.mxu0 0.0
        %1461 = vmatpush2.msra.mxu0 0.0
        %1462 = vmatprep.subr.mxu0 0.0
        %1463 = vmatpush2.msra.mxu0 0.0
        %1464 = vmatprep.subr.mxu0 0.0
        %1465 = vmatpush2.msra.mxu0 0.0
        %1466 = vmatprep.subr.mxu0 0.0
        %1467 = vmatpush2.msra.mxu0 0.0
        %1468 = vmatprep.subr.mxu0 0.0
        %1469 = vmatpush2.msra.mxu0 0.0
        %1470 = vmatprep.mubr.f32.mxu0 0.0
        %1471 = vmatmul.mubr.f32.gmra.mxu0 %v1404
        %v1472 = vpop.f32.mrf.mxu0
        %v1473 = vadd.f32 0.0, %v1472
        %v1474 = vpop.f32.mrf.mxu0
        %1475 = vdwg.mxu0
        %v1476 = vmul.f32 %v1188, 1.5
        %v1477 = vmul.f32 %v1189, 1.5
        %v1478 = vmul.f32 %v1400, 0.5
        %v1479 = vmul.f32 %v1473, 0.5
        %v1480 = vsub.f32 %v1476, %v1478
        %v1481 = vsub.f32 %v1477, %v1479
        %1482 = vmatprep.subr.mxu0 0.0
        %1483 = vmatpush1.xpose.msra.mxu0 0.0
        %1484 = vmatprep.subr.mxu0 0.0
        %1485 = vmatpush1.xpose.msra.mxu0 0.0
        %1486 = vmatprep.subr.mxu0 0.0
        %1487 = vmatpush1.xpose.msra.mxu0 0.0
        %1488 = vmatprep.subr.mxu0 0.0
        %1489 = vmatpush1.xpose.msra.mxu0 0.0
        %1490 = vmatprep.subr.mxu0 0.0
        %1491 = vmatpush1.xpose.msra.mxu0 0.0
        %1492 = vmatprep.subr.mxu0 0.0
        %1493 = vmatpush1.xpose.msra.mxu0 0.0
        %1494 = vmatprep.subr.mxu0 0.0
        %1495 = vmatpush1.xpose.msra.mxu0 0.0
        %1496 = vmatprep.subr.mxu0 0.0
        %1497 = vmatpush1.xpose.msra.mxu0 0.0
        %1498 = vmatprep.subr.mxu0 0.0
        %1499 = vmatpush1.xpose.msra.mxu0 0.0
        %1500 = vmatprep.subr.mxu0 0.0
        %1501 = vmatpush1.xpose.msra.mxu0 0.0
        %1502 = vmatprep.subr.mxu0 0.0
        %1503 = vmatpush1.xpose.msra.mxu0 0.0
        %1504 = vmatprep.subr.mxu0 0.0
        %1505 = vmatpush1.xpose.msra.mxu0 0.0
        %1506 = vmatprep.subr.mxu0 0.0
        %1507 = vmatpush1.xpose.msra.mxu0 0.0
        %1508 = vmatprep.subr.mxu0 0.0
        %1509 = vmatpush1.xpose.msra.mxu0 0.0
        %1510 = vmatprep.subr.mxu0 0.0
        %1511 = vmatpush1.xpose.msra.mxu0 0.0
        %1512 = vmatprep.subr.mxu0 0.0
        %1513 = vmatpush1.xpose.msra.mxu0 %v1480
        %1514 = vmatprep.subr.mxu0 0.0
        %1515 = vmatpush2.xpose.msra.mxu0 0.0
        %1516 = vmatprep.subr.mxu0 0.0
        %1517 = vmatpush2.xpose.msra.mxu0 0.0
        %1518 = vmatprep.subr.mxu0 0.0
        %1519 = vmatpush2.xpose.msra.mxu0 0.0
        %1520 = vmatprep.subr.mxu0 0.0
        %1521 = vmatpush2.xpose.msra.mxu0 0.0
        %1522 = vmatprep.subr.mxu0 0.0
        %1523 = vmatpush2.xpose.msra.mxu0 0.0
        %1524 = vmatprep.subr.mxu0 0.0
        %1525 = vmatpush2.xpose.msra.mxu0 0.0
        %1526 = vmatprep.subr.mxu0 0.0
        %1527 = vmatpush2.xpose.msra.mxu0 0.0
        %1528 = vmatprep.subr.mxu0 0.0
        %1529 = vmatpush2.xpose.msra.mxu0 0.0
        %1530 = vmatprep.subr.mxu0 0.0
        %1531 = vmatpush2.xpose.msra.mxu0 0.0
        %1532 = vmatprep.subr.mxu0 0.0
        %1533 = vmatpush2.xpose.msra.mxu0 0.0
        %1534 = vmatprep.subr.mxu0 0.0
        %1535 = vmatpush2.xpose.msra.mxu0 0.0
        %1536 = vmatprep.subr.mxu0 0.0
        %1537 = vmatpush2.xpose.msra.mxu0 0.0
        %1538 = vmatprep.subr.mxu0 0.0
        %1539 = vmatpush2.xpose.msra.mxu0 0.0
        %1540 = vmatprep.subr.mxu0 0.0
        %1541 = vmatpush2.xpose.msra.mxu0 0.0
        %1542 = vmatprep.subr.mxu0 0.0
        %1543 = vmatpush2.xpose.msra.mxu0 0.0
        %1544 = vmatprep.subr.mxu0 0.0
        %1545 = vmatpush2.xpose.msra.mxu0 0.0
        %1546 = vmatprep.mubr.f32.mxu0 0.0
        %1547 = vmatmul.mubr.f32.gmra.mxu0 %v1480
        %v1548 = vpop.f32.mrf.mxu0
        %v1549 = vadd.f32 0.0, %v1548
        %v1550 = vpop.f32.mrf.mxu0
        %1551 = vdwg.mxu0
        %1552 = vmatprep.subr.mxu0 0.0
        %1553 = vmatpush1.xpose.msra.mxu0 0.0
        %1554 = vmatprep.subr.mxu0 0.0
        %1555 = vmatpush1.xpose.msra.mxu0 0.0
        %1556 = vmatprep.subr.mxu0 0.0
        %1557 = vmatpush1.xpose.msra.mxu0 0.0
        %1558 = vmatprep.subr.mxu0 0.0
        %1559 = vmatpush1.xpose.msra.mxu0 0.0
        %1560 = vmatprep.subr.mxu0 0.0
        %1561 = vmatpush1.xpose.msra.mxu0 0.0
        %1562 = vmatprep.subr.mxu0 0.0
        %1563 = vmatpush1.xpose.msra.mxu0 0.0
        %1564 = vmatprep.subr.mxu0 0.0
        %1565 = vmatpush1.xpose.msra.mxu0 0.0
        %1566 = vmatprep.subr.mxu0 0.0
        %1567 = vmatpush1.xpose.msra.mxu0 0.0
        %1568 = vmatprep.subr.mxu0 0.0
        %1569 = vmatpush1.xpose.msra.mxu0 0.0
        %1570 = vmatprep.subr.mxu0 0.0
        %1571 = vmatpush1.xpose.msra.mxu0 0.0
        %1572 = vmatprep.subr.mxu0 0.0
        %1573 = vmatpush1.xpose.msra.mxu0 0.0
        %1574 = vmatprep.subr.mxu0 0.0
        %1575 = vmatpush1.xpose.msra.mxu0 0.0
        %1576 = vmatprep.subr.mxu0 0.0
        %1577 = vmatpush1.xpose.msra.mxu0 0.0
        %1578 = vmatprep.subr.mxu0 0.0
        %1579 = vmatpush1.xpose.msra.mxu0 0.0
        %1580 = vmatprep.subr.mxu0 0.0
        %1581 = vmatpush1.xpose.msra.mxu0 0.0
        %1582 = vmatprep.subr.mxu0 0.0
        %1583 = vmatpush1.xpose.msra.mxu0 %v1481
        %1584 = vmatprep.subr.mxu0 0.0
        %1585 = vmatpush2.xpose.msra.mxu0 0.0
        %1586 = vmatprep.subr.mxu0 0.0
        %1587 = vmatpush2.xpose.msra.mxu0 0.0
        %1588 = vmatprep.subr.mxu0 0.0
        %1589 = vmatpush2.xpose.msra.mxu0 0.0
        %1590 = vmatprep.subr.mxu0 0.0
        %1591 = vmatpush2.xpose.msra.mxu0 0.0
        %1592 = vmatprep.subr.mxu0 0.0
        %1593 = vmatpush2.xpose.msra.mxu0 0.0
        %1594 = vmatprep.subr.mxu0 0.0
        %1595 = vmatpush2.xpose.msra.mxu0 0.0
        %1596 = vmatprep.subr.mxu0 0.0
        %1597 = vmatpush2.xpose.msra.mxu0 0.0
        %1598 = vmatprep.subr.mxu0 0.0
        %1599 = vmatpush2.xpose.msra.mxu0 0.0
        %1600 = vmatprep.subr.mxu0 0.0
        %1601 = vmatpush2.xpose.msra.mxu0 0.0
        %1602 = vmatprep.subr.mxu0 0.0
        %1603 = vmatpush2.xpose.msra.mxu0 0.0
        %1604 = vmatprep.subr.mxu0 0.0
        %1605 = vmatpush2.xpose.msra.mxu0 0.0
        %1606 = vmatprep.subr.mxu0 0.0
        %1607 = vmatpush2.xpose.msra.mxu0 0.0
        %1608 = vmatprep.subr.mxu0 0.0
        %1609 = vmatpush2.xpose.msra.mxu0 0.0
        %1610 = vmatprep.subr.mxu0 0.0
        %1611 = vmatpush2.xpose.msra.mxu0 0.0
        %1612 = vmatprep.subr.mxu0 0.0
        %1613 = vmatpush2.xpose.msra.mxu0 0.0
        %1614 = vmatprep.subr.mxu0 0.0
        %1615 = vmatpush2.xpose.msra.mxu0 0.0
        %1616 = vmatprep.mubr.f32.mxu0 0.0
        %1617 = vmatmul.mubr.f32.gmra.mxu0 %v1481
        %v1618 = vpop.f32.mrf.mxu0
        %v1619 = vadd.f32 0.0, %v1618
        %v1620 = vpop.f32.mrf.mxu0
        %1621 = vdwg.mxu0
        %v1623 = vsel %vm224, %v1549, 0
        %1625 = vmatprep.subr.mxu0 0.0
        %1626 = vmatpush1.msra.mxu0 0.0
        %1627 = vmatprep.subr.mxu0 0.0
        %1628 = vmatpush1.msra.mxu0 0.0
        %1629 = vmatprep.subr.mxu0 0.0
        %1630 = vmatpush1.msra.mxu0 0.0
        %1631 = vmatprep.subr.mxu0 0.0
        %1632 = vmatpush1.msra.mxu0 0.0
        %1633 = vmatprep.subr.mxu0 0.0
        %1634 = vmatpush1.msra.mxu0 0.0
        %1635 = vmatprep.subr.mxu0 0.0
        %1636 = vmatpush1.msra.mxu0 0.0
        %1637 = vmatprep.subr.mxu0 0.0
        %1638 = vmatpush1.msra.mxu0 0.0
        %1639 = vmatprep.subr.mxu0 0.0
        %1640 = vmatpush1.msra.mxu0 0.0
        %1641 = vmatprep.subr.mxu0 0.0
        %1642 = vmatpush1.msra.mxu0 0.0
        %1643 = vmatprep.subr.mxu0 0.0
        %1644 = vmatpush1.msra.mxu0 0.0
        %1645 = vmatprep.subr.mxu0 0.0
        %1646 = vmatpush1.msra.mxu0 0.0
        %1647 = vmatprep.subr.mxu0 0.0
        %1648 = vmatpush1.msra.mxu0 0.0
        %1649 = vmatprep.subr.mxu0 0.0
        %1650 = vmatpush1.msra.mxu0 0.0
        %1651 = vmatprep.subr.mxu0 0.0
        %1652 = vmatpush1.msra.mxu0 0.0
        %1653 = vmatprep.subr.mxu0 0.0
        %1654 = vmatpush1.msra.mxu0 0.0
        %1655 = vmatprep.subr.mxu0 0.0
        %1656 = vmatpush1.msra.mxu0 %v1480
        %1657 = vmatprep.subr.mxu0 0.0
        %1658 = vmatpush2.msra.mxu0 0.0
        %1659 = vmatprep.subr.mxu0 0.0
        %1660 = vmatpush2.msra.mxu0 0.0
        %1661 = vmatprep.subr.mxu0 0.0
        %1662 = vmatpush2.msra.mxu0 0.0
        %1663 = vmatprep.subr.mxu0 0.0
        %1664 = vmatpush2.msra.mxu0 0.0
        %1665 = vmatprep.subr.mxu0 0.0
        %1666 = vmatpush2.msra.mxu0 0.0
        %1667 = vmatprep.subr.mxu0 0.0
        %1668 = vmatpush2.msra.mxu0 0.0
        %1669 = vmatprep.subr.mxu0 0.0
        %1670 = vmatpush2.msra.mxu0 0.0
        %1671 = vmatprep.subr.mxu0 0.0
        %1672 = vmatpush2.msra.mxu0 0.0
        %1673 = vmatprep.subr.mxu0 0.0
        %1674 = vmatpush2.msra.mxu0 0.0
        %1675 = vmatprep.subr.mxu0 0.0
        %1676 = vmatpush2.msra.mxu0 0.0
        %1677 = vmatprep.subr.mxu0 0.0
        %1678 = vmatpush2.msra.mxu0 0.0
        %1679 = vmatprep.subr.mxu0 0.0
        %1680 = vmatpush2.msra.mxu0 0.0
        %1681 = vmatprep.subr.mxu0 0.0
        %1682 = vmatpush2.msra.mxu0 0.0
        %1683 = vmatprep.subr.mxu0 0.0
        %1684 = vmatpush2.msra.mxu0 0.0
        %1685 = vmatprep.subr.mxu0 0.0
        %1686 = vmatpush2.msra.mxu0 0.0
        %1687 = vmatprep.subr.mxu0 0.0
        %1688 = vmatpush2.msra.mxu0 0.0
        %1689 = vmatprep.mubr.f32.mxu0 0.0
        %1690 = vmatmul.mubr.f32.gmra.mxu0 %v1623
        %v1691 = vpop.f32.mrf.mxu0
        %v1692 = vadd.f32 0.0, %v1691
        %v1693 = vpop.f32.mrf.mxu0
        %1694 = vdwg.mxu0
        %v1696 = vsel %vm224, %v1619, 0
        %1698 = vmatprep.subr.mxu0 0.0
        %1699 = vmatpush1.msra.mxu0 0.0
        %1700 = vmatprep.subr.mxu0 0.0
        %1701 = vmatpush1.msra.mxu0 0.0
        %1702 = vmatprep.subr.mxu0 0.0
        %1703 = vmatpush1.msra.mxu0 0.0
        %1704 = vmatprep.subr.mxu0 0.0
        %1705 = vmatpush1.msra.mxu0 0.0
        %1706 = vmatprep.subr.mxu0 0.0
        %1707 = vmatpush1.msra.mxu0 0.0
        %1708 = vmatprep.subr.mxu0 0.0
        %1709 = vmatpush1.msra.mxu0 0.0
        %1710 = vmatprep.subr.mxu0 0.0
        %1711 = vmatpush1.msra.mxu0 0.0
        %1712 = vmatprep.subr.mxu0 0.0
        %1713 = vmatpush1.msra.mxu0 0.0
        %1714 = vmatprep.subr.mxu0 0.0
        %1715 = vmatpush1.msra.mxu0 0.0
        %1716 = vmatprep.subr.mxu0 0.0
        %1717 = vmatpush1.msra.mxu0 0.0
        %1718 = vmatprep.subr.mxu0 0.0
        %1719 = vmatpush1.msra.mxu0 0.0
        %1720 = vmatprep.subr.mxu0 0.0
        %1721 = vmatpush1.msra.mxu0 0.0
        %1722 = vmatprep.subr.mxu0 0.0
        %1723 = vmatpush1.msra.mxu0 0.0
        %1724 = vmatprep.subr.mxu0 0.0
        %1725 = vmatpush1.msra.mxu0 0.0
        %1726 = vmatprep.subr.mxu0 0.0
        %1727 = vmatpush1.msra.mxu0 0.0
        %1728 = vmatprep.subr.mxu0 0.0
        %1729 = vmatpush1.msra.mxu0 %v1481
        %1730 = vmatprep.subr.mxu0 0.0
        %1731 = vmatpush2.msra.mxu0 0.0
        %1732 = vmatprep.subr.mxu0 0.0
        %1733 = vmatpush2.msra.mxu0 0.0
        %1734 = vmatprep.subr.mxu0 0.0
        %1735 = vmatpush2.msra.mxu0 0.0
        %1736 = vmatprep.subr.mxu0 0.0
        %1737 = vmatpush2.msra.mxu0 0.0
        %1738 = vmatprep.subr.mxu0 0.0
        %1739 = vmatpush2.msra.mxu0 0.0
        %1740 = vmatprep.subr.mxu0 0.0
        %1741 = vmatpush2.msra.mxu0 0.0
        %1742 = vmatprep.subr.mxu0 0.0
        %1743 = vmatpush2.msra.mxu0 0.0
        %1744 = vmatprep.subr.mxu0 0.0
        %1745 = vmatpush2.msra.mxu0 0.0
        %1746 = vmatprep.subr.mxu0 0.0
        %1747 = vmatpush2.msra.mxu0 0.0
        %1748 = vmatprep.subr.mxu0 0.0
        %1749 = vmatpush2.msra.mxu0 0.0
        %1750 = vmatprep.subr.mxu0 0.0
        %1751 = vmatpush2.msra.mxu0 0.0
        %1752 = vmatprep.subr.mxu0 0.0
        %1753 = vmatpush2.msra.mxu0 0.0
        %1754 = vmatprep.subr.mxu0 0.0
        %1755 = vmatpush2.msra.mxu0 0.0
        %1756 = vmatprep.subr.mxu0 0.0
        %1757 = vmatpush2.msra.mxu0 0.0
        %1758 = vmatprep.subr.mxu0 0.0
        %1759 = vmatpush2.msra.mxu0 0.0
        %1760 = vmatprep.subr.mxu0 0.0
        %1761 = vmatpush2.msra.mxu0 0.0
        %1762 = vmatprep.mubr.f32.mxu0 0.0
        %1763 = vmatmul.mubr.f32.gmra.mxu0 %v1696
        %v1764 = vpop.f32.mrf.mxu0
        %v1765 = vadd.f32 0.0, %v1764
        %v1766 = vpop.f32.mrf.mxu0
        %1767 = vdwg.mxu0
        %v1768 = vmul.f32 %v1480, 1.5
        %v1769 = vmul.f32 %v1481, 1.5
        %v1770 = vmul.f32 %v1692, 0.5
        %v1771 = vmul.f32 %v1765, 0.5
        %v1772 = vsub.f32 %v1768, %v1770
        %v1773 = vsub.f32 %v1769, %v1771
        %1774 = vmatprep.subr.mxu0 0.0
        %1775 = vmatpush1.xpose.msra.mxu0 0.0
        %1776 = vmatprep.subr.mxu0 0.0
        %1777 = vmatpush1.xpose.msra.mxu0 0.0
        %1778 = vmatprep.subr.mxu0 0.0
        %1779 = vmatpush1.xpose.msra.mxu0 0.0
        %1780 = vmatprep.subr.mxu0 0.0
        %1781 = vmatpush1.xpose.msra.mxu0 0.0
        %1782 = vmatprep.subr.mxu0 0.0
        %1783 = vmatpush1.xpose.msra.mxu0 0.0
        %1784 = vmatprep.subr.mxu0 0.0
        %1785 = vmatpush1.xpose.msra.mxu0 0.0
        %1786 = vmatprep.subr.mxu0 0.0
        %1787 = vmatpush1.xpose.msra.mxu0 0.0
        %1788 = vmatprep.subr.mxu0 0.0
        %1789 = vmatpush1.xpose.msra.mxu0 0.0
        %1790 = vmatprep.subr.mxu0 0.0
        %1791 = vmatpush1.xpose.msra.mxu0 0.0
        %1792 = vmatprep.subr.mxu0 0.0
        %1793 = vmatpush1.xpose.msra.mxu0 0.0
        %1794 = vmatprep.subr.mxu0 0.0
        %1795 = vmatpush1.xpose.msra.mxu0 0.0
        %1796 = vmatprep.subr.mxu0 0.0
        %1797 = vmatpush1.xpose.msra.mxu0 0.0
        %1798 = vmatprep.subr.mxu0 0.0
        %1799 = vmatpush1.xpose.msra.mxu0 0.0
        %1800 = vmatprep.subr.mxu0 0.0
        %1801 = vmatpush1.xpose.msra.mxu0 0.0
        %1802 = vmatprep.subr.mxu0 0.0
        %1803 = vmatpush1.xpose.msra.mxu0 0.0
        %1804 = vmatprep.subr.mxu0 0.0
        %1805 = vmatpush1.xpose.msra.mxu0 %v1772
        %1806 = vmatprep.subr.mxu0 0.0
        %1807 = vmatpush2.xpose.msra.mxu0 0.0
        %1808 = vmatprep.subr.mxu0 0.0
        %1809 = vmatpush2.xpose.msra.mxu0 0.0
        %1810 = vmatprep.subr.mxu0 0.0
        %1811 = vmatpush2.xpose.msra.mxu0 0.0
        %1812 = vmatprep.subr.mxu0 0.0
        %1813 = vmatpush2.xpose.msra.mxu0 0.0
        %1814 = vmatprep.subr.mxu0 0.0
        %1815 = vmatpush2.xpose.msra.mxu0 0.0
        %1816 = vmatprep.subr.mxu0 0.0
        %1817 = vmatpush2.xpose.msra.mxu0 0.0
        %1818 = vmatprep.subr.mxu0 0.0
        %1819 = vmatpush2.xpose.msra.mxu0 0.0
        %1820 = vmatprep.subr.mxu0 0.0
        %1821 = vmatpush2.xpose.msra.mxu0 0.0
        %1822 = vmatprep.subr.mxu0 0.0
        %1823 = vmatpush2.xpose.msra.mxu0 0.0
        %1824 = vmatprep.subr.mxu0 0.0
        %1825 = vmatpush2.xpose.msra.mxu0 0.0
        %1826 = vmatprep.subr.mxu0 0.0
        %1827 = vmatpush2.xpose.msra.mxu0 0.0
        %1828 = vmatprep.subr.mxu0 0.0
        %1829 = vmatpush2.xpose.msra.mxu0 0.0
        %1830 = vmatprep.subr.mxu0 0.0
        %1831 = vmatpush2.xpose.msra.mxu0 0.0
        %1832 = vmatprep.subr.mxu0 0.0
        %1833 = vmatpush2.xpose.msra.mxu0 0.0
        %1834 = vmatprep.subr.mxu0 0.0
        %1835 = vmatpush2.xpose.msra.mxu0 0.0
        %1836 = vmatprep.subr.mxu0 0.0
        %1837 = vmatpush2.xpose.msra.mxu0 0.0
        %1838 = vmatprep.mubr.f32.mxu0 0.0
        %1839 = vmatmul.mubr.f32.gmra.mxu0 %v1772
        %v1840 = vpop.f32.mrf.mxu0
        %v1841 = vadd.f32 0.0, %v1840
        %v1842 = vpop.f32.mrf.mxu0
        %1843 = vdwg.mxu0
        %1844 = vmatprep.subr.mxu0 0.0
        %1845 = vmatpush1.xpose.msra.mxu0 0.0
        %1846 = vmatprep.subr.mxu0 0.0
        %1847 = vmatpush1.xpose.msra.mxu0 0.0
        %1848 = vmatprep.subr.mxu0 0.0
        %1849 = vmatpush1.xpose.msra.mxu0 0.0
        %1850 = vmatprep.subr.mxu0 0.0
        %1851 = vmatpush1.xpose.msra.mxu0 0.0
        %1852 = vmatprep.subr.mxu0 0.0
        %1853 = vmatpush1.xpose.msra.mxu0 0.0
        %1854 = vmatprep.subr.mxu0 0.0
        %1855 = vmatpush1.xpose.msra.mxu0 0.0
        %1856 = vmatprep.subr.mxu0 0.0
        %1857 = vmatpush1.xpose.msra.mxu0 0.0
        %1858 = vmatprep.subr.mxu0 0.0
        %1859 = vmatpush1.xpose.msra.mxu0 0.0
        %1860 = vmatprep.subr.mxu0 0.0
        %1861 = vmatpush1.xpose.msra.mxu0 0.0
        %1862 = vmatprep.subr.mxu0 0.0
        %1863 = vmatpush1.xpose.msra.mxu0 0.0
        %1864 = vmatprep.subr.mxu0 0.0
        %1865 = vmatpush1.xpose.msra.mxu0 0.0
        %1866 = vmatprep.subr.mxu0 0.0
        %1867 = vmatpush1.xpose.msra.mxu0 0.0
        %1868 = vmatprep.subr.mxu0 0.0
        %1869 = vmatpush1.xpose.msra.mxu0 0.0
        %1870 = vmatprep.subr.mxu0 0.0
        %1871 = vmatpush1.xpose.msra.mxu0 0.0
        %1872 = vmatprep.subr.mxu0 0.0
        %1873 = vmatpush1.xpose.msra.mxu0 0.0
        %1874 = vmatprep.subr.mxu0 0.0
        %1875 = vmatpush1.xpose.msra.mxu0 %v1773
        %1876 = vmatprep.subr.mxu0 0.0
        %1877 = vmatpush2.xpose.msra.mxu0 0.0
        %1878 = vmatprep.subr.mxu0 0.0
        %1879 = vmatpush2.xpose.msra.mxu0 0.0
        %1880 = vmatprep.subr.mxu0 0.0
        %1881 = vmatpush2.xpose.msra.mxu0 0.0
        %1882 = vmatprep.subr.mxu0 0.0
        %1883 = vmatpush2.xpose.msra.mxu0 0.0
        %1884 = vmatprep.subr.mxu0 0.0
        %1885 = vmatpush2.xpose.msra.mxu0 0.0
        %1886 = vmatprep.subr.mxu0 0.0
        %1887 = vmatpush2.xpose.msra.mxu0 0.0
        %1888 = vmatprep.subr.mxu0 0.0
        %1889 = vmatpush2.xpose.msra.mxu0 0.0
        %1890 = vmatprep.subr.mxu0 0.0
        %1891 = vmatpush2.xpose.msra.mxu0 0.0
        %1892 = vmatprep.subr.mxu0 0.0
        %1893 = vmatpush2.xpose.msra.mxu0 0.0
        %1894 = vmatprep.subr.mxu0 0.0
        %1895 = vmatpush2.xpose.msra.mxu0 0.0
        %1896 = vmatprep.subr.mxu0 0.0
        %1897 = vmatpush2.xpose.msra.mxu0 0.0
        %1898 = vmatprep.subr.mxu0 0.0
        %1899 = vmatpush2.xpose.msra.mxu0 0.0
        %1900 = vmatprep.subr.mxu0 0.0
        %1901 = vmatpush2.xpose.msra.mxu0 0.0
        %1902 = vmatprep.subr.mxu0 0.0
        %1903 = vmatpush2.xpose.msra.mxu0 0.0
        %1904 = vmatprep.subr.mxu0 0.0
        %1905 = vmatpush2.xpose.msra.mxu0 0.0
        %1906 = vmatprep.subr.mxu0 0.0
        %1907 = vmatpush2.xpose.msra.mxu0 0.0
        %1908 = vmatprep.mubr.f32.mxu0 0.0
        %1909 = vmatmul.mubr.f32.gmra.mxu0 %v1773
        %v1910 = vpop.f32.mrf.mxu0
        %v1911 = vadd.f32 0.0, %v1910
        %v1912 = vpop.f32.mrf.mxu0
        %1913 = vdwg.mxu0
        %v1915 = vsel %vm224, %v1841, 0
        %1917 = vmatprep.subr.mxu0 0.0
        %1918 = vmatpush1.msra.mxu0 0.0
        %1919 = vmatprep.subr.mxu0 0.0
        %1920 = vmatpush1.msra.mxu0 0.0
        %1921 = vmatprep.subr.mxu0 0.0
        %1922 = vmatpush1.msra.mxu0 0.0
        %1923 = vmatprep.subr.mxu0 0.0
        %1924 = vmatpush1.msra.mxu0 0.0
        %1925 = vmatprep.subr.mxu0 0.0
        %1926 = vmatpush1.msra.mxu0 0.0
        %1927 = vmatprep.subr.mxu0 0.0
        %1928 = vmatpush1.msra.mxu0 0.0
        %1929 = vmatprep.subr.mxu0 0.0
        %1930 = vmatpush1.msra.mxu0 0.0
        %1931 = vmatprep.subr.mxu0 0.0
        %1932 = vmatpush1.msra.mxu0 0.0
        %1933 = vmatprep.subr.mxu0 0.0
        %1934 = vmatpush1.msra.mxu0 0.0
        %1935 = vmatprep.subr.mxu0 0.0
        %1936 = vmatpush1.msra.mxu0 0.0
        %1937 = vmatprep.subr.mxu0 0.0
        %1938 = vmatpush1.msra.mxu0 0.0
        %1939 = vmatprep.subr.mxu0 0.0
        %1940 = vmatpush1.msra.mxu0 0.0
        %1941 = vmatprep.subr.mxu0 0.0
        %1942 = vmatpush1.msra.mxu0 0.0
        %1943 = vmatprep.subr.mxu0 0.0
        %1944 = vmatpush1.msra.mxu0 0.0
        %1945 = vmatprep.subr.mxu0 0.0
        %1946 = vmatpush1.msra.mxu0 0.0
        %1947 = vmatprep.subr.mxu0 0.0
        %1948 = vmatpush1.msra.mxu0 %v1772
        %1949 = vmatprep.subr.mxu0 0.0
        %1950 = vmatpush2.msra.mxu0 0.0
        %1951 = vmatprep.subr.mxu0 0.0
        %1952 = vmatpush2.msra.mxu0 0.0
        %1953 = vmatprep.subr.mxu0 0.0
        %1954 = vmatpush2.msra.mxu0 0.0
        %1955 = vmatprep.subr.mxu0 0.0
        %1956 = vmatpush2.msra.mxu0 0.0
        %1957 = vmatprep.subr.mxu0 0.0
        %1958 = vmatpush2.msra.mxu0 0.0
        %1959 = vmatprep.subr.mxu0 0.0
        %1960 = vmatpush2.msra.mxu0 0.0
        %1961 = vmatprep.subr.mxu0 0.0
        %1962 = vmatpush2.msra.mxu0 0.0
        %1963 = vmatprep.subr.mxu0 0.0
        %1964 = vmatpush2.msra.mxu0 0.0
        %1965 = vmatprep.subr.mxu0 0.0
        %1966 = vmatpush2.msra.mxu0 0.0
        %1967 = vmatprep.subr.mxu0 0.0
        %1968 = vmatpush2.msra.mxu0 0.0
        %1969 = vmatprep.subr.mxu0 0.0
        %1970 = vmatpush2.msra.mxu0 0.0
        %1971 = vmatprep.subr.mxu0 0.0
        %1972 = vmatpush2.msra.mxu0 0.0
        %1973 = vmatprep.subr.mxu0 0.0
        %1974 = vmatpush2.msra.mxu0 0.0
        %1975 = vmatprep.subr.mxu0 0.0
        %1976 = vmatpush2.msra.mxu0 0.0
        %1977 = vmatprep.subr.mxu0 0.0
        %1978 = vmatpush2.msra.mxu0 0.0
        %1979 = vmatprep.subr.mxu0 0.0
        %1980 = vmatpush2.msra.mxu0 0.0
        %1981 = vmatprep.mubr.f32.mxu0 0.0
        %1982 = vmatmul.mubr.f32.gmra.mxu0 %v1915
        %v1983 = vpop.f32.mrf.mxu0
        %v1984 = vadd.f32 0.0, %v1983
        %v1985 = vpop.f32.mrf.mxu0
        %1986 = vdwg.mxu0
        %v1988 = vsel %vm224, %v1911, 0
        %1990 = vmatprep.subr.mxu0 0.0
        %1991 = vmatpush1.msra.mxu0 0.0
        %1992 = vmatprep.subr.mxu0 0.0
        %1993 = vmatpush1.msra.mxu0 0.0
        %1994 = vmatprep.subr.mxu0 0.0
        %1995 = vmatpush1.msra.mxu0 0.0
        %1996 = vmatprep.subr.mxu0 0.0
        %1997 = vmatpush1.msra.mxu0 0.0
        %1998 = vmatprep.subr.mxu0 0.0
        %1999 = vmatpush1.msra.mxu0 0.0
        %2000 = vmatprep.subr.mxu0 0.0
        %2001 = vmatpush1.msra.mxu0 0.0
        %2002 = vmatprep.subr.mxu0 0.0
        %2003 = vmatpush1.msra.mxu0 0.0
        %2004 = vmatprep.subr.mxu0 0.0
        %2005 = vmatpush1.msra.mxu0 0.0
        %2006 = vmatprep.subr.mxu0 0.0
        %2007 = vmatpush1.msra.mxu0 0.0
        %2008 = vmatprep.subr.mxu0 0.0
        %2009 = vmatpush1.msra.mxu0 0.0
        %2010 = vmatprep.subr.mxu0 0.0
        %2011 = vmatpush1.msra.mxu0 0.0
        %2012 = vmatprep.subr.mxu0 0.0
        %2013 = vmatpush1.msra.mxu0 0.0
        %2014 = vmatprep.subr.mxu0 0.0
        %2015 = vmatpush1.msra.mxu0 0.0
        %2016 = vmatprep.subr.mxu0 0.0
        %2017 = vmatpush1.msra.mxu0 0.0
        %2018 = vmatprep.subr.mxu0 0.0
        %2019 = vmatpush1.msra.mxu0 0.0
        %2020 = vmatprep.subr.mxu0 0.0
        %2021 = vmatpush1.msra.mxu0 %v1773
        %2022 = vmatprep.subr.mxu0 0.0
        %2023 = vmatpush2.msra.mxu0 0.0
        %2024 = vmatprep.subr.mxu0 0.0
        %2025 = vmatpush2.msra.mxu0 0.0
        %2026 = vmatprep.subr.mxu0 0.0
        %2027 = vmatpush2.msra.mxu0 0.0
        %2028 = vmatprep.subr.mxu0 0.0
        %2029 = vmatpush2.msra.mxu0 0.0
        %2030 = vmatprep.subr.mxu0 0.0
        %2031 = vmatpush2.msra.mxu0 0.0
        %2032 = vmatprep.subr.mxu0 0.0
        %2033 = vmatpush2.msra.mxu0 0.0
        %2034 = vmatprep.subr.mxu0 0.0
        %2035 = vmatpush2.msra.mxu0 0.0
        %2036 = vmatprep.subr.mxu0 0.0
        %2037 = vmatpush2.msra.mxu0 0.0
        %2038 = vmatprep.subr.mxu0 0.0
        %2039 = vmatpush2.msra.mxu0 0.0
        %2040 = vmatprep.subr.mxu0 0.0
        %2041 = vmatpush2.msra.mxu0 0.0
        %2042 = vmatprep.subr.mxu0 0.0
        %2043 = vmatpush2.msra.mxu0 0.0
        %2044 = vmatprep.subr.mxu0 0.0
        %2045 = vmatpush2.msra.mxu0 0.0
        %2046 = vmatprep.subr.mxu0 0.0
        %2047 = vmatpush2.msra.mxu0 0.0
        %2048 = vmatprep.subr.mxu0 0.0
        %2049 = vmatpush2.msra.mxu0 0.0
        %2050 = vmatprep.subr.mxu0 0.0
        %2051 = vmatpush2.msra.mxu0 0.0
        %2052 = vmatprep.subr.mxu0 0.0
        %2053 = vmatpush2.msra.mxu0 0.0
        %2054 = vmatprep.mubr.f32.mxu0 0.0
        %2055 = vmatmul.mubr.f32.gmra.mxu0 %v1988
        %v2056 = vpop.f32.mrf.mxu0
        %v2057 = vadd.f32 0.0, %v2056
        %v2058 = vpop.f32.mrf.mxu0
        %2059 = vdwg.mxu0
        %v2060 = vmul.f32 %v1772, 1.5
        %v2061 = vmul.f32 %v1773, 1.5
        %v2062 = vmul.f32 %v1984, 0.5
        %v2063 = vmul.f32 %v2057, 0.5
        %v2064 = vsub.f32 %v2060, %v2062
        %v2065 = vsub.f32 %v2061, %v2063
        %2066 = vmatprep.subr.mxu0 0.0
        %2067 = vmatpush1.xpose.msra.mxu0 0.0
        %2068 = vmatprep.subr.mxu0 0.0
        %2069 = vmatpush1.xpose.msra.mxu0 0.0
        %2070 = vmatprep.subr.mxu0 0.0
        %2071 = vmatpush1.xpose.msra.mxu0 0.0
        %2072 = vmatprep.subr.mxu0 0.0
        %2073 = vmatpush1.xpose.msra.mxu0 0.0
        %2074 = vmatprep.subr.mxu0 0.0
        %2075 = vmatpush1.xpose.msra.mxu0 0.0
        %2076 = vmatprep.subr.mxu0 0.0
        %2077 = vmatpush1.xpose.msra.mxu0 0.0
        %2078 = vmatprep.subr.mxu0 0.0
        %2079 = vmatpush1.xpose.msra.mxu0 0.0
        %2080 = vmatprep.subr.mxu0 0.0
        %2081 = vmatpush1.xpose.msra.mxu0 0.0
        %2082 = vmatprep.subr.mxu0 0.0
        %2083 = vmatpush1.xpose.msra.mxu0 0.0
        %2084 = vmatprep.subr.mxu0 0.0
        %2085 = vmatpush1.xpose.msra.mxu0 0.0
        %2086 = vmatprep.subr.mxu0 0.0
        %2087 = vmatpush1.xpose.msra.mxu0 0.0
        %2088 = vmatprep.subr.mxu0 0.0
        %2089 = vmatpush1.xpose.msra.mxu0 0.0
        %2090 = vmatprep.subr.mxu0 0.0
        %2091 = vmatpush1.xpose.msra.mxu0 0.0
        %2092 = vmatprep.subr.mxu0 0.0
        %2093 = vmatpush1.xpose.msra.mxu0 0.0
        %2094 = vmatprep.subr.mxu0 0.0
        %2095 = vmatpush1.xpose.msra.mxu0 0.0
        %2096 = vmatprep.subr.mxu0 0.0
        %2097 = vmatpush1.xpose.msra.mxu0 %v2064
        %2098 = vmatprep.subr.mxu0 0.0
        %2099 = vmatpush2.xpose.msra.mxu0 0.0
        %2100 = vmatprep.subr.mxu0 0.0
        %2101 = vmatpush2.xpose.msra.mxu0 0.0
        %2102 = vmatprep.subr.mxu0 0.0
        %2103 = vmatpush2.xpose.msra.mxu0 0.0
        %2104 = vmatprep.subr.mxu0 0.0
        %2105 = vmatpush2.xpose.msra.mxu0 0.0
        %2106 = vmatprep.subr.mxu0 0.0
        %2107 = vmatpush2.xpose.msra.mxu0 0.0
        %2108 = vmatprep.subr.mxu0 0.0
        %2109 = vmatpush2.xpose.msra.mxu0 0.0
        %2110 = vmatprep.subr.mxu0 0.0
        %2111 = vmatpush2.xpose.msra.mxu0 0.0
        %2112 = vmatprep.subr.mxu0 0.0
        %2113 = vmatpush2.xpose.msra.mxu0 0.0
        %2114 = vmatprep.subr.mxu0 0.0
        %2115 = vmatpush2.xpose.msra.mxu0 0.0
        %2116 = vmatprep.subr.mxu0 0.0
        %2117 = vmatpush2.xpose.msra.mxu0 0.0
        %2118 = vmatprep.subr.mxu0 0.0
        %2119 = vmatpush2.xpose.msra.mxu0 0.0
        %2120 = vmatprep.subr.mxu0 0.0
        %2121 = vmatpush2.xpose.msra.mxu0 0.0
        %2122 = vmatprep.subr.mxu0 0.0
        %2123 = vmatpush2.xpose.msra.mxu0 0.0
        %2124 = vmatprep.subr.mxu0 0.0
        %2125 = vmatpush2.xpose.msra.mxu0 0.0
        %2126 = vmatprep.subr.mxu0 0.0
        %2127 = vmatpush2.xpose.msra.mxu0 0.0
        %2128 = vmatprep.subr.mxu0 0.0
        %2129 = vmatpush2.xpose.msra.mxu0 0.0
        %2130 = vmatprep.mubr.f32.mxu0 0.0
        %2131 = vmatmul.mubr.f32.gmra.mxu0 %v2064
        %v2132 = vpop.f32.mrf.mxu0
        %v2133 = vadd.f32 0.0, %v2132
        %v2134 = vpop.f32.mrf.mxu0
        %2135 = vdwg.mxu0
        %2136 = vmatprep.subr.mxu0 0.0
        %2137 = vmatpush1.xpose.msra.mxu0 0.0
        %2138 = vmatprep.subr.mxu0 0.0
        %2139 = vmatpush1.xpose.msra.mxu0 0.0
        %2140 = vmatprep.subr.mxu0 0.0
        %2141 = vmatpush1.xpose.msra.mxu0 0.0
        %2142 = vmatprep.subr.mxu0 0.0
        %2143 = vmatpush1.xpose.msra.mxu0 0.0
        %2144 = vmatprep.subr.mxu0 0.0
        %2145 = vmatpush1.xpose.msra.mxu0 0.0
        %2146 = vmatprep.subr.mxu0 0.0
        %2147 = vmatpush1.xpose.msra.mxu0 0.0
        %2148 = vmatprep.subr.mxu0 0.0
        %2149 = vmatpush1.xpose.msra.mxu0 0.0
        %2150 = vmatprep.subr.mxu0 0.0
        %2151 = vmatpush1.xpose.msra.mxu0 0.0
        %2152 = vmatprep.subr.mxu0 0.0
        %2153 = vmatpush1.xpose.msra.mxu0 0.0
        %2154 = vmatprep.subr.mxu0 0.0
        %2155 = vmatpush1.xpose.msra.mxu0 0.0
        %2156 = vmatprep.subr.mxu0 0.0
        %2157 = vmatpush1.xpose.msra.mxu0 0.0
        %2158 = vmatprep.subr.mxu0 0.0
        %2159 = vmatpush1.xpose.msra.mxu0 0.0
        %2160 = vmatprep.subr.mxu0 0.0
        %2161 = vmatpush1.xpose.msra.mxu0 0.0
        %2162 = vmatprep.subr.mxu0 0.0
        %2163 = vmatpush1.xpose.msra.mxu0 0.0
        %2164 = vmatprep.subr.mxu0 0.0
        %2165 = vmatpush1.xpose.msra.mxu0 0.0
        %2166 = vmatprep.subr.mxu0 0.0
        %2167 = vmatpush1.xpose.msra.mxu0 %v2065
        %2168 = vmatprep.subr.mxu0 0.0
        %2169 = vmatpush2.xpose.msra.mxu0 0.0
        %2170 = vmatprep.subr.mxu0 0.0
        %2171 = vmatpush2.xpose.msra.mxu0 0.0
        %2172 = vmatprep.subr.mxu0 0.0
        %2173 = vmatpush2.xpose.msra.mxu0 0.0
        %2174 = vmatprep.subr.mxu0 0.0
        %2175 = vmatpush2.xpose.msra.mxu0 0.0
        %2176 = vmatprep.subr.mxu0 0.0
        %2177 = vmatpush2.xpose.msra.mxu0 0.0
        %2178 = vmatprep.subr.mxu0 0.0
        %2179 = vmatpush2.xpose.msra.mxu0 0.0
        %2180 = vmatprep.subr.mxu0 0.0
        %2181 = vmatpush2.xpose.msra.mxu0 0.0
        %2182 = vmatprep.subr.mxu0 0.0
        %2183 = vmatpush2.xpose.msra.mxu0 0.0
        %2184 = vmatprep.subr.mxu0 0.0
        %2185 = vmatpush2.xpose.msra.mxu0 0.0
        %2186 = vmatprep.subr.mxu0 0.0
        %2187 = vmatpush2.xpose.msra.mxu0 0.0
        %2188 = vmatprep.subr.mxu0 0.0
        %2189 = vmatpush2.xpose.msra.mxu0 0.0
        %2190 = vmatprep.subr.mxu0 0.0
        %2191 = vmatpush2.xpose.msra.mxu0 0.0
        %2192 = vmatprep.subr.mxu0 0.0
        %2193 = vmatpush2.xpose.msra.mxu0 0.0
        %2194 = vmatprep.subr.mxu0 0.0
        %2195 = vmatpush2.xpose.msra.mxu0 0.0
        %2196 = vmatprep.subr.mxu0 0.0
        %2197 = vmatpush2.xpose.msra.mxu0 0.0
        %2198 = vmatprep.subr.mxu0 0.0
        %2199 = vmatpush2.xpose.msra.mxu0 0.0
        %2200 = vmatprep.mubr.f32.mxu0 0.0
        %2201 = vmatmul.mubr.f32.gmra.mxu0 %v2065
        %v2202 = vpop.f32.mrf.mxu0
        %v2203 = vadd.f32 0.0, %v2202
        %v2204 = vpop.f32.mrf.mxu0
        %2205 = vdwg.mxu0
        %v2207 = vsel %vm224, %v2133, 0
        %2209 = vmatprep.subr.mxu0 0.0
        %2210 = vmatpush1.msra.mxu0 0.0
        %2211 = vmatprep.subr.mxu0 0.0
        %2212 = vmatpush1.msra.mxu0 0.0
        %2213 = vmatprep.subr.mxu0 0.0
        %2214 = vmatpush1.msra.mxu0 0.0
        %2215 = vmatprep.subr.mxu0 0.0
        %2216 = vmatpush1.msra.mxu0 0.0
        %2217 = vmatprep.subr.mxu0 0.0
        %2218 = vmatpush1.msra.mxu0 0.0
        %2219 = vmatprep.subr.mxu0 0.0
        %2220 = vmatpush1.msra.mxu0 0.0
        %2221 = vmatprep.subr.mxu0 0.0
        %2222 = vmatpush1.msra.mxu0 0.0
        %2223 = vmatprep.subr.mxu0 0.0
        %2224 = vmatpush1.msra.mxu0 0.0
        %2225 = vmatprep.subr.mxu0 0.0
        %2226 = vmatpush1.msra.mxu0 0.0
        %2227 = vmatprep.subr.mxu0 0.0
        %2228 = vmatpush1.msra.mxu0 0.0
        %2229 = vmatprep.subr.mxu0 0.0
        %2230 = vmatpush1.msra.mxu0 0.0
        %2231 = vmatprep.subr.mxu0 0.0
        %2232 = vmatpush1.msra.mxu0 0.0
        %2233 = vmatprep.subr.mxu0 0.0
        %2234 = vmatpush1.msra.mxu0 0.0
        %2235 = vmatprep.subr.mxu0 0.0
        %2236 = vmatpush1.msra.mxu0 0.0
        %2237 = vmatprep.subr.mxu0 0.0
        %2238 = vmatpush1.msra.mxu0 0.0
        %2239 = vmatprep.subr.mxu0 0.0
        %2240 = vmatpush1.msra.mxu0 %v2064
        %2241 = vmatprep.subr.mxu0 0.0
        %2242 = vmatpush2.msra.mxu0 0.0
        %2243 = vmatprep.subr.mxu0 0.0
        %2244 = vmatpush2.msra.mxu0 0.0
        %2245 = vmatprep.subr.mxu0 0.0
        %2246 = vmatpush2.msra.mxu0 0.0
        %2247 = vmatprep.subr.mxu0 0.0
        %2248 = vmatpush2.msra.mxu0 0.0
        %2249 = vmatprep.subr.mxu0 0.0
        %2250 = vmatpush2.msra.mxu0 0.0
        %2251 = vmatprep.subr.mxu0 0.0
        %2252 = vmatpush2.msra.mxu0 0.0
        %2253 = vmatprep.subr.mxu0 0.0
        %2254 = vmatpush2.msra.mxu0 0.0
        %2255 = vmatprep.subr.mxu0 0.0
        %2256 = vmatpush2.msra.mxu0 0.0
        %2257 = vmatprep.subr.mxu0 0.0
        %2258 = vmatpush2.msra.mxu0 0.0
        %2259 = vmatprep.subr.mxu0 0.0
        %2260 = vmatpush2.msra.mxu0 0.0
        %2261 = vmatprep.subr.mxu0 0.0
        %2262 = vmatpush2.msra.mxu0 0.0
        %2263 = vmatprep.subr.mxu0 0.0
        %2264 = vmatpush2.msra.mxu0 0.0
        %2265 = vmatprep.subr.mxu0 0.0
        %2266 = vmatpush2.msra.mxu0 0.0
        %2267 = vmatprep.subr.mxu0 0.0
        %2268 = vmatpush2.msra.mxu0 0.0
        %2269 = vmatprep.subr.mxu0 0.0
        %2270 = vmatpush2.msra.mxu0 0.0
        %2271 = vmatprep.subr.mxu0 0.0
        %2272 = vmatpush2.msra.mxu0 0.0
        %2273 = vmatprep.mubr.f32.mxu0 0.0
        %2274 = vmatmul.mubr.f32.gmra.mxu0 %v2207
        %v2275 = vpop.f32.mrf.mxu0
        %v2276 = vadd.f32 0.0, %v2275
        %v2277 = vpop.f32.mrf.mxu0
        %2278 = vdwg.mxu0
        %v2280 = vsel %vm224, %v2203, 0
        %2282 = vmatprep.subr.mxu0 0.0
        %2283 = vmatpush1.msra.mxu0 0.0
        %2284 = vmatprep.subr.mxu0 0.0
        %2285 = vmatpush1.msra.mxu0 0.0
        %2286 = vmatprep.subr.mxu0 0.0
        %2287 = vmatpush1.msra.mxu0 0.0
        %2288 = vmatprep.subr.mxu0 0.0
        %2289 = vmatpush1.msra.mxu0 0.0
        %2290 = vmatprep.subr.mxu0 0.0
        %2291 = vmatpush1.msra.mxu0 0.0
        %2292 = vmatprep.subr.mxu0 0.0
        %2293 = vmatpush1.msra.mxu0 0.0
        %2294 = vmatprep.subr.mxu0 0.0
        %2295 = vmatpush1.msra.mxu0 0.0
        %2296 = vmatprep.subr.mxu0 0.0
        %2297 = vmatpush1.msra.mxu0 0.0
        %2298 = vmatprep.subr.mxu0 0.0
        %2299 = vmatpush1.msra.mxu0 0.0
        %2300 = vmatprep.subr.mxu0 0.0
        %2301 = vmatpush1.msra.mxu0 0.0
        %2302 = vmatprep.subr.mxu0 0.0
        %2303 = vmatpush1.msra.mxu0 0.0
        %2304 = vmatprep.subr.mxu0 0.0
        %2305 = vmatpush1.msra.mxu0 0.0
        %2306 = vmatprep.subr.mxu0 0.0
        %2307 = vmatpush1.msra.mxu0 0.0
        %2308 = vmatprep.subr.mxu0 0.0
        %2309 = vmatpush1.msra.mxu0 0.0
        %2310 = vmatprep.subr.mxu0 0.0
        %2311 = vmatpush1.msra.mxu0 0.0
        %2312 = vmatprep.subr.mxu0 0.0
        %2313 = vmatpush1.msra.mxu0 %v2065
        %2314 = vmatprep.subr.mxu0 0.0
        %2315 = vmatpush2.msra.mxu0 0.0
        %2316 = vmatprep.subr.mxu0 0.0
        %2317 = vmatpush2.msra.mxu0 0.0
        %2318 = vmatprep.subr.mxu0 0.0
        %2319 = vmatpush2.msra.mxu0 0.0
        %2320 = vmatprep.subr.mxu0 0.0
        %2321 = vmatpush2.msra.mxu0 0.0
        %2322 = vmatprep.subr.mxu0 0.0
        %2323 = vmatpush2.msra.mxu0 0.0
        %2324 = vmatprep.subr.mxu0 0.0
        %2325 = vmatpush2.msra.mxu0 0.0
        %2326 = vmatprep.subr.mxu0 0.0
        %2327 = vmatpush2.msra.mxu0 0.0
        %2328 = vmatprep.subr.mxu0 0.0
        %2329 = vmatpush2.msra.mxu0 0.0
        %2330 = vmatprep.subr.mxu0 0.0
        %2331 = vmatpush2.msra.mxu0 0.0
        %2332 = vmatprep.subr.mxu0 0.0
        %2333 = vmatpush2.msra.mxu0 0.0
        %2334 = vmatprep.subr.mxu0 0.0
        %2335 = vmatpush2.msra.mxu0 0.0
        %2336 = vmatprep.subr.mxu0 0.0
        %2337 = vmatpush2.msra.mxu0 0.0
        %2338 = vmatprep.subr.mxu0 0.0
        %2339 = vmatpush2.msra.mxu0 0.0
        %2340 = vmatprep.subr.mxu0 0.0
        %2341 = vmatpush2.msra.mxu0 0.0
        %2342 = vmatprep.subr.mxu0 0.0
        %2343 = vmatpush2.msra.mxu0 0.0
        %2344 = vmatprep.subr.mxu0 0.0
        %2345 = vmatpush2.msra.mxu0 0.0
        %2346 = vmatprep.mubr.f32.mxu0 0.0
        %2347 = vmatmul.mubr.f32.gmra.mxu0 %v2280
        %v2348 = vpop.f32.mrf.mxu0
        %v2349 = vadd.f32 0.0, %v2348
        %v2350 = vpop.f32.mrf.mxu0
        %2351 = vdwg.mxu0
        %v2352 = vmul.f32 %v2064, 1.5
        %v2353 = vmul.f32 %v2065, 1.5
        %v2354 = vmul.f32 %v2276, 0.5
        %v2355 = vmul.f32 %v2349, 0.5
        %v2356 = vsub.f32 %v2352, %v2354
        %v2357 = vsub.f32 %v2353, %v2355
        %2358 = vmatprep.subr.mxu0 0.0
        %2359 = vmatpush1.xpose.msra.mxu0 0.0
        %2360 = vmatprep.subr.mxu0 0.0
        %2361 = vmatpush1.xpose.msra.mxu0 0.0
        %2362 = vmatprep.subr.mxu0 0.0
        %2363 = vmatpush1.xpose.msra.mxu0 0.0
        %2364 = vmatprep.subr.mxu0 0.0
        %2365 = vmatpush1.xpose.msra.mxu0 0.0
        %2366 = vmatprep.subr.mxu0 0.0
        %2367 = vmatpush1.xpose.msra.mxu0 0.0
        %2368 = vmatprep.subr.mxu0 0.0
        %2369 = vmatpush1.xpose.msra.mxu0 0.0
        %2370 = vmatprep.subr.mxu0 0.0
        %2371 = vmatpush1.xpose.msra.mxu0 0.0
        %2372 = vmatprep.subr.mxu0 0.0
        %2373 = vmatpush1.xpose.msra.mxu0 0.0
        %2374 = vmatprep.subr.mxu0 0.0
        %2375 = vmatpush1.xpose.msra.mxu0 0.0
        %2376 = vmatprep.subr.mxu0 0.0
        %2377 = vmatpush1.xpose.msra.mxu0 0.0
        %2378 = vmatprep.subr.mxu0 0.0
        %2379 = vmatpush1.xpose.msra.mxu0 0.0
        %2380 = vmatprep.subr.mxu0 0.0
        %2381 = vmatpush1.xpose.msra.mxu0 0.0
        %2382 = vmatprep.subr.mxu0 0.0
        %2383 = vmatpush1.xpose.msra.mxu0 0.0
        %2384 = vmatprep.subr.mxu0 0.0
        %2385 = vmatpush1.xpose.msra.mxu0 0.0
        %2386 = vmatprep.subr.mxu0 0.0
        %2387 = vmatpush1.xpose.msra.mxu0 0.0
        %2388 = vmatprep.subr.mxu0 0.0
        %2389 = vmatpush1.xpose.msra.mxu0 %v2356
        %2390 = vmatprep.subr.mxu0 0.0
        %2391 = vmatpush2.xpose.msra.mxu0 0.0
        %2392 = vmatprep.subr.mxu0 0.0
        %2393 = vmatpush2.xpose.msra.mxu0 0.0
        %2394 = vmatprep.subr.mxu0 0.0
        %2395 = vmatpush2.xpose.msra.mxu0 0.0
        %2396 = vmatprep.subr.mxu0 0.0
        %2397 = vmatpush2.xpose.msra.mxu0 0.0
        %2398 = vmatprep.subr.mxu0 0.0
        %2399 = vmatpush2.xpose.msra.mxu0 0.0
        %2400 = vmatprep.subr.mxu0 0.0
        %2401 = vmatpush2.xpose.msra.mxu0 0.0
        %2402 = vmatprep.subr.mxu0 0.0
        %2403 = vmatpush2.xpose.msra.mxu0 0.0
        %2404 = vmatprep.subr.mxu0 0.0
        %2405 = vmatpush2.xpose.msra.mxu0 0.0
        %2406 = vmatprep.subr.mxu0 0.0
        %2407 = vmatpush2.xpose.msra.mxu0 0.0
        %2408 = vmatprep.subr.mxu0 0.0
        %2409 = vmatpush2.xpose.msra.mxu0 0.0
        %2410 = vmatprep.subr.mxu0 0.0
        %2411 = vmatpush2.xpose.msra.mxu0 0.0
        %2412 = vmatprep.subr.mxu0 0.0
        %2413 = vmatpush2.xpose.msra.mxu0 0.0
        %2414 = vmatprep.subr.mxu0 0.0
        %2415 = vmatpush2.xpose.msra.mxu0 0.0
        %2416 = vmatprep.subr.mxu0 0.0
        %2417 = vmatpush2.xpose.msra.mxu0 0.0
        %2418 = vmatprep.subr.mxu0 0.0
        %2419 = vmatpush2.xpose.msra.mxu0 0.0
        %2420 = vmatprep.subr.mxu0 0.0
        %2421 = vmatpush2.xpose.msra.mxu0 0.0
        %2422 = vmatprep.mubr.f32.mxu0 0.0
        %2423 = vmatmul.mubr.f32.gmra.mxu0 %v2356
        %v2424 = vpop.f32.mrf.mxu0
        %v2425 = vadd.f32 0.0, %v2424
        %v2426 = vpop.f32.mrf.mxu0
        %2427 = vdwg.mxu0
        %2428 = vmatprep.subr.mxu0 0.0
        %2429 = vmatpush1.xpose.msra.mxu0 0.0
        %2430 = vmatprep.subr.mxu0 0.0
        %2431 = vmatpush1.xpose.msra.mxu0 0.0
        %2432 = vmatprep.subr.mxu0 0.0
        %2433 = vmatpush1.xpose.msra.mxu0 0.0
        %2434 = vmatprep.subr.mxu0 0.0
        %2435 = vmatpush1.xpose.msra.mxu0 0.0
        %2436 = vmatprep.subr.mxu0 0.0
        %2437 = vmatpush1.xpose.msra.mxu0 0.0
        %2438 = vmatprep.subr.mxu0 0.0
        %2439 = vmatpush1.xpose.msra.mxu0 0.0
        %2440 = vmatprep.subr.mxu0 0.0
        %2441 = vmatpush1.xpose.msra.mxu0 0.0
        %2442 = vmatprep.subr.mxu0 0.0
        %2443 = vmatpush1.xpose.msra.mxu0 0.0
        %2444 = vmatprep.subr.mxu0 0.0
        %2445 = vmatpush1.xpose.msra.mxu0 0.0
        %2446 = vmatprep.subr.mxu0 0.0
        %2447 = vmatpush1.xpose.msra.mxu0 0.0
        %2448 = vmatprep.subr.mxu0 0.0
        %2449 = vmatpush1.xpose.msra.mxu0 0.0
        %2450 = vmatprep.subr.mxu0 0.0
        %2451 = vmatpush1.xpose.msra.mxu0 0.0
        %2452 = vmatprep.subr.mxu0 0.0
        %2453 = vmatpush1.xpose.msra.mxu0 0.0
        %2454 = vmatprep.subr.mxu0 0.0
        %2455 = vmatpush1.xpose.msra.mxu0 0.0
        %2456 = vmatprep.subr.mxu0 0.0
        %2457 = vmatpush1.xpose.msra.mxu0 0.0
        %2458 = vmatprep.subr.mxu0 0.0
        %2459 = vmatpush1.xpose.msra.mxu0 %v2357
        %2460 = vmatprep.subr.mxu0 0.0
        %2461 = vmatpush2.xpose.msra.mxu0 0.0
        %2462 = vmatprep.subr.mxu0 0.0
        %2463 = vmatpush2.xpose.msra.mxu0 0.0
        %2464 = vmatprep.subr.mxu0 0.0
        %2465 = vmatpush2.xpose.msra.mxu0 0.0
        %2466 = vmatprep.subr.mxu0 0.0
        %2467 = vmatpush2.xpose.msra.mxu0 0.0
        %2468 = vmatprep.subr.mxu0 0.0
        %2469 = vmatpush2.xpose.msra.mxu0 0.0
        %2470 = vmatprep.subr.mxu0 0.0
        %2471 = vmatpush2.xpose.msra.mxu0 0.0
        %2472 = vmatprep.subr.mxu0 0.0
        %2473 = vmatpush2.xpose.msra.mxu0 0.0
        %2474 = vmatprep.subr.mxu0 0.0
        %2475 = vmatpush2.xpose.msra.mxu0 0.0
        %2476 = vmatprep.subr.mxu0 0.0
        %2477 = vmatpush2.xpose.msra.mxu0 0.0
        %2478 = vmatprep.subr.mxu0 0.0
        %2479 = vmatpush2.xpose.msra.mxu0 0.0
        %2480 = vmatprep.subr.mxu0 0.0
        %2481 = vmatpush2.xpose.msra.mxu0 0.0
        %2482 = vmatprep.subr.mxu0 0.0
        %2483 = vmatpush2.xpose.msra.mxu0 0.0
        %2484 = vmatprep.subr.mxu0 0.0
        %2485 = vmatpush2.xpose.msra.mxu0 0.0
        %2486 = vmatprep.subr.mxu0 0.0
        %2487 = vmatpush2.xpose.msra.mxu0 0.0
        %2488 = vmatprep.subr.mxu0 0.0
        %2489 = vmatpush2.xpose.msra.mxu0 0.0
        %2490 = vmatprep.subr.mxu0 0.0
        %2491 = vmatpush2.xpose.msra.mxu0 0.0
        %2492 = vmatprep.mubr.f32.mxu0 0.0
        %2493 = vmatmul.mubr.f32.gmra.mxu0 %v2357
        %v2494 = vpop.f32.mrf.mxu0
        %v2495 = vadd.f32 0.0, %v2494
        %v2496 = vpop.f32.mrf.mxu0
        %2497 = vdwg.mxu0
        %v2499 = vsel %vm224, %v2425, 0
        %2501 = vmatprep.subr.mxu0 0.0
        %2502 = vmatpush1.msra.mxu0 0.0
        %2503 = vmatprep.subr.mxu0 0.0
        %2504 = vmatpush1.msra.mxu0 0.0
        %2505 = vmatprep.subr.mxu0 0.0
        %2506 = vmatpush1.msra.mxu0 0.0
        %2507 = vmatprep.subr.mxu0 0.0
        %2508 = vmatpush1.msra.mxu0 0.0
        %2509 = vmatprep.subr.mxu0 0.0
        %2510 = vmatpush1.msra.mxu0 0.0
        %2511 = vmatprep.subr.mxu0 0.0
        %2512 = vmatpush1.msra.mxu0 0.0
        %2513 = vmatprep.subr.mxu0 0.0
        %2514 = vmatpush1.msra.mxu0 0.0
        %2515 = vmatprep.subr.mxu0 0.0
        %2516 = vmatpush1.msra.mxu0 0.0
        %2517 = vmatprep.subr.mxu0 0.0
        %2518 = vmatpush1.msra.mxu0 0.0
        %2519 = vmatprep.subr.mxu0 0.0
        %2520 = vmatpush1.msra.mxu0 0.0
        %2521 = vmatprep.subr.mxu0 0.0
        %2522 = vmatpush1.msra.mxu0 0.0
        %2523 = vmatprep.subr.mxu0 0.0
        %2524 = vmatpush1.msra.mxu0 0.0
        %2525 = vmatprep.subr.mxu0 0.0
        %2526 = vmatpush1.msra.mxu0 0.0
        %2527 = vmatprep.subr.mxu0 0.0
        %2528 = vmatpush1.msra.mxu0 0.0
        %2529 = vmatprep.subr.mxu0 0.0
        %2530 = vmatpush1.msra.mxu0 0.0
        %2531 = vmatprep.subr.mxu0 0.0
        %2532 = vmatpush1.msra.mxu0 %v2356
        %2533 = vmatprep.subr.mxu0 0.0
        %2534 = vmatpush2.msra.mxu0 0.0
        %2535 = vmatprep.subr.mxu0 0.0
        %2536 = vmatpush2.msra.mxu0 0.0
        %2537 = vmatprep.subr.mxu0 0.0
        %2538 = vmatpush2.msra.mxu0 0.0
        %2539 = vmatprep.subr.mxu0 0.0
        %2540 = vmatpush2.msra.mxu0 0.0
        %2541 = vmatprep.subr.mxu0 0.0
        %2542 = vmatpush2.msra.mxu0 0.0
        %2543 = vmatprep.subr.mxu0 0.0
        %2544 = vmatpush2.msra.mxu0 0.0
        %2545 = vmatprep.subr.mxu0 0.0
        %2546 = vmatpush2.msra.mxu0 0.0
        %2547 = vmatprep.subr.mxu0 0.0
        %2548 = vmatpush2.msra.mxu0 0.0
        %2549 = vmatprep.subr.mxu0 0.0
        %2550 = vmatpush2.msra.mxu0 0.0
        %2551 = vmatprep.subr.mxu0 0.0
        %2552 = vmatpush2.msra.mxu0 0.0
        %2553 = vmatprep.subr.mxu0 0.0
        %2554 = vmatpush2.msra.mxu0 0.0
        %2555 = vmatprep.subr.mxu0 0.0
        %2556 = vmatpush2.msra.mxu0 0.0
        %2557 = vmatprep.subr.mxu0 0.0
        %2558 = vmatpush2.msra.mxu0 0.0
        %2559 = vmatprep.subr.mxu0 0.0
        %2560 = vmatpush2.msra.mxu0 0.0
        %2561 = vmatprep.subr.mxu0 0.0
        %2562 = vmatpush2.msra.mxu0 0.0
        %2563 = vmatprep.subr.mxu0 0.0
        %2564 = vmatpush2.msra.mxu0 0.0
        %2565 = vmatprep.mubr.f32.mxu0 0.0
        %2566 = vmatmul.mubr.f32.gmra.mxu0 %v2499
        %v2567 = vpop.f32.mrf.mxu0
        %v2568 = vadd.f32 0.0, %v2567
        %v2569 = vpop.f32.mrf.mxu0
        %2570 = vdwg.mxu0
        %v2572 = vsel %vm224, %v2495, 0
        %2574 = vmatprep.subr.mxu0 0.0
        %2575 = vmatpush1.msra.mxu0 0.0
        %2576 = vmatprep.subr.mxu0 0.0
        %2577 = vmatpush1.msra.mxu0 0.0
        %2578 = vmatprep.subr.mxu0 0.0
        %2579 = vmatpush1.msra.mxu0 0.0
        %2580 = vmatprep.subr.mxu0 0.0
        %2581 = vmatpush1.msra.mxu0 0.0
        %2582 = vmatprep.subr.mxu0 0.0
        %2583 = vmatpush1.msra.mxu0 0.0
        %2584 = vmatprep.subr.mxu0 0.0
        %2585 = vmatpush1.msra.mxu0 0.0
        %2586 = vmatprep.subr.mxu0 0.0
        %2587 = vmatpush1.msra.mxu0 0.0
        %2588 = vmatprep.subr.mxu0 0.0
        %2589 = vmatpush1.msra.mxu0 0.0
        %2590 = vmatprep.subr.mxu0 0.0
        %2591 = vmatpush1.msra.mxu0 0.0
        %2592 = vmatprep.subr.mxu0 0.0
        %2593 = vmatpush1.msra.mxu0 0.0
        %2594 = vmatprep.subr.mxu0 0.0
        %2595 = vmatpush1.msra.mxu0 0.0
        %2596 = vmatprep.subr.mxu0 0.0
        %2597 = vmatpush1.msra.mxu0 0.0
        %2598 = vmatprep.subr.mxu0 0.0
        %2599 = vmatpush1.msra.mxu0 0.0
        %2600 = vmatprep.subr.mxu0 0.0
        %2601 = vmatpush1.msra.mxu0 0.0
        %2602 = vmatprep.subr.mxu0 0.0
        %2603 = vmatpush1.msra.mxu0 0.0
        %2604 = vmatprep.subr.mxu0 0.0
        %2605 = vmatpush1.msra.mxu0 %v2357
        %2606 = vmatprep.subr.mxu0 0.0
        %2607 = vmatpush2.msra.mxu0 0.0
        %2608 = vmatprep.subr.mxu0 0.0
        %2609 = vmatpush2.msra.mxu0 0.0
        %2610 = vmatprep.subr.mxu0 0.0
        %2611 = vmatpush2.msra.mxu0 0.0
        %2612 = vmatprep.subr.mxu0 0.0
        %2613 = vmatpush2.msra.mxu0 0.0
        %2614 = vmatprep.subr.mxu0 0.0
        %2615 = vmatpush2.msra.mxu0 0.0
        %2616 = vmatprep.subr.mxu0 0.0
        %2617 = vmatpush2.msra.mxu0 0.0
        %2618 = vmatprep.subr.mxu0 0.0
        %2619 = vmatpush2.msra.mxu0 0.0
        %2620 = vmatprep.subr.mxu0 0.0
        %2621 = vmatpush2.msra.mxu0 0.0
        %2622 = vmatprep.subr.mxu0 0.0
        %2623 = vmatpush2.msra.mxu0 0.0
        %2624 = vmatprep.subr.mxu0 0.0
        %2625 = vmatpush2.msra.mxu0 0.0
        %2626 = vmatprep.subr.mxu0 0.0
        %2627 = vmatpush2.msra.mxu0 0.0
        %2628 = vmatprep.subr.mxu0 0.0
        %2629 = vmatpush2.msra.mxu0 0.0
        %2630 = vmatprep.subr.mxu0 0.0
        %2631 = vmatpush2.msra.mxu0 0.0
        %2632 = vmatprep.subr.mxu0 0.0
        %2633 = vmatpush2.msra.mxu0 0.0
        %2634 = vmatprep.subr.mxu0 0.0
        %2635 = vmatpush2.msra.mxu0 0.0
        %2636 = vmatprep.subr.mxu0 0.0
        %2637 = vmatpush2.msra.mxu0 0.0
        %2638 = vmatprep.mubr.f32.mxu0 0.0
        %2639 = vmatmul.mubr.f32.gmra.mxu0 %v2572
        %v2640 = vpop.f32.mrf.mxu0
        %v2641 = vadd.f32 0.0, %v2640
        %v2642 = vpop.f32.mrf.mxu0
        %2643 = vdwg.mxu0
        %v2644 = vmul.f32 %v2356, 1.5
        %v2645 = vmul.f32 %v2357, 1.5
        %v2646 = vmul.f32 %v2568, 0.5
        %v2647 = vmul.f32 %v2641, 0.5
        %v2648 = vsub.f32 %v2644, %v2646
        %v2649 = vsub.f32 %v2645, %v2647
        %2650 = vmatprep.subr.mxu0 0.0
        %2651 = vmatpush1.xpose.msra.mxu0 0.0
        %2652 = vmatprep.subr.mxu0 0.0
        %2653 = vmatpush1.xpose.msra.mxu0 0.0
        %2654 = vmatprep.subr.mxu0 0.0
        %2655 = vmatpush1.xpose.msra.mxu0 0.0
        %2656 = vmatprep.subr.mxu0 0.0
        %2657 = vmatpush1.xpose.msra.mxu0 0.0
        %2658 = vmatprep.subr.mxu0 0.0
        %2659 = vmatpush1.xpose.msra.mxu0 0.0
        %2660 = vmatprep.subr.mxu0 0.0
        %2661 = vmatpush1.xpose.msra.mxu0 0.0
        %2662 = vmatprep.subr.mxu0 0.0
        %2663 = vmatpush1.xpose.msra.mxu0 0.0
        %2664 = vmatprep.subr.mxu0 0.0
        %2665 = vmatpush1.xpose.msra.mxu0 0.0
        %2666 = vmatprep.subr.mxu0 0.0
        %2667 = vmatpush1.xpose.msra.mxu0 0.0
        %2668 = vmatprep.subr.mxu0 0.0
        %2669 = vmatpush1.xpose.msra.mxu0 0.0
        %2670 = vmatprep.subr.mxu0 0.0
        %2671 = vmatpush1.xpose.msra.mxu0 0.0
        %2672 = vmatprep.subr.mxu0 0.0
        %2673 = vmatpush1.xpose.msra.mxu0 0.0
        %2674 = vmatprep.subr.mxu0 0.0
        %2675 = vmatpush1.xpose.msra.mxu0 0.0
        %2676 = vmatprep.subr.mxu0 0.0
        %2677 = vmatpush1.xpose.msra.mxu0 0.0
        %2678 = vmatprep.subr.mxu0 0.0
        %2679 = vmatpush1.xpose.msra.mxu0 0.0
        %2680 = vmatprep.subr.mxu0 0.0
        %2681 = vmatpush1.xpose.msra.mxu0 %v2648
        %2682 = vmatprep.subr.mxu0 0.0
        %2683 = vmatpush2.xpose.msra.mxu0 0.0
        %2684 = vmatprep.subr.mxu0 0.0
        %2685 = vmatpush2.xpose.msra.mxu0 0.0
        %2686 = vmatprep.subr.mxu0 0.0
        %2687 = vmatpush2.xpose.msra.mxu0 0.0
        %2688 = vmatprep.subr.mxu0 0.0
        %2689 = vmatpush2.xpose.msra.mxu0 0.0
        %2690 = vmatprep.subr.mxu0 0.0
        %2691 = vmatpush2.xpose.msra.mxu0 0.0
        %2692 = vmatprep.subr.mxu0 0.0
        %2693 = vmatpush2.xpose.msra.mxu0 0.0
        %2694 = vmatprep.subr.mxu0 0.0
        %2695 = vmatpush2.xpose.msra.mxu0 0.0
        %2696 = vmatprep.subr.mxu0 0.0
        %2697 = vmatpush2.xpose.msra.mxu0 0.0
        %2698 = vmatprep.subr.mxu0 0.0
        %2699 = vmatpush2.xpose.msra.mxu0 0.0
        %2700 = vmatprep.subr.mxu0 0.0
        %2701 = vmatpush2.xpose.msra.mxu0 0.0
        %2702 = vmatprep.subr.mxu0 0.0
        %2703 = vmatpush2.xpose.msra.mxu0 0.0
        %2704 = vmatprep.subr.mxu0 0.0
        %2705 = vmatpush2.xpose.msra.mxu0 0.0
        %2706 = vmatprep.subr.mxu0 0.0
        %2707 = vmatpush2.xpose.msra.mxu0 0.0
        %2708 = vmatprep.subr.mxu0 0.0
        %2709 = vmatpush2.xpose.msra.mxu0 0.0
        %2710 = vmatprep.subr.mxu0 0.0
        %2711 = vmatpush2.xpose.msra.mxu0 0.0
        %2712 = vmatprep.subr.mxu0 0.0
        %2713 = vmatpush2.xpose.msra.mxu0 0.0
        %2714 = vmatprep.mubr.f32.mxu0 0.0
        %2715 = vmatmul.mubr.f32.gmra.mxu0 %v2648
        %v2716 = vpop.f32.mrf.mxu0
        %v2717 = vadd.f32 0.0, %v2716
        %v2718 = vpop.f32.mrf.mxu0
        %2719 = vdwg.mxu0
        %2720 = vmatprep.subr.mxu0 0.0
        %2721 = vmatpush1.xpose.msra.mxu0 0.0
        %2722 = vmatprep.subr.mxu0 0.0
        %2723 = vmatpush1.xpose.msra.mxu0 0.0
        %2724 = vmatprep.subr.mxu0 0.0
        %2725 = vmatpush1.xpose.msra.mxu0 0.0
        %2726 = vmatprep.subr.mxu0 0.0
        %2727 = vmatpush1.xpose.msra.mxu0 0.0
        %2728 = vmatprep.subr.mxu0 0.0
        %2729 = vmatpush1.xpose.msra.mxu0 0.0
        %2730 = vmatprep.subr.mxu0 0.0
        %2731 = vmatpush1.xpose.msra.mxu0 0.0
        %2732 = vmatprep.subr.mxu0 0.0
        %2733 = vmatpush1.xpose.msra.mxu0 0.0
        %2734 = vmatprep.subr.mxu0 0.0
        %2735 = vmatpush1.xpose.msra.mxu0 0.0
        %2736 = vmatprep.subr.mxu0 0.0
        %2737 = vmatpush1.xpose.msra.mxu0 0.0
        %2738 = vmatprep.subr.mxu0 0.0
        %2739 = vmatpush1.xpose.msra.mxu0 0.0
        %2740 = vmatprep.subr.mxu0 0.0
        %2741 = vmatpush1.xpose.msra.mxu0 0.0
        %2742 = vmatprep.subr.mxu0 0.0
        %2743 = vmatpush1.xpose.msra.mxu0 0.0
        %2744 = vmatprep.subr.mxu0 0.0
        %2745 = vmatpush1.xpose.msra.mxu0 0.0
        %2746 = vmatprep.subr.mxu0 0.0
        %2747 = vmatpush1.xpose.msra.mxu0 0.0
        %2748 = vmatprep.subr.mxu0 0.0
        %2749 = vmatpush1.xpose.msra.mxu0 0.0
        %2750 = vmatprep.subr.mxu0 0.0
        %2751 = vmatpush1.xpose.msra.mxu0 %v2649
        %2752 = vmatprep.subr.mxu0 0.0
        %2753 = vmatpush2.xpose.msra.mxu0 0.0
        %2754 = vmatprep.subr.mxu0 0.0
        %2755 = vmatpush2.xpose.msra.mxu0 0.0
        %2756 = vmatprep.subr.mxu0 0.0
        %2757 = vmatpush2.xpose.msra.mxu0 0.0
        %2758 = vmatprep.subr.mxu0 0.0
        %2759 = vmatpush2.xpose.msra.mxu0 0.0
        %2760 = vmatprep.subr.mxu0 0.0
        %2761 = vmatpush2.xpose.msra.mxu0 0.0
        %2762 = vmatprep.subr.mxu0 0.0
        %2763 = vmatpush2.xpose.msra.mxu0 0.0
        %2764 = vmatprep.subr.mxu0 0.0
        %2765 = vmatpush2.xpose.msra.mxu0 0.0
        %2766 = vmatprep.subr.mxu0 0.0
        %2767 = vmatpush2.xpose.msra.mxu0 0.0
        %2768 = vmatprep.subr.mxu0 0.0
        %2769 = vmatpush2.xpose.msra.mxu0 0.0
        %2770 = vmatprep.subr.mxu0 0.0
        %2771 = vmatpush2.xpose.msra.mxu0 0.0
        %2772 = vmatprep.subr.mxu0 0.0
        %2773 = vmatpush2.xpose.msra.mxu0 0.0
        %2774 = vmatprep.subr.mxu0 0.0
        %2775 = vmatpush2.xpose.msra.mxu0 0.0
        %2776 = vmatprep.subr.mxu0 0.0
        %2777 = vmatpush2.xpose.msra.mxu0 0.0
        %2778 = vmatprep.subr.mxu0 0.0
        %2779 = vmatpush2.xpose.msra.mxu0 0.0
        %2780 = vmatprep.subr.mxu0 0.0
        %2781 = vmatpush2.xpose.msra.mxu0 0.0
        %2782 = vmatprep.subr.mxu0 0.0
        %2783 = vmatpush2.xpose.msra.mxu0 0.0
        %2784 = vmatprep.mubr.f32.mxu0 0.0
        %2785 = vmatmul.mubr.f32.gmra.mxu0 %v2649
        %v2786 = vpop.f32.mrf.mxu0
        %v2787 = vadd.f32 0.0, %v2786
        %v2788 = vpop.f32.mrf.mxu0
        %2789 = vdwg.mxu0
        %v2791 = vsel %vm224, %v2717, 0
        %2793 = vmatprep.subr.mxu0 0.0
        %2794 = vmatpush1.msra.mxu0 0.0
        %2795 = vmatprep.subr.mxu0 0.0
        %2796 = vmatpush1.msra.mxu0 0.0
        %2797 = vmatprep.subr.mxu0 0.0
        %2798 = vmatpush1.msra.mxu0 0.0
        %2799 = vmatprep.subr.mxu0 0.0
        %2800 = vmatpush1.msra.mxu0 0.0
        %2801 = vmatprep.subr.mxu0 0.0
        %2802 = vmatpush1.msra.mxu0 0.0
        %2803 = vmatprep.subr.mxu0 0.0
        %2804 = vmatpush1.msra.mxu0 0.0
        %2805 = vmatprep.subr.mxu0 0.0
        %2806 = vmatpush1.msra.mxu0 0.0
        %2807 = vmatprep.subr.mxu0 0.0
        %2808 = vmatpush1.msra.mxu0 0.0
        %2809 = vmatprep.subr.mxu0 0.0
        %2810 = vmatpush1.msra.mxu0 0.0
        %2811 = vmatprep.subr.mxu0 0.0
        %2812 = vmatpush1.msra.mxu0 0.0
        %2813 = vmatprep.subr.mxu0 0.0
        %2814 = vmatpush1.msra.mxu0 0.0
        %2815 = vmatprep.subr.mxu0 0.0
        %2816 = vmatpush1.msra.mxu0 0.0
        %2817 = vmatprep.subr.mxu0 0.0
        %2818 = vmatpush1.msra.mxu0 0.0
        %2819 = vmatprep.subr.mxu0 0.0
        %2820 = vmatpush1.msra.mxu0 0.0
        %2821 = vmatprep.subr.mxu0 0.0
        %2822 = vmatpush1.msra.mxu0 0.0
        %2823 = vmatprep.subr.mxu0 0.0
        %2824 = vmatpush1.msra.mxu0 %v2648
        %2825 = vmatprep.subr.mxu0 0.0
        %2826 = vmatpush2.msra.mxu0 0.0
        %2827 = vmatprep.subr.mxu0 0.0
        %2828 = vmatpush2.msra.mxu0 0.0
        %2829 = vmatprep.subr.mxu0 0.0
        %2830 = vmatpush2.msra.mxu0 0.0
        %2831 = vmatprep.subr.mxu0 0.0
        %2832 = vmatpush2.msra.mxu0 0.0
        %2833 = vmatprep.subr.mxu0 0.0
        %2834 = vmatpush2.msra.mxu0 0.0
        %2835 = vmatprep.subr.mxu0 0.0
        %2836 = vmatpush2.msra.mxu0 0.0
        %2837 = vmatprep.subr.mxu0 0.0
        %2838 = vmatpush2.msra.mxu0 0.0
        %2839 = vmatprep.subr.mxu0 0.0
        %2840 = vmatpush2.msra.mxu0 0.0
        %2841 = vmatprep.subr.mxu0 0.0
        %2842 = vmatpush2.msra.mxu0 0.0
        %2843 = vmatprep.subr.mxu0 0.0
        %2844 = vmatpush2.msra.mxu0 0.0
        %2845 = vmatprep.subr.mxu0 0.0
        %2846 = vmatpush2.msra.mxu0 0.0
        %2847 = vmatprep.subr.mxu0 0.0
        %2848 = vmatpush2.msra.mxu0 0.0
        %2849 = vmatprep.subr.mxu0 0.0
        %2850 = vmatpush2.msra.mxu0 0.0
        %2851 = vmatprep.subr.mxu0 0.0
        %2852 = vmatpush2.msra.mxu0 0.0
        %2853 = vmatprep.subr.mxu0 0.0
        %2854 = vmatpush2.msra.mxu0 0.0
        %2855 = vmatprep.subr.mxu0 0.0
        %2856 = vmatpush2.msra.mxu0 0.0
        %2857 = vmatprep.mubr.f32.mxu0 0.0
        %2858 = vmatmul.mubr.f32.gmra.mxu0 %v2791
        %v2859 = vpop.f32.mrf.mxu0
        %v2860 = vadd.f32 0.0, %v2859
        %v2861 = vpop.f32.mrf.mxu0
        %2862 = vdwg.mxu0
        %v2864 = vsel %vm224, %v2787, 0
        %2866 = vmatprep.subr.mxu0 0.0
        %2867 = vmatpush1.msra.mxu0 0.0
        %2868 = vmatprep.subr.mxu0 0.0
        %2869 = vmatpush1.msra.mxu0 0.0
        %2870 = vmatprep.subr.mxu0 0.0
        %2871 = vmatpush1.msra.mxu0 0.0
        %2872 = vmatprep.subr.mxu0 0.0
        %2873 = vmatpush1.msra.mxu0 0.0
        %2874 = vmatprep.subr.mxu0 0.0
        %2875 = vmatpush1.msra.mxu0 0.0
        %2876 = vmatprep.subr.mxu0 0.0
        %2877 = vmatpush1.msra.mxu0 0.0
        %2878 = vmatprep.subr.mxu0 0.0
        %2879 = vmatpush1.msra.mxu0 0.0
        %2880 = vmatprep.subr.mxu0 0.0
        %2881 = vmatpush1.msra.mxu0 0.0
        %2882 = vmatprep.subr.mxu0 0.0
        %2883 = vmatpush1.msra.mxu0 0.0
        %2884 = vmatprep.subr.mxu0 0.0
        %2885 = vmatpush1.msra.mxu0 0.0
        %2886 = vmatprep.subr.mxu0 0.0
        %2887 = vmatpush1.msra.mxu0 0.0
        %2888 = vmatprep.subr.mxu0 0.0
        %2889 = vmatpush1.msra.mxu0 0.0
        %2890 = vmatprep.subr.mxu0 0.0
        %2891 = vmatpush1.msra.mxu0 0.0
        %2892 = vmatprep.subr.mxu0 0.0
        %2893 = vmatpush1.msra.mxu0 0.0
        %2894 = vmatprep.subr.mxu0 0.0
        %2895 = vmatpush1.msra.mxu0 0.0
        %2896 = vmatprep.subr.mxu0 0.0
        %2897 = vmatpush1.msra.mxu0 %v2649
        %2898 = vmatprep.subr.mxu0 0.0
        %2899 = vmatpush2.msra.mxu0 0.0
        %2900 = vmatprep.subr.mxu0 0.0
        %2901 = vmatpush2.msra.mxu0 0.0
        %2902 = vmatprep.subr.mxu0 0.0
        %2903 = vmatpush2.msra.mxu0 0.0
        %2904 = vmatprep.subr.mxu0 0.0
        %2905 = vmatpush2.msra.mxu0 0.0
        %2906 = vmatprep.subr.mxu0 0.0
        %2907 = vmatpush2.msra.mxu0 0.0
        %2908 = vmatprep.subr.mxu0 0.0
        %2909 = vmatpush2.msra.mxu0 0.0
        %2910 = vmatprep.subr.mxu0 0.0
        %2911 = vmatpush2.msra.mxu0 0.0
        %2912 = vmatprep.subr.mxu0 0.0
        %2913 = vmatpush2.msra.mxu0 0.0
        %2914 = vmatprep.subr.mxu0 0.0
        %2915 = vmatpush2.msra.mxu0 0.0
        %2916 = vmatprep.subr.mxu0 0.0
        %2917 = vmatpush2.msra.mxu0 0.0
        %2918 = vmatprep.subr.mxu0 0.0
        %2919 = vmatpush2.msra.mxu0 0.0
        %2920 = vmatprep.subr.mxu0 0.0
        %2921 = vmatpush2.msra.mxu0 0.0
        %2922 = vmatprep.subr.mxu0 0.0
        %2923 = vmatpush2.msra.mxu0 0.0
        %2924 = vmatprep.subr.mxu0 0.0
        %2925 = vmatpush2.msra.mxu0 0.0
        %2926 = vmatprep.subr.mxu0 0.0
        %2927 = vmatpush2.msra.mxu0 0.0
        %2928 = vmatprep.subr.mxu0 0.0
        %2929 = vmatpush2.msra.mxu0 0.0
        %2930 = vmatprep.mubr.f32.mxu0 0.0
        %2931 = vmatmul.mubr.f32.gmra.mxu0 %v2864
        %v2932 = vpop.f32.mrf.mxu0
        %v2933 = vadd.f32 0.0, %v2932
        %v2934 = vpop.f32.mrf.mxu0
        %2935 = vdwg.mxu0
        %v2936 = vmul.f32 %v2648, 1.5
        %v2937 = vmul.f32 %v2649, 1.5
        %v2938 = vmul.f32 %v2860, 0.5
        %v2939 = vmul.f32 %v2933, 0.5
        %v2940 = vsub.f32 %v2936, %v2938
        %v2941 = vsub.f32 %v2937, %v2939
        %2942 = vmatprep.subr.mxu0 0.0
        %2943 = vmatpush1.xpose.msra.mxu0 0.0
        %2944 = vmatprep.subr.mxu0 0.0
        %2945 = vmatpush1.xpose.msra.mxu0 0.0
        %2946 = vmatprep.subr.mxu0 0.0
        %2947 = vmatpush1.xpose.msra.mxu0 0.0
        %2948 = vmatprep.subr.mxu0 0.0
        %2949 = vmatpush1.xpose.msra.mxu0 0.0
        %2950 = vmatprep.subr.mxu0 0.0
        %2951 = vmatpush1.xpose.msra.mxu0 0.0
        %2952 = vmatprep.subr.mxu0 0.0
        %2953 = vmatpush1.xpose.msra.mxu0 0.0
        %2954 = vmatprep.subr.mxu0 0.0
        %2955 = vmatpush1.xpose.msra.mxu0 0.0
        %2956 = vmatprep.subr.mxu0 0.0
        %2957 = vmatpush1.xpose.msra.mxu0 0.0
        %2958 = vmatprep.subr.mxu0 0.0
        %2959 = vmatpush1.xpose.msra.mxu0 0.0
        %2960 = vmatprep.subr.mxu0 0.0
        %2961 = vmatpush1.xpose.msra.mxu0 0.0
        %2962 = vmatprep.subr.mxu0 0.0
        %2963 = vmatpush1.xpose.msra.mxu0 0.0
        %2964 = vmatprep.subr.mxu0 0.0
        %2965 = vmatpush1.xpose.msra.mxu0 0.0
        %2966 = vmatprep.subr.mxu0 0.0
        %2967 = vmatpush1.xpose.msra.mxu0 0.0
        %2968 = vmatprep.subr.mxu0 0.0
        %2969 = vmatpush1.xpose.msra.mxu0 0.0
        %2970 = vmatprep.subr.mxu0 0.0
        %2971 = vmatpush1.xpose.msra.mxu0 0.0
        %2972 = vmatprep.subr.mxu0 0.0
        %2973 = vmatpush1.xpose.msra.mxu0 %v2940
        %2974 = vmatprep.subr.mxu0 0.0
        %2975 = vmatpush2.xpose.msra.mxu0 0.0
        %2976 = vmatprep.subr.mxu0 0.0
        %2977 = vmatpush2.xpose.msra.mxu0 0.0
        %2978 = vmatprep.subr.mxu0 0.0
        %2979 = vmatpush2.xpose.msra.mxu0 0.0
        %2980 = vmatprep.subr.mxu0 0.0
        %2981 = vmatpush2.xpose.msra.mxu0 0.0
        %2982 = vmatprep.subr.mxu0 0.0
        %2983 = vmatpush2.xpose.msra.mxu0 0.0
        %2984 = vmatprep.subr.mxu0 0.0
        %2985 = vmatpush2.xpose.msra.mxu0 0.0
        %2986 = vmatprep.subr.mxu0 0.0
        %2987 = vmatpush2.xpose.msra.mxu0 0.0
        %2988 = vmatprep.subr.mxu0 0.0
        %2989 = vmatpush2.xpose.msra.mxu0 0.0
        %2990 = vmatprep.subr.mxu0 0.0
        %2991 = vmatpush2.xpose.msra.mxu0 0.0
        %2992 = vmatprep.subr.mxu0 0.0
        %2993 = vmatpush2.xpose.msra.mxu0 0.0
        %2994 = vmatprep.subr.mxu0 0.0
        %2995 = vmatpush2.xpose.msra.mxu0 0.0
        %2996 = vmatprep.subr.mxu0 0.0
        %2997 = vmatpush2.xpose.msra.mxu0 0.0
        %2998 = vmatprep.subr.mxu0 0.0
        %2999 = vmatpush2.xpose.msra.mxu0 0.0
        %3000 = vmatprep.subr.mxu0 0.0
        %3001 = vmatpush2.xpose.msra.mxu0 0.0
        %3002 = vmatprep.subr.mxu0 0.0
        %3003 = vmatpush2.xpose.msra.mxu0 0.0
        %3004 = vmatprep.subr.mxu0 0.0
        %3005 = vmatpush2.xpose.msra.mxu0 0.0
        %3006 = vmatprep.mubr.f32.mxu0 0.0
        %3007 = vmatmul.mubr.f32.gmra.mxu0 %v2940
        %v3008 = vpop.f32.mrf.mxu0
        %v3009 = vadd.f32 0.0, %v3008
        %v3010 = vpop.f32.mrf.mxu0
        %3011 = vdwg.mxu0
        %3012 = vmatprep.subr.mxu0 0.0
        %3013 = vmatpush1.xpose.msra.mxu0 0.0
        %3014 = vmatprep.subr.mxu0 0.0
        %3015 = vmatpush1.xpose.msra.mxu0 0.0
        %3016 = vmatprep.subr.mxu0 0.0
        %3017 = vmatpush1.xpose.msra.mxu0 0.0
        %3018 = vmatprep.subr.mxu0 0.0
        %3019 = vmatpush1.xpose.msra.mxu0 0.0
        %3020 = vmatprep.subr.mxu0 0.0
        %3021 = vmatpush1.xpose.msra.mxu0 0.0
        %3022 = vmatprep.subr.mxu0 0.0
        %3023 = vmatpush1.xpose.msra.mxu0 0.0
        %3024 = vmatprep.subr.mxu0 0.0
        %3025 = vmatpush1.xpose.msra.mxu0 0.0
        %3026 = vmatprep.subr.mxu0 0.0
        %3027 = vmatpush1.xpose.msra.mxu0 0.0
        %3028 = vmatprep.subr.mxu0 0.0
        %3029 = vmatpush1.xpose.msra.mxu0 0.0
        %3030 = vmatprep.subr.mxu0 0.0
        %3031 = vmatpush1.xpose.msra.mxu0 0.0
        %3032 = vmatprep.subr.mxu0 0.0
        %3033 = vmatpush1.xpose.msra.mxu0 0.0
        %3034 = vmatprep.subr.mxu0 0.0
        %3035 = vmatpush1.xpose.msra.mxu0 0.0
        %3036 = vmatprep.subr.mxu0 0.0
        %3037 = vmatpush1.xpose.msra.mxu0 0.0
        %3038 = vmatprep.subr.mxu0 0.0
        %3039 = vmatpush1.xpose.msra.mxu0 0.0
        %3040 = vmatprep.subr.mxu0 0.0
        %3041 = vmatpush1.xpose.msra.mxu0 0.0
        %3042 = vmatprep.subr.mxu0 0.0
        %3043 = vmatpush1.xpose.msra.mxu0 %v2941
        %3044 = vmatprep.subr.mxu0 0.0
        %3045 = vmatpush2.xpose.msra.mxu0 0.0
        %3046 = vmatprep.subr.mxu0 0.0
        %3047 = vmatpush2.xpose.msra.mxu0 0.0
        %3048 = vmatprep.subr.mxu0 0.0
        %3049 = vmatpush2.xpose.msra.mxu0 0.0
        %3050 = vmatprep.subr.mxu0 0.0
        %3051 = vmatpush2.xpose.msra.mxu0 0.0
        %3052 = vmatprep.subr.mxu0 0.0
        %3053 = vmatpush2.xpose.msra.mxu0 0.0
        %3054 = vmatprep.subr.mxu0 0.0
        %3055 = vmatpush2.xpose.msra.mxu0 0.0
        %3056 = vmatprep.subr.mxu0 0.0
        %3057 = vmatpush2.xpose.msra.mxu0 0.0
        %3058 = vmatprep.subr.mxu0 0.0
        %3059 = vmatpush2.xpose.msra.mxu0 0.0
        %3060 = vmatprep.subr.mxu0 0.0
        %3061 = vmatpush2.xpose.msra.mxu0 0.0
        %3062 = vmatprep.subr.mxu0 0.0
        %3063 = vmatpush2.xpose.msra.mxu0 0.0
        %3064 = vmatprep.subr.mxu0 0.0
        %3065 = vmatpush2.xpose.msra.mxu0 0.0
        %3066 = vmatprep.subr.mxu0 0.0
        %3067 = vmatpush2.xpose.msra.mxu0 0.0
        %3068 = vmatprep.subr.mxu0 0.0
        %3069 = vmatpush2.xpose.msra.mxu0 0.0
        %3070 = vmatprep.subr.mxu0 0.0
        %3071 = vmatpush2.xpose.msra.mxu0 0.0
        %3072 = vmatprep.subr.mxu0 0.0
        %3073 = vmatpush2.xpose.msra.mxu0 0.0
        %3074 = vmatprep.subr.mxu0 0.0
        %3075 = vmatpush2.xpose.msra.mxu0 0.0
        %3076 = vmatprep.mubr.f32.mxu0 0.0
        %3077 = vmatmul.mubr.f32.gmra.mxu0 %v2941
        %v3078 = vpop.f32.mrf.mxu0
        %v3079 = vadd.f32 0.0, %v3078
        %v3080 = vpop.f32.mrf.mxu0
        %3081 = vdwg.mxu0
        %v3083 = vsel %vm224, %v3009, 0
        %3085 = vmatprep.subr.mxu0 0.0
        %3086 = vmatpush1.msra.mxu0 0.0
        %3087 = vmatprep.subr.mxu0 0.0
        %3088 = vmatpush1.msra.mxu0 0.0
        %3089 = vmatprep.subr.mxu0 0.0
        %3090 = vmatpush1.msra.mxu0 0.0
        %3091 = vmatprep.subr.mxu0 0.0
        %3092 = vmatpush1.msra.mxu0 0.0
        %3093 = vmatprep.subr.mxu0 0.0
        %3094 = vmatpush1.msra.mxu0 0.0
        %3095 = vmatprep.subr.mxu0 0.0
        %3096 = vmatpush1.msra.mxu0 0.0
        %3097 = vmatprep.subr.mxu0 0.0
        %3098 = vmatpush1.msra.mxu0 0.0
        %3099 = vmatprep.subr.mxu0 0.0
        %3100 = vmatpush1.msra.mxu0 0.0
        %3101 = vmatprep.subr.mxu0 0.0
        %3102 = vmatpush1.msra.mxu0 0.0
        %3103 = vmatprep.subr.mxu0 0.0
        %3104 = vmatpush1.msra.mxu0 0.0
        %3105 = vmatprep.subr.mxu0 0.0
        %3106 = vmatpush1.msra.mxu0 0.0
        %3107 = vmatprep.subr.mxu0 0.0
        %3108 = vmatpush1.msra.mxu0 0.0
        %3109 = vmatprep.subr.mxu0 0.0
        %3110 = vmatpush1.msra.mxu0 0.0
        %3111 = vmatprep.subr.mxu0 0.0
        %3112 = vmatpush1.msra.mxu0 0.0
        %3113 = vmatprep.subr.mxu0 0.0
        %3114 = vmatpush1.msra.mxu0 0.0
        %3115 = vmatprep.subr.mxu0 0.0
        %3116 = vmatpush1.msra.mxu0 %v2940
        %3117 = vmatprep.subr.mxu0 0.0
        %3118 = vmatpush2.msra.mxu0 0.0
        %3119 = vmatprep.subr.mxu0 0.0
        %3120 = vmatpush2.msra.mxu0 0.0
        %3121 = vmatprep.subr.mxu0 0.0
        %3122 = vmatpush2.msra.mxu0 0.0
        %3123 = vmatprep.subr.mxu0 0.0
        %3124 = vmatpush2.msra.mxu0 0.0
        %3125 = vmatprep.subr.mxu0 0.0
        %3126 = vmatpush2.msra.mxu0 0.0
        %3127 = vmatprep.subr.mxu0 0.0
        %3128 = vmatpush2.msra.mxu0 0.0
        %3129 = vmatprep.subr.mxu0 0.0
        %3130 = vmatpush2.msra.mxu0 0.0
        %3131 = vmatprep.subr.mxu0 0.0
        %3132 = vmatpush2.msra.mxu0 0.0
        %3133 = vmatprep.subr.mxu0 0.0
        %3134 = vmatpush2.msra.mxu0 0.0
        %3135 = vmatprep.subr.mxu0 0.0
        %3136 = vmatpush2.msra.mxu0 0.0
        %3137 = vmatprep.subr.mxu0 0.0
        %3138 = vmatpush2.msra.mxu0 0.0
        %3139 = vmatprep.subr.mxu0 0.0
        %3140 = vmatpush2.msra.mxu0 0.0
        %3141 = vmatprep.subr.mxu0 0.0
        %3142 = vmatpush2.msra.mxu0 0.0
        %3143 = vmatprep.subr.mxu0 0.0
        %3144 = vmatpush2.msra.mxu0 0.0
        %3145 = vmatprep.subr.mxu0 0.0
        %3146 = vmatpush2.msra.mxu0 0.0
        %3147 = vmatprep.subr.mxu0 0.0
        %3148 = vmatpush2.msra.mxu0 0.0
        %3149 = vmatprep.mubr.f32.mxu0 0.0
        %3150 = vmatmul.mubr.f32.gmra.mxu0 %v3083
        %v3151 = vpop.f32.mrf.mxu0
        %v3152 = vadd.f32 0.0, %v3151
        %v3153 = vpop.f32.mrf.mxu0
        %3154 = vdwg.mxu0
        %v3156 = vsel %vm224, %v3079, 0
        %3158 = vmatprep.subr.mxu0 0.0
        %3159 = vmatpush1.msra.mxu0 0.0
        %3160 = vmatprep.subr.mxu0 0.0
        %3161 = vmatpush1.msra.mxu0 0.0
        %3162 = vmatprep.subr.mxu0 0.0
        %3163 = vmatpush1.msra.mxu0 0.0
        %3164 = vmatprep.subr.mxu0 0.0
        %3165 = vmatpush1.msra.mxu0 0.0
        %3166 = vmatprep.subr.mxu0 0.0
        %3167 = vmatpush1.msra.mxu0 0.0
        %3168 = vmatprep.subr.mxu0 0.0
        %3169 = vmatpush1.msra.mxu0 0.0
        %3170 = vmatprep.subr.mxu0 0.0
        %3171 = vmatpush1.msra.mxu0 0.0
        %3172 = vmatprep.subr.mxu0 0.0
        %3173 = vmatpush1.msra.mxu0 0.0
        %3174 = vmatprep.subr.mxu0 0.0
        %3175 = vmatpush1.msra.mxu0 0.0
        %3176 = vmatprep.subr.mxu0 0.0
        %3177 = vmatpush1.msra.mxu0 0.0
        %3178 = vmatprep.subr.mxu0 0.0
        %3179 = vmatpush1.msra.mxu0 0.0
        %3180 = vmatprep.subr.mxu0 0.0
        %3181 = vmatpush1.msra.mxu0 0.0
        %3182 = vmatprep.subr.mxu0 0.0
        %3183 = vmatpush1.msra.mxu0 0.0
        %3184 = vmatprep.subr.mxu0 0.0
        %3185 = vmatpush1.msra.mxu0 0.0
        %3186 = vmatprep.subr.mxu0 0.0
        %3187 = vmatpush1.msra.mxu0 0.0
        %3188 = vmatprep.subr.mxu0 0.0
        %3189 = vmatpush1.msra.mxu0 %v2941
        %3190 = vmatprep.subr.mxu0 0.0
        %3191 = vmatpush2.msra.mxu0 0.0
        %3192 = vmatprep.subr.mxu0 0.0
        %3193 = vmatpush2.msra.mxu0 0.0
        %3194 = vmatprep.subr.mxu0 0.0
        %3195 = vmatpush2.msra.mxu0 0.0
        %3196 = vmatprep.subr.mxu0 0.0
        %3197 = vmatpush2.msra.mxu0 0.0
        %3198 = vmatprep.subr.mxu0 0.0
        %3199 = vmatpush2.msra.mxu0 0.0
        %3200 = vmatprep.subr.mxu0 0.0
        %3201 = vmatpush2.msra.mxu0 0.0
        %3202 = vmatprep.subr.mxu0 0.0
        %3203 = vmatpush2.msra.mxu0 0.0
        %3204 = vmatprep.subr.mxu0 0.0
        %3205 = vmatpush2.msra.mxu0 0.0
        %3206 = vmatprep.subr.mxu0 0.0
        %3207 = vmatpush2.msra.mxu0 0.0
        %3208 = vmatprep.subr.mxu0 0.0
        %3209 = vmatpush2.msra.mxu0 0.0
        %3210 = vmatprep.subr.mxu0 0.0
        %3211 = vmatpush2.msra.mxu0 0.0
        %3212 = vmatprep.subr.mxu0 0.0
        %3213 = vmatpush2.msra.mxu0 0.0
        %3214 = vmatprep.subr.mxu0 0.0
        %3215 = vmatpush2.msra.mxu0 0.0
        %3216 = vmatprep.subr.mxu0 0.0
        %3217 = vmatpush2.msra.mxu0 0.0
        %3218 = vmatprep.subr.mxu0 0.0
        %3219 = vmatpush2.msra.mxu0 0.0
        %3220 = vmatprep.subr.mxu0 0.0
        %3221 = vmatpush2.msra.mxu0 0.0
        %3222 = vmatprep.mubr.f32.mxu0 0.0
        %3223 = vmatmul.mubr.f32.gmra.mxu0 %v3156
        %v3224 = vpop.f32.mrf.mxu0
        %v3225 = vadd.f32 0.0, %v3224
        %v3226 = vpop.f32.mrf.mxu0
        %3227 = vdwg.mxu0
        %v3228 = vmul.f32 %v2940, 1.5
        %v3229 = vmul.f32 %v2941, 1.5
        %v3230 = vmul.f32 %v3152, 0.5
        %v3231 = vmul.f32 %v3225, 0.5
        %v3232 = vsub.f32 %v3228, %v3230
        %v3233 = vsub.f32 %v3229, %v3231
        %3234 = vmatprep.subr.mxu0 0.0
        %3235 = vmatpush1.xpose.msra.mxu0 0.0
        %3236 = vmatprep.subr.mxu0 0.0
        %3237 = vmatpush1.xpose.msra.mxu0 0.0
        %3238 = vmatprep.subr.mxu0 0.0
        %3239 = vmatpush1.xpose.msra.mxu0 0.0
        %3240 = vmatprep.subr.mxu0 0.0
        %3241 = vmatpush1.xpose.msra.mxu0 0.0
        %3242 = vmatprep.subr.mxu0 0.0
        %3243 = vmatpush1.xpose.msra.mxu0 0.0
        %3244 = vmatprep.subr.mxu0 0.0
        %3245 = vmatpush1.xpose.msra.mxu0 0.0
        %3246 = vmatprep.subr.mxu0 0.0
        %3247 = vmatpush1.xpose.msra.mxu0 0.0
        %3248 = vmatprep.subr.mxu0 0.0
        %3249 = vmatpush1.xpose.msra.mxu0 0.0
        %3250 = vmatprep.subr.mxu0 0.0
        %3251 = vmatpush1.xpose.msra.mxu0 0.0
        %3252 = vmatprep.subr.mxu0 0.0
        %3253 = vmatpush1.xpose.msra.mxu0 0.0
        %3254 = vmatprep.subr.mxu0 0.0
        %3255 = vmatpush1.xpose.msra.mxu0 0.0
        %3256 = vmatprep.subr.mxu0 0.0
        %3257 = vmatpush1.xpose.msra.mxu0 0.0
        %3258 = vmatprep.subr.mxu0 0.0
        %3259 = vmatpush1.xpose.msra.mxu0 0.0
        %3260 = vmatprep.subr.mxu0 0.0
        %3261 = vmatpush1.xpose.msra.mxu0 0.0
        %3262 = vmatprep.subr.mxu0 0.0
        %3263 = vmatpush1.xpose.msra.mxu0 0.0
        %3264 = vmatprep.subr.mxu0 0.0
        %3265 = vmatpush1.xpose.msra.mxu0 %v3232
        %3266 = vmatprep.subr.mxu0 0.0
        %3267 = vmatpush2.xpose.msra.mxu0 0.0
        %3268 = vmatprep.subr.mxu0 0.0
        %3269 = vmatpush2.xpose.msra.mxu0 0.0
        %3270 = vmatprep.subr.mxu0 0.0
        %3271 = vmatpush2.xpose.msra.mxu0 0.0
        %3272 = vmatprep.subr.mxu0 0.0
        %3273 = vmatpush2.xpose.msra.mxu0 0.0
        %3274 = vmatprep.subr.mxu0 0.0
        %3275 = vmatpush2.xpose.msra.mxu0 0.0
        %3276 = vmatprep.subr.mxu0 0.0
        %3277 = vmatpush2.xpose.msra.mxu0 0.0
        %3278 = vmatprep.subr.mxu0 0.0
        %3279 = vmatpush2.xpose.msra.mxu0 0.0
        %3280 = vmatprep.subr.mxu0 0.0
        %3281 = vmatpush2.xpose.msra.mxu0 0.0
        %3282 = vmatprep.subr.mxu0 0.0
        %3283 = vmatpush2.xpose.msra.mxu0 0.0
        %3284 = vmatprep.subr.mxu0 0.0
        %3285 = vmatpush2.xpose.msra.mxu0 0.0
        %3286 = vmatprep.subr.mxu0 0.0
        %3287 = vmatpush2.xpose.msra.mxu0 0.0
        %3288 = vmatprep.subr.mxu0 0.0
        %3289 = vmatpush2.xpose.msra.mxu0 0.0
        %3290 = vmatprep.subr.mxu0 0.0
        %3291 = vmatpush2.xpose.msra.mxu0 0.0
        %3292 = vmatprep.subr.mxu0 0.0
        %3293 = vmatpush2.xpose.msra.mxu0 0.0
        %3294 = vmatprep.subr.mxu0 0.0
        %3295 = vmatpush2.xpose.msra.mxu0 0.0
        %3296 = vmatprep.subr.mxu0 0.0
        %3297 = vmatpush2.xpose.msra.mxu0 0.0
        %3298 = vmatprep.mubr.f32.mxu0 0.0
        %3299 = vmatmul.mubr.f32.gmra.mxu0 %v3232
        %v3300 = vpop.f32.mrf.mxu0
        %v3301 = vadd.f32 0.0, %v3300
        %v3302 = vpop.f32.mrf.mxu0
        %3303 = vdwg.mxu0
        %3304 = vmatprep.subr.mxu0 0.0
        %3305 = vmatpush1.xpose.msra.mxu0 0.0
        %3306 = vmatprep.subr.mxu0 0.0
        %3307 = vmatpush1.xpose.msra.mxu0 0.0
        %3308 = vmatprep.subr.mxu0 0.0
        %3309 = vmatpush1.xpose.msra.mxu0 0.0
        %3310 = vmatprep.subr.mxu0 0.0
        %3311 = vmatpush1.xpose.msra.mxu0 0.0
        %3312 = vmatprep.subr.mxu0 0.0
        %3313 = vmatpush1.xpose.msra.mxu0 0.0
        %3314 = vmatprep.subr.mxu0 0.0
        %3315 = vmatpush1.xpose.msra.mxu0 0.0
        %3316 = vmatprep.subr.mxu0 0.0
        %3317 = vmatpush1.xpose.msra.mxu0 0.0
        %3318 = vmatprep.subr.mxu0 0.0
        %3319 = vmatpush1.xpose.msra.mxu0 0.0
        %3320 = vmatprep.subr.mxu0 0.0
        %3321 = vmatpush1.xpose.msra.mxu0 0.0
        %3322 = vmatprep.subr.mxu0 0.0
        %3323 = vmatpush1.xpose.msra.mxu0 0.0
        %3324 = vmatprep.subr.mxu0 0.0
        %3325 = vmatpush1.xpose.msra.mxu0 0.0
        %3326 = vmatprep.subr.mxu0 0.0
        %3327 = vmatpush1.xpose.msra.mxu0 0.0
        %3328 = vmatprep.subr.mxu0 0.0
        %3329 = vmatpush1.xpose.msra.mxu0 0.0
        %3330 = vmatprep.subr.mxu0 0.0
        %3331 = vmatpush1.xpose.msra.mxu0 0.0
        %3332 = vmatprep.subr.mxu0 0.0
        %3333 = vmatpush1.xpose.msra.mxu0 0.0
        %3334 = vmatprep.subr.mxu0 0.0
        %3335 = vmatpush1.xpose.msra.mxu0 %v3233
        %3336 = vmatprep.subr.mxu0 0.0
        %3337 = vmatpush2.xpose.msra.mxu0 0.0
        %3338 = vmatprep.subr.mxu0 0.0
        %3339 = vmatpush2.xpose.msra.mxu0 0.0
        %3340 = vmatprep.subr.mxu0 0.0
        %3341 = vmatpush2.xpose.msra.mxu0 0.0
        %3342 = vmatprep.subr.mxu0 0.0
        %3343 = vmatpush2.xpose.msra.mxu0 0.0
        %3344 = vmatprep.subr.mxu0 0.0
        %3345 = vmatpush2.xpose.msra.mxu0 0.0
        %3346 = vmatprep.subr.mxu0 0.0
        %3347 = vmatpush2.xpose.msra.mxu0 0.0
        %3348 = vmatprep.subr.mxu0 0.0
        %3349 = vmatpush2.xpose.msra.mxu0 0.0
        %3350 = vmatprep.subr.mxu0 0.0
        %3351 = vmatpush2.xpose.msra.mxu0 0.0
        %3352 = vmatprep.subr.mxu0 0.0
        %3353 = vmatpush2.xpose.msra.mxu0 0.0
        %3354 = vmatprep.subr.mxu0 0.0
        %3355 = vmatpush2.xpose.msra.mxu0 0.0
        %3356 = vmatprep.subr.mxu0 0.0
        %3357 = vmatpush2.xpose.msra.mxu0 0.0
        %3358 = vmatprep.subr.mxu0 0.0
        %3359 = vmatpush2.xpose.msra.mxu0 0.0
        %3360 = vmatprep.subr.mxu0 0.0
        %3361 = vmatpush2.xpose.msra.mxu0 0.0
        %3362 = vmatprep.subr.mxu0 0.0
        %3363 = vmatpush2.xpose.msra.mxu0 0.0
        %3364 = vmatprep.subr.mxu0 0.0
        %3365 = vmatpush2.xpose.msra.mxu0 0.0
        %3366 = vmatprep.subr.mxu0 0.0
        %3367 = vmatpush2.xpose.msra.mxu0 0.0
        %3368 = vmatprep.mubr.f32.mxu0 0.0
        %3369 = vmatmul.mubr.f32.gmra.mxu0 %v3233
        %v3370 = vpop.f32.mrf.mxu0
        %v3371 = vadd.f32 0.0, %v3370
        %v3372 = vpop.f32.mrf.mxu0
        %3373 = vdwg.mxu0
        %v3375 = vsel %vm224, %v3301, 0
        %3377 = vmatprep.subr.mxu0 0.0
        %3378 = vmatpush1.msra.mxu0 0.0
        %3379 = vmatprep.subr.mxu0 0.0
        %3380 = vmatpush1.msra.mxu0 0.0
        %3381 = vmatprep.subr.mxu0 0.0
        %3382 = vmatpush1.msra.mxu0 0.0
        %3383 = vmatprep.subr.mxu0 0.0
        %3384 = vmatpush1.msra.mxu0 0.0
        %3385 = vmatprep.subr.mxu0 0.0
        %3386 = vmatpush1.msra.mxu0 0.0
        %3387 = vmatprep.subr.mxu0 0.0
        %3388 = vmatpush1.msra.mxu0 0.0
        %3389 = vmatprep.subr.mxu0 0.0
        %3390 = vmatpush1.msra.mxu0 0.0
        %3391 = vmatprep.subr.mxu0 0.0
        %3392 = vmatpush1.msra.mxu0 0.0
        %3393 = vmatprep.subr.mxu0 0.0
        %3394 = vmatpush1.msra.mxu0 0.0
        %3395 = vmatprep.subr.mxu0 0.0
        %3396 = vmatpush1.msra.mxu0 0.0
        %3397 = vmatprep.subr.mxu0 0.0
        %3398 = vmatpush1.msra.mxu0 0.0
        %3399 = vmatprep.subr.mxu0 0.0
        %3400 = vmatpush1.msra.mxu0 0.0
        %3401 = vmatprep.subr.mxu0 0.0
        %3402 = vmatpush1.msra.mxu0 0.0
        %3403 = vmatprep.subr.mxu0 0.0
        %3404 = vmatpush1.msra.mxu0 0.0
        %3405 = vmatprep.subr.mxu0 0.0
        %3406 = vmatpush1.msra.mxu0 0.0
        %3407 = vmatprep.subr.mxu0 0.0
        %3408 = vmatpush1.msra.mxu0 %v3232
        %3409 = vmatprep.subr.mxu0 0.0
        %3410 = vmatpush2.msra.mxu0 0.0
        %3411 = vmatprep.subr.mxu0 0.0
        %3412 = vmatpush2.msra.mxu0 0.0
        %3413 = vmatprep.subr.mxu0 0.0
        %3414 = vmatpush2.msra.mxu0 0.0
        %3415 = vmatprep.subr.mxu0 0.0
        %3416 = vmatpush2.msra.mxu0 0.0
        %3417 = vmatprep.subr.mxu0 0.0
        %3418 = vmatpush2.msra.mxu0 0.0
        %3419 = vmatprep.subr.mxu0 0.0
        %3420 = vmatpush2.msra.mxu0 0.0
        %3421 = vmatprep.subr.mxu0 0.0
        %3422 = vmatpush2.msra.mxu0 0.0
        %3423 = vmatprep.subr.mxu0 0.0
        %3424 = vmatpush2.msra.mxu0 0.0
        %3425 = vmatprep.subr.mxu0 0.0
        %3426 = vmatpush2.msra.mxu0 0.0
        %3427 = vmatprep.subr.mxu0 0.0
        %3428 = vmatpush2.msra.mxu0 0.0
        %3429 = vmatprep.subr.mxu0 0.0
        %3430 = vmatpush2.msra.mxu0 0.0
        %3431 = vmatprep.subr.mxu0 0.0
        %3432 = vmatpush2.msra.mxu0 0.0
        %3433 = vmatprep.subr.mxu0 0.0
        %3434 = vmatpush2.msra.mxu0 0.0
        %3435 = vmatprep.subr.mxu0 0.0
        %3436 = vmatpush2.msra.mxu0 0.0
        %3437 = vmatprep.subr.mxu0 0.0
        %3438 = vmatpush2.msra.mxu0 0.0
        %3439 = vmatprep.subr.mxu0 0.0
        %3440 = vmatpush2.msra.mxu0 0.0
        %3441 = vmatprep.mubr.f32.mxu0 0.0
        %3442 = vmatmul.mubr.f32.gmra.mxu0 %v3375
        %v3443 = vpop.f32.mrf.mxu0
        %v3444 = vadd.f32 0.0, %v3443
        %v3445 = vpop.f32.mrf.mxu0
        %3446 = vdwg.mxu0
        %v3448 = vsel %vm224, %v3371, 0
        %3450 = vmatprep.subr.mxu0 0.0
        %3451 = vmatpush1.msra.mxu0 0.0
        %3452 = vmatprep.subr.mxu0 0.0
        %3453 = vmatpush1.msra.mxu0 0.0
        %3454 = vmatprep.subr.mxu0 0.0
        %3455 = vmatpush1.msra.mxu0 0.0
        %3456 = vmatprep.subr.mxu0 0.0
        %3457 = vmatpush1.msra.mxu0 0.0
        %3458 = vmatprep.subr.mxu0 0.0
        %3459 = vmatpush1.msra.mxu0 0.0
        %3460 = vmatprep.subr.mxu0 0.0
        %3461 = vmatpush1.msra.mxu0 0.0
        %3462 = vmatprep.subr.mxu0 0.0
        %3463 = vmatpush1.msra.mxu0 0.0
        %3464 = vmatprep.subr.mxu0 0.0
        %3465 = vmatpush1.msra.mxu0 0.0
        %3466 = vmatprep.subr.mxu0 0.0
        %3467 = vmatpush1.msra.mxu0 0.0
        %3468 = vmatprep.subr.mxu0 0.0
        %3469 = vmatpush1.msra.mxu0 0.0
        %3470 = vmatprep.subr.mxu0 0.0
        %3471 = vmatpush1.msra.mxu0 0.0
        %3472 = vmatprep.subr.mxu0 0.0
        %3473 = vmatpush1.msra.mxu0 0.0
        %3474 = vmatprep.subr.mxu0 0.0
        %3475 = vmatpush1.msra.mxu0 0.0
        %3476 = vmatprep.subr.mxu0 0.0
        %3477 = vmatpush1.msra.mxu0 0.0
        %3478 = vmatprep.subr.mxu0 0.0
        %3479 = vmatpush1.msra.mxu0 0.0
        %3480 = vmatprep.subr.mxu0 0.0
        %3481 = vmatpush1.msra.mxu0 %v3233
        %3482 = vmatprep.subr.mxu0 0.0
        %3483 = vmatpush2.msra.mxu0 0.0
        %3484 = vmatprep.subr.mxu0 0.0
        %3485 = vmatpush2.msra.mxu0 0.0
        %3486 = vmatprep.subr.mxu0 0.0
        %3487 = vmatpush2.msra.mxu0 0.0
        %3488 = vmatprep.subr.mxu0 0.0
        %3489 = vmatpush2.msra.mxu0 0.0
        %3490 = vmatprep.subr.mxu0 0.0
        %3491 = vmatpush2.msra.mxu0 0.0
        %3492 = vmatprep.subr.mxu0 0.0
        %3493 = vmatpush2.msra.mxu0 0.0
        %3494 = vmatprep.subr.mxu0 0.0
        %3495 = vmatpush2.msra.mxu0 0.0
        %3496 = vmatprep.subr.mxu0 0.0
        %3497 = vmatpush2.msra.mxu0 0.0
        %3498 = vmatprep.subr.mxu0 0.0
        %3499 = vmatpush2.msra.mxu0 0.0
        %3500 = vmatprep.subr.mxu0 0.0
        %3501 = vmatpush2.msra.mxu0 0.0
        %3502 = vmatprep.subr.mxu0 0.0
        %3503 = vmatpush2.msra.mxu0 0.0
        %3504 = vmatprep.subr.mxu0 0.0
        %3505 = vmatpush2.msra.mxu0 0.0
        %3506 = vmatprep.subr.mxu0 0.0
        %3507 = vmatpush2.msra.mxu0 0.0
        %3508 = vmatprep.subr.mxu0 0.0
        %3509 = vmatpush2.msra.mxu0 0.0
        %3510 = vmatprep.subr.mxu0 0.0
        %3511 = vmatpush2.msra.mxu0 0.0
        %3512 = vmatprep.subr.mxu0 0.0
        %3513 = vmatpush2.msra.mxu0 0.0
        %3514 = vmatprep.mubr.f32.mxu0 0.0
        %3515 = vmatmul.mubr.f32.gmra.mxu0 %v3448
        %v3516 = vpop.f32.mrf.mxu0
        %v3517 = vadd.f32 0.0, %v3516
        %v3518 = vpop.f32.mrf.mxu0
        %3519 = vdwg.mxu0
        %v3520 = vmul.f32 %v3232, 1.5
        %v3521 = vmul.f32 %v3233, 1.5
        %v3522 = vmul.f32 %v3444, 0.5
        %v3523 = vmul.f32 %v3517, 0.5
        %v3524 = vsub.f32 %v3520, %v3522
        %v3525 = vsub.f32 %v3521, %v3523
        %3526 = vmatprep.subr.mxu0 0.0
        %3527 = vmatpush1.xpose.msra.mxu0 0.0
        %3528 = vmatprep.subr.mxu0 0.0
        %3529 = vmatpush1.xpose.msra.mxu0 0.0
        %3530 = vmatprep.subr.mxu0 0.0
        %3531 = vmatpush1.xpose.msra.mxu0 0.0
        %3532 = vmatprep.subr.mxu0 0.0
        %3533 = vmatpush1.xpose.msra.mxu0 0.0
        %3534 = vmatprep.subr.mxu0 0.0
        %3535 = vmatpush1.xpose.msra.mxu0 0.0
        %3536 = vmatprep.subr.mxu0 0.0
        %3537 = vmatpush1.xpose.msra.mxu0 0.0
        %3538 = vmatprep.subr.mxu0 0.0
        %3539 = vmatpush1.xpose.msra.mxu0 0.0
        %3540 = vmatprep.subr.mxu0 0.0
        %3541 = vmatpush1.xpose.msra.mxu0 0.0
        %3542 = vmatprep.subr.mxu0 0.0
        %3543 = vmatpush1.xpose.msra.mxu0 0.0
        %3544 = vmatprep.subr.mxu0 0.0
        %3545 = vmatpush1.xpose.msra.mxu0 0.0
        %3546 = vmatprep.subr.mxu0 0.0
        %3547 = vmatpush1.xpose.msra.mxu0 0.0
        %3548 = vmatprep.subr.mxu0 0.0
        %3549 = vmatpush1.xpose.msra.mxu0 0.0
        %3550 = vmatprep.subr.mxu0 0.0
        %3551 = vmatpush1.xpose.msra.mxu0 0.0
        %3552 = vmatprep.subr.mxu0 0.0
        %3553 = vmatpush1.xpose.msra.mxu0 0.0
        %3554 = vmatprep.subr.mxu0 0.0
        %3555 = vmatpush1.xpose.msra.mxu0 0.0
        %3556 = vmatprep.subr.mxu0 0.0
        %3557 = vmatpush1.xpose.msra.mxu0 %v3524
        %3558 = vmatprep.subr.mxu0 0.0
        %3559 = vmatpush2.xpose.msra.mxu0 0.0
        %3560 = vmatprep.subr.mxu0 0.0
        %3561 = vmatpush2.xpose.msra.mxu0 0.0
        %3562 = vmatprep.subr.mxu0 0.0
        %3563 = vmatpush2.xpose.msra.mxu0 0.0
        %3564 = vmatprep.subr.mxu0 0.0
        %3565 = vmatpush2.xpose.msra.mxu0 0.0
        %3566 = vmatprep.subr.mxu0 0.0
        %3567 = vmatpush2.xpose.msra.mxu0 0.0
        %3568 = vmatprep.subr.mxu0 0.0
        %3569 = vmatpush2.xpose.msra.mxu0 0.0
        %3570 = vmatprep.subr.mxu0 0.0
        %3571 = vmatpush2.xpose.msra.mxu0 0.0
        %3572 = vmatprep.subr.mxu0 0.0
        %3573 = vmatpush2.xpose.msra.mxu0 0.0
        %3574 = vmatprep.subr.mxu0 0.0
        %3575 = vmatpush2.xpose.msra.mxu0 0.0
        %3576 = vmatprep.subr.mxu0 0.0
        %3577 = vmatpush2.xpose.msra.mxu0 0.0
        %3578 = vmatprep.subr.mxu0 0.0
        %3579 = vmatpush2.xpose.msra.mxu0 0.0
        %3580 = vmatprep.subr.mxu0 0.0
        %3581 = vmatpush2.xpose.msra.mxu0 0.0
        %3582 = vmatprep.subr.mxu0 0.0
        %3583 = vmatpush2.xpose.msra.mxu0 0.0
        %3584 = vmatprep.subr.mxu0 0.0
        %3585 = vmatpush2.xpose.msra.mxu0 0.0
        %3586 = vmatprep.subr.mxu0 0.0
        %3587 = vmatpush2.xpose.msra.mxu0 0.0
        %3588 = vmatprep.subr.mxu0 0.0
        %3589 = vmatpush2.xpose.msra.mxu0 0.0
        %3590 = vmatprep.mubr.f32.mxu0 0.0
        %3591 = vmatmul.mubr.f32.gmra.mxu0 %v3524
        %v3592 = vpop.f32.mrf.mxu0
        %v3593 = vadd.f32 0.0, %v3592
        %v3594 = vpop.f32.mrf.mxu0
        %3595 = vdwg.mxu0
        %3596 = vmatprep.subr.mxu0 0.0
        %3597 = vmatpush1.xpose.msra.mxu0 0.0
        %3598 = vmatprep.subr.mxu0 0.0
        %3599 = vmatpush1.xpose.msra.mxu0 0.0
        %3600 = vmatprep.subr.mxu0 0.0
        %3601 = vmatpush1.xpose.msra.mxu0 0.0
        %3602 = vmatprep.subr.mxu0 0.0
        %3603 = vmatpush1.xpose.msra.mxu0 0.0
        %3604 = vmatprep.subr.mxu0 0.0
        %3605 = vmatpush1.xpose.msra.mxu0 0.0
        %3606 = vmatprep.subr.mxu0 0.0
        %3607 = vmatpush1.xpose.msra.mxu0 0.0
        %3608 = vmatprep.subr.mxu0 0.0
        %3609 = vmatpush1.xpose.msra.mxu0 0.0
        %3610 = vmatprep.subr.mxu0 0.0
        %3611 = vmatpush1.xpose.msra.mxu0 0.0
        %3612 = vmatprep.subr.mxu0 0.0
        %3613 = vmatpush1.xpose.msra.mxu0 0.0
        %3614 = vmatprep.subr.mxu0 0.0
        %3615 = vmatpush1.xpose.msra.mxu0 0.0
        %3616 = vmatprep.subr.mxu0 0.0
        %3617 = vmatpush1.xpose.msra.mxu0 0.0
        %3618 = vmatprep.subr.mxu0 0.0
        %3619 = vmatpush1.xpose.msra.mxu0 0.0
        %3620 = vmatprep.subr.mxu0 0.0
        %3621 = vmatpush1.xpose.msra.mxu0 0.0
        %3622 = vmatprep.subr.mxu0 0.0
        %3623 = vmatpush1.xpose.msra.mxu0 0.0
        %3624 = vmatprep.subr.mxu0 0.0
        %3625 = vmatpush1.xpose.msra.mxu0 0.0
        %3626 = vmatprep.subr.mxu0 0.0
        %3627 = vmatpush1.xpose.msra.mxu0 %v3525
        %3628 = vmatprep.subr.mxu0 0.0
        %3629 = vmatpush2.xpose.msra.mxu0 0.0
        %3630 = vmatprep.subr.mxu0 0.0
        %3631 = vmatpush2.xpose.msra.mxu0 0.0
        %3632 = vmatprep.subr.mxu0 0.0
        %3633 = vmatpush2.xpose.msra.mxu0 0.0
        %3634 = vmatprep.subr.mxu0 0.0
        %3635 = vmatpush2.xpose.msra.mxu0 0.0
        %3636 = vmatprep.subr.mxu0 0.0
        %3637 = vmatpush2.xpose.msra.mxu0 0.0
        %3638 = vmatprep.subr.mxu0 0.0
        %3639 = vmatpush2.xpose.msra.mxu0 0.0
        %3640 = vmatprep.subr.mxu0 0.0
        %3641 = vmatpush2.xpose.msra.mxu0 0.0
        %3642 = vmatprep.subr.mxu0 0.0
        %3643 = vmatpush2.xpose.msra.mxu0 0.0
        %3644 = vmatprep.subr.mxu0 0.0
        %3645 = vmatpush2.xpose.msra.mxu0 0.0
        %3646 = vmatprep.subr.mxu0 0.0
        %3647 = vmatpush2.xpose.msra.mxu0 0.0
        %3648 = vmatprep.subr.mxu0 0.0
        %3649 = vmatpush2.xpose.msra.mxu0 0.0
        %3650 = vmatprep.subr.mxu0 0.0
        %3651 = vmatpush2.xpose.msra.mxu0 0.0
        %3652 = vmatprep.subr.mxu0 0.0
        %3653 = vmatpush2.xpose.msra.mxu0 0.0
        %3654 = vmatprep.subr.mxu0 0.0
        %3655 = vmatpush2.xpose.msra.mxu0 0.0
        %3656 = vmatprep.subr.mxu0 0.0
        %3657 = vmatpush2.xpose.msra.mxu0 0.0
        %3658 = vmatprep.subr.mxu0 0.0
        %3659 = vmatpush2.xpose.msra.mxu0 0.0
        %3660 = vmatprep.mubr.f32.mxu0 0.0
        %3661 = vmatmul.mubr.f32.gmra.mxu0 %v3525
        %v3662 = vpop.f32.mrf.mxu0
        %v3663 = vadd.f32 0.0, %v3662
        %v3664 = vpop.f32.mrf.mxu0
        %3665 = vdwg.mxu0
        %v3667 = vsel %vm224, %v3593, 0
        %3669 = vmatprep.subr.mxu0 0.0
        %3670 = vmatpush1.msra.mxu0 0.0
        %3671 = vmatprep.subr.mxu0 0.0
        %3672 = vmatpush1.msra.mxu0 0.0
        %3673 = vmatprep.subr.mxu0 0.0
        %3674 = vmatpush1.msra.mxu0 0.0
        %3675 = vmatprep.subr.mxu0 0.0
        %3676 = vmatpush1.msra.mxu0 0.0
        %3677 = vmatprep.subr.mxu0 0.0
        %3678 = vmatpush1.msra.mxu0 0.0
        %3679 = vmatprep.subr.mxu0 0.0
        %3680 = vmatpush1.msra.mxu0 0.0
        %3681 = vmatprep.subr.mxu0 0.0
        %3682 = vmatpush1.msra.mxu0 0.0
        %3683 = vmatprep.subr.mxu0 0.0
        %3684 = vmatpush1.msra.mxu0 0.0
        %3685 = vmatprep.subr.mxu0 0.0
        %3686 = vmatpush1.msra.mxu0 0.0
        %3687 = vmatprep.subr.mxu0 0.0
        %3688 = vmatpush1.msra.mxu0 0.0
        %3689 = vmatprep.subr.mxu0 0.0
        %3690 = vmatpush1.msra.mxu0 0.0
        %3691 = vmatprep.subr.mxu0 0.0
        %3692 = vmatpush1.msra.mxu0 0.0
        %3693 = vmatprep.subr.mxu0 0.0
        %3694 = vmatpush1.msra.mxu0 0.0
        %3695 = vmatprep.subr.mxu0 0.0
        %3696 = vmatpush1.msra.mxu0 0.0
        %3697 = vmatprep.subr.mxu0 0.0
        %3698 = vmatpush1.msra.mxu0 0.0
        %3699 = vmatprep.subr.mxu0 0.0
        %3700 = vmatpush1.msra.mxu0 %v3524
        %3701 = vmatprep.subr.mxu0 0.0
        %3702 = vmatpush2.msra.mxu0 0.0
        %3703 = vmatprep.subr.mxu0 0.0
        %3704 = vmatpush2.msra.mxu0 0.0
        %3705 = vmatprep.subr.mxu0 0.0
        %3706 = vmatpush2.msra.mxu0 0.0
        %3707 = vmatprep.subr.mxu0 0.0
        %3708 = vmatpush2.msra.mxu0 0.0
        %3709 = vmatprep.subr.mxu0 0.0
        %3710 = vmatpush2.msra.mxu0 0.0
        %3711 = vmatprep.subr.mxu0 0.0
        %3712 = vmatpush2.msra.mxu0 0.0
        %3713 = vmatprep.subr.mxu0 0.0
        %3714 = vmatpush2.msra.mxu0 0.0
        %3715 = vmatprep.subr.mxu0 0.0
        %3716 = vmatpush2.msra.mxu0 0.0
        %3717 = vmatprep.subr.mxu0 0.0
        %3718 = vmatpush2.msra.mxu0 0.0
        %3719 = vmatprep.subr.mxu0 0.0
        %3720 = vmatpush2.msra.mxu0 0.0
        %3721 = vmatprep.subr.mxu0 0.0
        %3722 = vmatpush2.msra.mxu0 0.0
        %3723 = vmatprep.subr.mxu0 0.0
        %3724 = vmatpush2.msra.mxu0 0.0
        %3725 = vmatprep.subr.mxu0 0.0
        %3726 = vmatpush2.msra.mxu0 0.0
        %3727 = vmatprep.subr.mxu0 0.0
        %3728 = vmatpush2.msra.mxu0 0.0
        %3729 = vmatprep.subr.mxu0 0.0
        %3730 = vmatpush2.msra.mxu0 0.0
        %3731 = vmatprep.subr.mxu0 0.0
        %3732 = vmatpush2.msra.mxu0 0.0
        %3733 = vmatprep.mubr.f32.mxu0 0.0
        %3734 = vmatmul.mubr.f32.gmra.mxu0 %v3667
        %v3735 = vpop.f32.mrf.mxu0
        %v3736 = vadd.f32 0.0, %v3735
        %v3737 = vpop.f32.mrf.mxu0
        %3738 = vdwg.mxu0
        %v3740 = vsel %vm224, %v3663, 0
        %3742 = vmatprep.subr.mxu0 0.0
        %3743 = vmatpush1.msra.mxu0 0.0
        %3744 = vmatprep.subr.mxu0 0.0
        %3745 = vmatpush1.msra.mxu0 0.0
        %3746 = vmatprep.subr.mxu0 0.0
        %3747 = vmatpush1.msra.mxu0 0.0
        %3748 = vmatprep.subr.mxu0 0.0
        %3749 = vmatpush1.msra.mxu0 0.0
        %3750 = vmatprep.subr.mxu0 0.0
        %3751 = vmatpush1.msra.mxu0 0.0
        %3752 = vmatprep.subr.mxu0 0.0
        %3753 = vmatpush1.msra.mxu0 0.0
        %3754 = vmatprep.subr.mxu0 0.0
        %3755 = vmatpush1.msra.mxu0 0.0
        %3756 = vmatprep.subr.mxu0 0.0
        %3757 = vmatpush1.msra.mxu0 0.0
        %3758 = vmatprep.subr.mxu0 0.0
        %3759 = vmatpush1.msra.mxu0 0.0
        %3760 = vmatprep.subr.mxu0 0.0
        %3761 = vmatpush1.msra.mxu0 0.0
        %3762 = vmatprep.subr.mxu0 0.0
        %3763 = vmatpush1.msra.mxu0 0.0
        %3764 = vmatprep.subr.mxu0 0.0
        %3765 = vmatpush1.msra.mxu0 0.0
        %3766 = vmatprep.subr.mxu0 0.0
        %3767 = vmatpush1.msra.mxu0 0.0
        %3768 = vmatprep.subr.mxu0 0.0
        %3769 = vmatpush1.msra.mxu0 0.0
        %3770 = vmatprep.subr.mxu0 0.0
        %3771 = vmatpush1.msra.mxu0 0.0
        %3772 = vmatprep.subr.mxu0 0.0
        %3773 = vmatpush1.msra.mxu0 %v3525
        %3774 = vmatprep.subr.mxu0 0.0
        %3775 = vmatpush2.msra.mxu0 0.0
        %3776 = vmatprep.subr.mxu0 0.0
        %3777 = vmatpush2.msra.mxu0 0.0
        %3778 = vmatprep.subr.mxu0 0.0
        %3779 = vmatpush2.msra.mxu0 0.0
        %3780 = vmatprep.subr.mxu0 0.0
        %3781 = vmatpush2.msra.mxu0 0.0
        %3782 = vmatprep.subr.mxu0 0.0
        %3783 = vmatpush2.msra.mxu0 0.0
        %3784 = vmatprep.subr.mxu0 0.0
        %3785 = vmatpush2.msra.mxu0 0.0
        %3786 = vmatprep.subr.mxu0 0.0
        %3787 = vmatpush2.msra.mxu0 0.0
        %3788 = vmatprep.subr.mxu0 0.0
        %3789 = vmatpush2.msra.mxu0 0.0
        %3790 = vmatprep.subr.mxu0 0.0
        %3791 = vmatpush2.msra.mxu0 0.0
        %3792 = vmatprep.subr.mxu0 0.0
        %3793 = vmatpush2.msra.mxu0 0.0
        %3794 = vmatprep.subr.mxu0 0.0
        %3795 = vmatpush2.msra.mxu0 0.0
        %3796 = vmatprep.subr.mxu0 0.0
        %3797 = vmatpush2.msra.mxu0 0.0
        %3798 = vmatprep.subr.mxu0 0.0
        %3799 = vmatpush2.msra.mxu0 0.0
        %3800 = vmatprep.subr.mxu0 0.0
        %3801 = vmatpush2.msra.mxu0 0.0
        %3802 = vmatprep.subr.mxu0 0.0
        %3803 = vmatpush2.msra.mxu0 0.0
        %3804 = vmatprep.subr.mxu0 0.0
        %3805 = vmatpush2.msra.mxu0 0.0
        %3806 = vmatprep.mubr.f32.mxu0 0.0
        %3807 = vmatmul.mubr.f32.gmra.mxu0 %v3740
        %v3808 = vpop.f32.mrf.mxu0
        %v3809 = vadd.f32 0.0, %v3808
        %v3810 = vpop.f32.mrf.mxu0
        %3811 = vdwg.mxu0
        %v3812 = vmul.f32 %v3524, 1.5
        %v3813 = vmul.f32 %v3525, 1.5
        %v3814 = vmul.f32 %v3736, 0.5
        %v3815 = vmul.f32 %v3809, 0.5
        %v3816 = vsub.f32 %v3812, %v3814
        %v3817 = vsub.f32 %v3813, %v3815
        %3818 = vmatprep.subr.mxu0 0.0
        %3819 = vmatpush1.xpose.msra.mxu0 0.0
        %3820 = vmatprep.subr.mxu0 0.0
        %3821 = vmatpush1.xpose.msra.mxu0 0.0
        %3822 = vmatprep.subr.mxu0 0.0
        %3823 = vmatpush1.xpose.msra.mxu0 0.0
        %3824 = vmatprep.subr.mxu0 0.0
        %3825 = vmatpush1.xpose.msra.mxu0 0.0
        %3826 = vmatprep.subr.mxu0 0.0
        %3827 = vmatpush1.xpose.msra.mxu0 0.0
        %3828 = vmatprep.subr.mxu0 0.0
        %3829 = vmatpush1.xpose.msra.mxu0 0.0
        %3830 = vmatprep.subr.mxu0 0.0
        %3831 = vmatpush1.xpose.msra.mxu0 0.0
        %3832 = vmatprep.subr.mxu0 0.0
        %3833 = vmatpush1.xpose.msra.mxu0 0.0
        %3834 = vmatprep.subr.mxu0 0.0
        %3835 = vmatpush1.xpose.msra.mxu0 0.0
        %3836 = vmatprep.subr.mxu0 0.0
        %3837 = vmatpush1.xpose.msra.mxu0 0.0
        %3838 = vmatprep.subr.mxu0 0.0
        %3839 = vmatpush1.xpose.msra.mxu0 0.0
        %3840 = vmatprep.subr.mxu0 0.0
        %3841 = vmatpush1.xpose.msra.mxu0 0.0
        %3842 = vmatprep.subr.mxu0 0.0
        %3843 = vmatpush1.xpose.msra.mxu0 0.0
        %3844 = vmatprep.subr.mxu0 0.0
        %3845 = vmatpush1.xpose.msra.mxu0 0.0
        %3846 = vmatprep.subr.mxu0 0.0
        %3847 = vmatpush1.xpose.msra.mxu0 0.0
        %3848 = vmatprep.subr.mxu0 0.0
        %3849 = vmatpush1.xpose.msra.mxu0 %v3816
        %3850 = vmatprep.subr.mxu0 0.0
        %3851 = vmatpush2.xpose.msra.mxu0 0.0
        %3852 = vmatprep.subr.mxu0 0.0
        %3853 = vmatpush2.xpose.msra.mxu0 0.0
        %3854 = vmatprep.subr.mxu0 0.0
        %3855 = vmatpush2.xpose.msra.mxu0 0.0
        %3856 = vmatprep.subr.mxu0 0.0
        %3857 = vmatpush2.xpose.msra.mxu0 0.0
        %3858 = vmatprep.subr.mxu0 0.0
        %3859 = vmatpush2.xpose.msra.mxu0 0.0
        %3860 = vmatprep.subr.mxu0 0.0
        %3861 = vmatpush2.xpose.msra.mxu0 0.0
        %3862 = vmatprep.subr.mxu0 0.0
        %3863 = vmatpush2.xpose.msra.mxu0 0.0
        %3864 = vmatprep.subr.mxu0 0.0
        %3865 = vmatpush2.xpose.msra.mxu0 0.0
        %3866 = vmatprep.subr.mxu0 0.0
        %3867 = vmatpush2.xpose.msra.mxu0 0.0
        %3868 = vmatprep.subr.mxu0 0.0
        %3869 = vmatpush2.xpose.msra.mxu0 0.0
        %3870 = vmatprep.subr.mxu0 0.0
        %3871 = vmatpush2.xpose.msra.mxu0 0.0
        %3872 = vmatprep.subr.mxu0 0.0
        %3873 = vmatpush2.xpose.msra.mxu0 0.0
        %3874 = vmatprep.subr.mxu0 0.0
        %3875 = vmatpush2.xpose.msra.mxu0 0.0
        %3876 = vmatprep.subr.mxu0 0.0
        %3877 = vmatpush2.xpose.msra.mxu0 0.0
        %3878 = vmatprep.subr.mxu0 0.0
        %3879 = vmatpush2.xpose.msra.mxu0 0.0
        %3880 = vmatprep.subr.mxu0 0.0
        %3881 = vmatpush2.xpose.msra.mxu0 0.0
        %3882 = vmatprep.mubr.f32.mxu0 0.0
        %3883 = vmatmul.mubr.f32.gmra.mxu0 %v3816
        %v3884 = vpop.f32.mrf.mxu0
        %v3885 = vadd.f32 0.0, %v3884
        %v3886 = vpop.f32.mrf.mxu0
        %3887 = vdwg.mxu0
        %3888 = vmatprep.subr.mxu0 0.0
        %3889 = vmatpush1.xpose.msra.mxu0 0.0
        %3890 = vmatprep.subr.mxu0 0.0
        %3891 = vmatpush1.xpose.msra.mxu0 0.0
        %3892 = vmatprep.subr.mxu0 0.0
        %3893 = vmatpush1.xpose.msra.mxu0 0.0
        %3894 = vmatprep.subr.mxu0 0.0
        %3895 = vmatpush1.xpose.msra.mxu0 0.0
        %3896 = vmatprep.subr.mxu0 0.0
        %3897 = vmatpush1.xpose.msra.mxu0 0.0
        %3898 = vmatprep.subr.mxu0 0.0
        %3899 = vmatpush1.xpose.msra.mxu0 0.0
        %3900 = vmatprep.subr.mxu0 0.0
        %3901 = vmatpush1.xpose.msra.mxu0 0.0
        %3902 = vmatprep.subr.mxu0 0.0
        %3903 = vmatpush1.xpose.msra.mxu0 0.0
        %3904 = vmatprep.subr.mxu0 0.0
        %3905 = vmatpush1.xpose.msra.mxu0 0.0
        %3906 = vmatprep.subr.mxu0 0.0
        %3907 = vmatpush1.xpose.msra.mxu0 0.0
        %3908 = vmatprep.subr.mxu0 0.0
        %3909 = vmatpush1.xpose.msra.mxu0 0.0
        %3910 = vmatprep.subr.mxu0 0.0
        %3911 = vmatpush1.xpose.msra.mxu0 0.0
        %3912 = vmatprep.subr.mxu0 0.0
        %3913 = vmatpush1.xpose.msra.mxu0 0.0
        %3914 = vmatprep.subr.mxu0 0.0
        %3915 = vmatpush1.xpose.msra.mxu0 0.0
        %3916 = vmatprep.subr.mxu0 0.0
        %3917 = vmatpush1.xpose.msra.mxu0 0.0
        %3918 = vmatprep.subr.mxu0 0.0
        %3919 = vmatpush1.xpose.msra.mxu0 %v3817
        %3920 = vmatprep.subr.mxu0 0.0
        %3921 = vmatpush2.xpose.msra.mxu0 0.0
        %3922 = vmatprep.subr.mxu0 0.0
        %3923 = vmatpush2.xpose.msra.mxu0 0.0
        %3924 = vmatprep.subr.mxu0 0.0
        %3925 = vmatpush2.xpose.msra.mxu0 0.0
        %3926 = vmatprep.subr.mxu0 0.0
        %3927 = vmatpush2.xpose.msra.mxu0 0.0
        %3928 = vmatprep.subr.mxu0 0.0
        %3929 = vmatpush2.xpose.msra.mxu0 0.0
        %3930 = vmatprep.subr.mxu0 0.0
        %3931 = vmatpush2.xpose.msra.mxu0 0.0
        %3932 = vmatprep.subr.mxu0 0.0
        %3933 = vmatpush2.xpose.msra.mxu0 0.0
        %3934 = vmatprep.subr.mxu0 0.0
        %3935 = vmatpush2.xpose.msra.mxu0 0.0
        %3936 = vmatprep.subr.mxu0 0.0
        %3937 = vmatpush2.xpose.msra.mxu0 0.0
        %3938 = vmatprep.subr.mxu0 0.0
        %3939 = vmatpush2.xpose.msra.mxu0 0.0
        %3940 = vmatprep.subr.mxu0 0.0
        %3941 = vmatpush2.xpose.msra.mxu0 0.0
        %3942 = vmatprep.subr.mxu0 0.0
        %3943 = vmatpush2.xpose.msra.mxu0 0.0
        %3944 = vmatprep.subr.mxu0 0.0
        %3945 = vmatpush2.xpose.msra.mxu0 0.0
        %3946 = vmatprep.subr.mxu0 0.0
        %3947 = vmatpush2.xpose.msra.mxu0 0.0
        %3948 = vmatprep.subr.mxu0 0.0
        %3949 = vmatpush2.xpose.msra.mxu0 0.0
        %3950 = vmatprep.subr.mxu0 0.0
        %3951 = vmatpush2.xpose.msra.mxu0 0.0
        %3952 = vmatprep.mubr.f32.mxu0 0.0
        %3953 = vmatmul.mubr.f32.gmra.mxu0 %v3817
        %v3954 = vpop.f32.mrf.mxu0
        %v3955 = vadd.f32 0.0, %v3954
        %v3956 = vpop.f32.mrf.mxu0
        %3957 = vdwg.mxu0
        %v3959 = vsel %vm224, %v3885, 0
        %3961 = vmatprep.subr.mxu0 0.0
        %3962 = vmatpush1.msra.mxu0 0.0
        %3963 = vmatprep.subr.mxu0 0.0
        %3964 = vmatpush1.msra.mxu0 0.0
        %3965 = vmatprep.subr.mxu0 0.0
        %3966 = vmatpush1.msra.mxu0 0.0
        %3967 = vmatprep.subr.mxu0 0.0
        %3968 = vmatpush1.msra.mxu0 0.0
        %3969 = vmatprep.subr.mxu0 0.0
        %3970 = vmatpush1.msra.mxu0 0.0
        %3971 = vmatprep.subr.mxu0 0.0
        %3972 = vmatpush1.msra.mxu0 0.0
        %3973 = vmatprep.subr.mxu0 0.0
        %3974 = vmatpush1.msra.mxu0 0.0
        %3975 = vmatprep.subr.mxu0 0.0
        %3976 = vmatpush1.msra.mxu0 0.0
        %3977 = vmatprep.subr.mxu0 0.0
        %3978 = vmatpush1.msra.mxu0 0.0
        %3979 = vmatprep.subr.mxu0 0.0
        %3980 = vmatpush1.msra.mxu0 0.0
        %3981 = vmatprep.subr.mxu0 0.0
        %3982 = vmatpush1.msra.mxu0 0.0
        %3983 = vmatprep.subr.mxu0 0.0
        %3984 = vmatpush1.msra.mxu0 0.0
        %3985 = vmatprep.subr.mxu0 0.0
        %3986 = vmatpush1.msra.mxu0 0.0
        %3987 = vmatprep.subr.mxu0 0.0
        %3988 = vmatpush1.msra.mxu0 0.0
        %3989 = vmatprep.subr.mxu0 0.0
        %3990 = vmatpush1.msra.mxu0 0.0
        %3991 = vmatprep.subr.mxu0 0.0
        %3992 = vmatpush1.msra.mxu0 %v3816
        %3993 = vmatprep.subr.mxu0 0.0
        %3994 = vmatpush2.msra.mxu0 0.0
        %3995 = vmatprep.subr.mxu0 0.0
        %3996 = vmatpush2.msra.mxu0 0.0
        %3997 = vmatprep.subr.mxu0 0.0
        %3998 = vmatpush2.msra.mxu0 0.0
        %3999 = vmatprep.subr.mxu0 0.0
        %4000 = vmatpush2.msra.mxu0 0.0
        %4001 = vmatprep.subr.mxu0 0.0
        %4002 = vmatpush2.msra.mxu0 0.0
        %4003 = vmatprep.subr.mxu0 0.0
        %4004 = vmatpush2.msra.mxu0 0.0
        %4005 = vmatprep.subr.mxu0 0.0
        %4006 = vmatpush2.msra.mxu0 0.0
        %4007 = vmatprep.subr.mxu0 0.0
        %4008 = vmatpush2.msra.mxu0 0.0
        %4009 = vmatprep.subr.mxu0 0.0
        %4010 = vmatpush2.msra.mxu0 0.0
        %4011 = vmatprep.subr.mxu0 0.0
        %4012 = vmatpush2.msra.mxu0 0.0
        %4013 = vmatprep.subr.mxu0 0.0
        %4014 = vmatpush2.msra.mxu0 0.0
        %4015 = vmatprep.subr.mxu0 0.0
        %4016 = vmatpush2.msra.mxu0 0.0
        %4017 = vmatprep.subr.mxu0 0.0
        %4018 = vmatpush2.msra.mxu0 0.0
        %4019 = vmatprep.subr.mxu0 0.0
        %4020 = vmatpush2.msra.mxu0 0.0
        %4021 = vmatprep.subr.mxu0 0.0
        %4022 = vmatpush2.msra.mxu0 0.0
        %4023 = vmatprep.subr.mxu0 0.0
        %4024 = vmatpush2.msra.mxu0 0.0
        %4025 = vmatprep.mubr.f32.mxu0 0.0
        %4026 = vmatmul.mubr.f32.gmra.mxu0 %v3959
        %v4027 = vpop.f32.mrf.mxu0
        %v4028 = vadd.f32 0.0, %v4027
        %v4029 = vpop.f32.mrf.mxu0
        %4030 = vdwg.mxu0
        %v4032 = vsel %vm224, %v3955, 0
        %4034 = vmatprep.subr.mxu0 0.0
        %4035 = vmatpush1.msra.mxu0 0.0
        %4036 = vmatprep.subr.mxu0 0.0
        %4037 = vmatpush1.msra.mxu0 0.0
        %4038 = vmatprep.subr.mxu0 0.0
        %4039 = vmatpush1.msra.mxu0 0.0
        %4040 = vmatprep.subr.mxu0 0.0
        %4041 = vmatpush1.msra.mxu0 0.0
        %4042 = vmatprep.subr.mxu0 0.0
        %4043 = vmatpush1.msra.mxu0 0.0
        %4044 = vmatprep.subr.mxu0 0.0
        %4045 = vmatpush1.msra.mxu0 0.0
        %4046 = vmatprep.subr.mxu0 0.0
        %4047 = vmatpush1.msra.mxu0 0.0
        %4048 = vmatprep.subr.mxu0 0.0
        %4049 = vmatpush1.msra.mxu0 0.0
        %4050 = vmatprep.subr.mxu0 0.0
        %4051 = vmatpush1.msra.mxu0 0.0
        %4052 = vmatprep.subr.mxu0 0.0
        %4053 = vmatpush1.msra.mxu0 0.0
        %4054 = vmatprep.subr.mxu0 0.0
        %4055 = vmatpush1.msra.mxu0 0.0
        %4056 = vmatprep.subr.mxu0 0.0
        %4057 = vmatpush1.msra.mxu0 0.0
        %4058 = vmatprep.subr.mxu0 0.0
        %4059 = vmatpush1.msra.mxu0 0.0
        %4060 = vmatprep.subr.mxu0 0.0
        %4061 = vmatpush1.msra.mxu0 0.0
        %4062 = vmatprep.subr.mxu0 0.0
        %4063 = vmatpush1.msra.mxu0 0.0
        %4064 = vmatprep.subr.mxu0 0.0
        %4065 = vmatpush1.msra.mxu0 %v3817
        %4066 = vmatprep.subr.mxu0 0.0
        %4067 = vmatpush2.msra.mxu0 0.0
        %4068 = vmatprep.subr.mxu0 0.0
        %4069 = vmatpush2.msra.mxu0 0.0
        %4070 = vmatprep.subr.mxu0 0.0
        %4071 = vmatpush2.msra.mxu0 0.0
        %4072 = vmatprep.subr.mxu0 0.0
        %4073 = vmatpush2.msra.mxu0 0.0
        %4074 = vmatprep.subr.mxu0 0.0
        %4075 = vmatpush2.msra.mxu0 0.0
        %4076 = vmatprep.subr.mxu0 0.0
        %4077 = vmatpush2.msra.mxu0 0.0
        %4078 = vmatprep.subr.mxu0 0.0
        %4079 = vmatpush2.msra.mxu0 0.0
        %4080 = vmatprep.subr.mxu0 0.0
        %4081 = vmatpush2.msra.mxu0 0.0
        %4082 = vmatprep.subr.mxu0 0.0
        %4083 = vmatpush2.msra.mxu0 0.0
        %4084 = vmatprep.subr.mxu0 0.0
        %4085 = vmatpush2.msra.mxu0 0.0
        %4086 = vmatprep.subr.mxu0 0.0
        %4087 = vmatpush2.msra.mxu0 0.0
        %4088 = vmatprep.subr.mxu0 0.0
        %4089 = vmatpush2.msra.mxu0 0.0
        %4090 = vmatprep.subr.mxu0 0.0
        %4091 = vmatpush2.msra.mxu0 0.0
        %4092 = vmatprep.subr.mxu0 0.0
        %4093 = vmatpush2.msra.mxu0 0.0
        %4094 = vmatprep.subr.mxu0 0.0
        %4095 = vmatpush2.msra.mxu0 0.0
        %4096 = vmatprep.subr.mxu0 0.0
        %4097 = vmatpush2.msra.mxu0 0.0
        %4098 = vmatprep.mubr.f32.mxu0 0.0
        %4099 = vmatmul.mubr.f32.gmra.mxu0 %v4032
        %v4100 = vpop.f32.mrf.mxu0
        %v4101 = vadd.f32 0.0, %v4100
        %v4102 = vpop.f32.mrf.mxu0
        %4103 = vdwg.mxu0
        %v4104 = vmul.f32 %v3816, 1.5
        %v4105 = vmul.f32 %v3817, 1.5
        %v4106 = vmul.f32 %v4028, 0.5
        %v4107 = vmul.f32 %v4101, 0.5
        %v4108 = vsub.f32 %v4104, %v4106
        %v4109 = vsub.f32 %v4105, %v4107
        %4110 = vmatprep.subr.mxu0 0.0
        %4111 = vmatpush1.xpose.msra.mxu0 0.0
        %4112 = vmatprep.subr.mxu0 0.0
        %4113 = vmatpush1.xpose.msra.mxu0 0.0
        %4114 = vmatprep.subr.mxu0 0.0
        %4115 = vmatpush1.xpose.msra.mxu0 0.0
        %4116 = vmatprep.subr.mxu0 0.0
        %4117 = vmatpush1.xpose.msra.mxu0 0.0
        %4118 = vmatprep.subr.mxu0 0.0
        %4119 = vmatpush1.xpose.msra.mxu0 0.0
        %4120 = vmatprep.subr.mxu0 0.0
        %4121 = vmatpush1.xpose.msra.mxu0 0.0
        %4122 = vmatprep.subr.mxu0 0.0
        %4123 = vmatpush1.xpose.msra.mxu0 0.0
        %4124 = vmatprep.subr.mxu0 0.0
        %4125 = vmatpush1.xpose.msra.mxu0 0.0
        %4126 = vmatprep.subr.mxu0 0.0
        %4127 = vmatpush1.xpose.msra.mxu0 0.0
        %4128 = vmatprep.subr.mxu0 0.0
        %4129 = vmatpush1.xpose.msra.mxu0 0.0
        %4130 = vmatprep.subr.mxu0 0.0
        %4131 = vmatpush1.xpose.msra.mxu0 0.0
        %4132 = vmatprep.subr.mxu0 0.0
        %4133 = vmatpush1.xpose.msra.mxu0 0.0
        %4134 = vmatprep.subr.mxu0 0.0
        %4135 = vmatpush1.xpose.msra.mxu0 0.0
        %4136 = vmatprep.subr.mxu0 0.0
        %4137 = vmatpush1.xpose.msra.mxu0 0.0
        %4138 = vmatprep.subr.mxu0 0.0
        %4139 = vmatpush1.xpose.msra.mxu0 0.0
        %4140 = vmatprep.subr.mxu0 0.0
        %4141 = vmatpush1.xpose.msra.mxu0 %v4108
        %4142 = vmatprep.subr.mxu0 0.0
        %4143 = vmatpush2.xpose.msra.mxu0 0.0
        %4144 = vmatprep.subr.mxu0 0.0
        %4145 = vmatpush2.xpose.msra.mxu0 0.0
        %4146 = vmatprep.subr.mxu0 0.0
        %4147 = vmatpush2.xpose.msra.mxu0 0.0
        %4148 = vmatprep.subr.mxu0 0.0
        %4149 = vmatpush2.xpose.msra.mxu0 0.0
        %4150 = vmatprep.subr.mxu0 0.0
        %4151 = vmatpush2.xpose.msra.mxu0 0.0
        %4152 = vmatprep.subr.mxu0 0.0
        %4153 = vmatpush2.xpose.msra.mxu0 0.0
        %4154 = vmatprep.subr.mxu0 0.0
        %4155 = vmatpush2.xpose.msra.mxu0 0.0
        %4156 = vmatprep.subr.mxu0 0.0
        %4157 = vmatpush2.xpose.msra.mxu0 0.0
        %4158 = vmatprep.subr.mxu0 0.0
        %4159 = vmatpush2.xpose.msra.mxu0 0.0
        %4160 = vmatprep.subr.mxu0 0.0
        %4161 = vmatpush2.xpose.msra.mxu0 0.0
        %4162 = vmatprep.subr.mxu0 0.0
        %4163 = vmatpush2.xpose.msra.mxu0 0.0
        %4164 = vmatprep.subr.mxu0 0.0
        %4165 = vmatpush2.xpose.msra.mxu0 0.0
        %4166 = vmatprep.subr.mxu0 0.0
        %4167 = vmatpush2.xpose.msra.mxu0 0.0
        %4168 = vmatprep.subr.mxu0 0.0
        %4169 = vmatpush2.xpose.msra.mxu0 0.0
        %4170 = vmatprep.subr.mxu0 0.0
        %4171 = vmatpush2.xpose.msra.mxu0 0.0
        %4172 = vmatprep.subr.mxu0 0.0
        %4173 = vmatpush2.xpose.msra.mxu0 0.0
        %4174 = vmatprep.mubr.f32.mxu0 0.0
        %4175 = vmatmul.mubr.f32.gmra.mxu0 %v4108
        %v4176 = vpop.f32.mrf.mxu0
        %v4177 = vadd.f32 0.0, %v4176
        %v4178 = vpop.f32.mrf.mxu0
        %4179 = vdwg.mxu0
        %4180 = vmatprep.subr.mxu0 0.0
        %4181 = vmatpush1.xpose.msra.mxu0 0.0
        %4182 = vmatprep.subr.mxu0 0.0
        %4183 = vmatpush1.xpose.msra.mxu0 0.0
        %4184 = vmatprep.subr.mxu0 0.0
        %4185 = vmatpush1.xpose.msra.mxu0 0.0
        %4186 = vmatprep.subr.mxu0 0.0
        %4187 = vmatpush1.xpose.msra.mxu0 0.0
        %4188 = vmatprep.subr.mxu0 0.0
        %4189 = vmatpush1.xpose.msra.mxu0 0.0
        %4190 = vmatprep.subr.mxu0 0.0
        %4191 = vmatpush1.xpose.msra.mxu0 0.0
        %4192 = vmatprep.subr.mxu0 0.0
        %4193 = vmatpush1.xpose.msra.mxu0 0.0
        %4194 = vmatprep.subr.mxu0 0.0
        %4195 = vmatpush1.xpose.msra.mxu0 0.0
        %4196 = vmatprep.subr.mxu0 0.0
        %4197 = vmatpush1.xpose.msra.mxu0 0.0
        %4198 = vmatprep.subr.mxu0 0.0
        %4199 = vmatpush1.xpose.msra.mxu0 0.0
        %4200 = vmatprep.subr.mxu0 0.0
        %4201 = vmatpush1.xpose.msra.mxu0 0.0
        %4202 = vmatprep.subr.mxu0 0.0
        %4203 = vmatpush1.xpose.msra.mxu0 0.0
        %4204 = vmatprep.subr.mxu0 0.0
        %4205 = vmatpush1.xpose.msra.mxu0 0.0
        %4206 = vmatprep.subr.mxu0 0.0
        %4207 = vmatpush1.xpose.msra.mxu0 0.0
        %4208 = vmatprep.subr.mxu0 0.0
        %4209 = vmatpush1.xpose.msra.mxu0 0.0
        %4210 = vmatprep.subr.mxu0 0.0
        %4211 = vmatpush1.xpose.msra.mxu0 %v4109
        %4212 = vmatprep.subr.mxu0 0.0
        %4213 = vmatpush2.xpose.msra.mxu0 0.0
        %4214 = vmatprep.subr.mxu0 0.0
        %4215 = vmatpush2.xpose.msra.mxu0 0.0
        %4216 = vmatprep.subr.mxu0 0.0
        %4217 = vmatpush2.xpose.msra.mxu0 0.0
        %4218 = vmatprep.subr.mxu0 0.0
        %4219 = vmatpush2.xpose.msra.mxu0 0.0
        %4220 = vmatprep.subr.mxu0 0.0
        %4221 = vmatpush2.xpose.msra.mxu0 0.0
        %4222 = vmatprep.subr.mxu0 0.0
        %4223 = vmatpush2.xpose.msra.mxu0 0.0
        %4224 = vmatprep.subr.mxu0 0.0
        %4225 = vmatpush2.xpose.msra.mxu0 0.0
        %4226 = vmatprep.subr.mxu0 0.0
        %4227 = vmatpush2.xpose.msra.mxu0 0.0
        %4228 = vmatprep.subr.mxu0 0.0
        %4229 = vmatpush2.xpose.msra.mxu0 0.0
        %4230 = vmatprep.subr.mxu0 0.0
        %4231 = vmatpush2.xpose.msra.mxu0 0.0
        %4232 = vmatprep.subr.mxu0 0.0
        %4233 = vmatpush2.xpose.msra.mxu0 0.0
        %4234 = vmatprep.subr.mxu0 0.0
        %4235 = vmatpush2.xpose.msra.mxu0 0.0
        %4236 = vmatprep.subr.mxu0 0.0
        %4237 = vmatpush2.xpose.msra.mxu0 0.0
        %4238 = vmatprep.subr.mxu0 0.0
        %4239 = vmatpush2.xpose.msra.mxu0 0.0
        %4240 = vmatprep.subr.mxu0 0.0
        %4241 = vmatpush2.xpose.msra.mxu0 0.0
        %4242 = vmatprep.subr.mxu0 0.0
        %4243 = vmatpush2.xpose.msra.mxu0 0.0
        %4244 = vmatprep.mubr.f32.mxu0 0.0
        %4245 = vmatmul.mubr.f32.gmra.mxu0 %v4109
        %v4246 = vpop.f32.mrf.mxu0
        %v4247 = vadd.f32 0.0, %v4246
        %v4248 = vpop.f32.mrf.mxu0
        %4249 = vdwg.mxu0
        %v4251 = vsel %vm224, %v4177, 0
        %4253 = vmatprep.subr.mxu0 0.0
        %4254 = vmatpush1.msra.mxu0 0.0
        %4255 = vmatprep.subr.mxu0 0.0
        %4256 = vmatpush1.msra.mxu0 0.0
        %4257 = vmatprep.subr.mxu0 0.0
        %4258 = vmatpush1.msra.mxu0 0.0
        %4259 = vmatprep.subr.mxu0 0.0
        %4260 = vmatpush1.msra.mxu0 0.0
        %4261 = vmatprep.subr.mxu0 0.0
        %4262 = vmatpush1.msra.mxu0 0.0
        %4263 = vmatprep.subr.mxu0 0.0
        %4264 = vmatpush1.msra.mxu0 0.0
        %4265 = vmatprep.subr.mxu0 0.0
        %4266 = vmatpush1.msra.mxu0 0.0
        %4267 = vmatprep.subr.mxu0 0.0
        %4268 = vmatpush1.msra.mxu0 0.0
        %4269 = vmatprep.subr.mxu0 0.0
        %4270 = vmatpush1.msra.mxu0 0.0
        %4271 = vmatprep.subr.mxu0 0.0
        %4272 = vmatpush1.msra.mxu0 0.0
        %4273 = vmatprep.subr.mxu0 0.0
        %4274 = vmatpush1.msra.mxu0 0.0
        %4275 = vmatprep.subr.mxu0 0.0
        %4276 = vmatpush1.msra.mxu0 0.0
        %4277 = vmatprep.subr.mxu0 0.0
        %4278 = vmatpush1.msra.mxu0 0.0
        %4279 = vmatprep.subr.mxu0 0.0
        %4280 = vmatpush1.msra.mxu0 0.0
        %4281 = vmatprep.subr.mxu0 0.0
        %4282 = vmatpush1.msra.mxu0 0.0
        %4283 = vmatprep.subr.mxu0 0.0
        %4284 = vmatpush1.msra.mxu0 %v4108
        %4285 = vmatprep.subr.mxu0 0.0
        %4286 = vmatpush2.msra.mxu0 0.0
        %4287 = vmatprep.subr.mxu0 0.0
        %4288 = vmatpush2.msra.mxu0 0.0
        %4289 = vmatprep.subr.mxu0 0.0
        %4290 = vmatpush2.msra.mxu0 0.0
        %4291 = vmatprep.subr.mxu0 0.0
        %4292 = vmatpush2.msra.mxu0 0.0
        %4293 = vmatprep.subr.mxu0 0.0
        %4294 = vmatpush2.msra.mxu0 0.0
        %4295 = vmatprep.subr.mxu0 0.0
        %4296 = vmatpush2.msra.mxu0 0.0
        %4297 = vmatprep.subr.mxu0 0.0
        %4298 = vmatpush2.msra.mxu0 0.0
        %4299 = vmatprep.subr.mxu0 0.0
        %4300 = vmatpush2.msra.mxu0 0.0
        %4301 = vmatprep.subr.mxu0 0.0
        %4302 = vmatpush2.msra.mxu0 0.0
        %4303 = vmatprep.subr.mxu0 0.0
        %4304 = vmatpush2.msra.mxu0 0.0
        %4305 = vmatprep.subr.mxu0 0.0
        %4306 = vmatpush2.msra.mxu0 0.0
        %4307 = vmatprep.subr.mxu0 0.0
        %4308 = vmatpush2.msra.mxu0 0.0
        %4309 = vmatprep.subr.mxu0 0.0
        %4310 = vmatpush2.msra.mxu0 0.0
        %4311 = vmatprep.subr.mxu0 0.0
        %4312 = vmatpush2.msra.mxu0 0.0
        %4313 = vmatprep.subr.mxu0 0.0
        %4314 = vmatpush2.msra.mxu0 0.0
        %4315 = vmatprep.subr.mxu0 0.0
        %4316 = vmatpush2.msra.mxu0 0.0
        %4317 = vmatprep.mubr.f32.mxu0 0.0
        %4318 = vmatmul.mubr.f32.gmra.mxu0 %v4251
        %v4319 = vpop.f32.mrf.mxu0
        %v4320 = vadd.f32 0.0, %v4319
        %v4321 = vpop.f32.mrf.mxu0
        %4322 = vdwg.mxu0
        %v4324 = vsel %vm224, %v4247, 0
        %4326 = vmatprep.subr.mxu0 0.0
        %4327 = vmatpush1.msra.mxu0 0.0
        %4328 = vmatprep.subr.mxu0 0.0
        %4329 = vmatpush1.msra.mxu0 0.0
        %4330 = vmatprep.subr.mxu0 0.0
        %4331 = vmatpush1.msra.mxu0 0.0
        %4332 = vmatprep.subr.mxu0 0.0
        %4333 = vmatpush1.msra.mxu0 0.0
        %4334 = vmatprep.subr.mxu0 0.0
        %4335 = vmatpush1.msra.mxu0 0.0
        %4336 = vmatprep.subr.mxu0 0.0
        %4337 = vmatpush1.msra.mxu0 0.0
        %4338 = vmatprep.subr.mxu0 0.0
        %4339 = vmatpush1.msra.mxu0 0.0
        %4340 = vmatprep.subr.mxu0 0.0
        %4341 = vmatpush1.msra.mxu0 0.0
        %4342 = vmatprep.subr.mxu0 0.0
        %4343 = vmatpush1.msra.mxu0 0.0
        %4344 = vmatprep.subr.mxu0 0.0
        %4345 = vmatpush1.msra.mxu0 0.0
        %4346 = vmatprep.subr.mxu0 0.0
        %4347 = vmatpush1.msra.mxu0 0.0
        %4348 = vmatprep.subr.mxu0 0.0
        %4349 = vmatpush1.msra.mxu0 0.0
        %4350 = vmatprep.subr.mxu0 0.0
        %4351 = vmatpush1.msra.mxu0 0.0
        %4352 = vmatprep.subr.mxu0 0.0
        %4353 = vmatpush1.msra.mxu0 0.0
        %4354 = vmatprep.subr.mxu0 0.0
        %4355 = vmatpush1.msra.mxu0 0.0
        %4356 = vmatprep.subr.mxu0 0.0
        %4357 = vmatpush1.msra.mxu0 %v4109
        %4358 = vmatprep.subr.mxu0 0.0
        %4359 = vmatpush2.msra.mxu0 0.0
        %4360 = vmatprep.subr.mxu0 0.0
        %4361 = vmatpush2.msra.mxu0 0.0
        %4362 = vmatprep.subr.mxu0 0.0
        %4363 = vmatpush2.msra.mxu0 0.0
        %4364 = vmatprep.subr.mxu0 0.0
        %4365 = vmatpush2.msra.mxu0 0.0
        %4366 = vmatprep.subr.mxu0 0.0
        %4367 = vmatpush2.msra.mxu0 0.0
        %4368 = vmatprep.subr.mxu0 0.0
        %4369 = vmatpush2.msra.mxu0 0.0
        %4370 = vmatprep.subr.mxu0 0.0
        %4371 = vmatpush2.msra.mxu0 0.0
        %4372 = vmatprep.subr.mxu0 0.0
        %4373 = vmatpush2.msra.mxu0 0.0
        %4374 = vmatprep.subr.mxu0 0.0
        %4375 = vmatpush2.msra.mxu0 0.0
        %4376 = vmatprep.subr.mxu0 0.0
        %4377 = vmatpush2.msra.mxu0 0.0
        %4378 = vmatprep.subr.mxu0 0.0
        %4379 = vmatpush2.msra.mxu0 0.0
        %4380 = vmatprep.subr.mxu0 0.0
        %4381 = vmatpush2.msra.mxu0 0.0
        %4382 = vmatprep.subr.mxu0 0.0
        %4383 = vmatpush2.msra.mxu0 0.0
        %4384 = vmatprep.subr.mxu0 0.0
        %4385 = vmatpush2.msra.mxu0 0.0
        %4386 = vmatprep.subr.mxu0 0.0
        %4387 = vmatpush2.msra.mxu0 0.0
        %4388 = vmatprep.subr.mxu0 0.0
        %4389 = vmatpush2.msra.mxu0 0.0
        %4390 = vmatprep.mubr.f32.mxu0 0.0
        %4391 = vmatmul.mubr.f32.gmra.mxu0 %v4324
        %v4392 = vpop.f32.mrf.mxu0
        %v4393 = vadd.f32 0.0, %v4392
        %v4394 = vpop.f32.mrf.mxu0
        %4395 = vdwg.mxu0
        %v4396 = vmul.f32 %v4108, 1.5
        %v4397 = vmul.f32 %v4109, 1.5
        %v4398 = vmul.f32 %v4320, 0.5
        %v4399 = vmul.f32 %v4393, 0.5
        %v4400 = vsub.f32 %v4396, %v4398
        %v4401 = vsub.f32 %v4397, %v4399
        %4402 = vmatprep.subr.mxu0 0.0
        %4403 = vmatpush1.xpose.msra.mxu0 0.0
        %4404 = vmatprep.subr.mxu0 0.0
        %4405 = vmatpush1.xpose.msra.mxu0 0.0
        %4406 = vmatprep.subr.mxu0 0.0
        %4407 = vmatpush1.xpose.msra.mxu0 0.0
        %4408 = vmatprep.subr.mxu0 0.0
        %4409 = vmatpush1.xpose.msra.mxu0 0.0
        %4410 = vmatprep.subr.mxu0 0.0
        %4411 = vmatpush1.xpose.msra.mxu0 0.0
        %4412 = vmatprep.subr.mxu0 0.0
        %4413 = vmatpush1.xpose.msra.mxu0 0.0
        %4414 = vmatprep.subr.mxu0 0.0
        %4415 = vmatpush1.xpose.msra.mxu0 0.0
        %4416 = vmatprep.subr.mxu0 0.0
        %4417 = vmatpush1.xpose.msra.mxu0 0.0
        %4418 = vmatprep.subr.mxu0 0.0
        %4419 = vmatpush1.xpose.msra.mxu0 0.0
        %4420 = vmatprep.subr.mxu0 0.0
        %4421 = vmatpush1.xpose.msra.mxu0 0.0
        %4422 = vmatprep.subr.mxu0 0.0
        %4423 = vmatpush1.xpose.msra.mxu0 0.0
        %4424 = vmatprep.subr.mxu0 0.0
        %4425 = vmatpush1.xpose.msra.mxu0 0.0
        %4426 = vmatprep.subr.mxu0 0.0
        %4427 = vmatpush1.xpose.msra.mxu0 0.0
        %4428 = vmatprep.subr.mxu0 0.0
        %4429 = vmatpush1.xpose.msra.mxu0 0.0
        %4430 = vmatprep.subr.mxu0 0.0
        %4431 = vmatpush1.xpose.msra.mxu0 0.0
        %4432 = vmatprep.subr.mxu0 0.0
        %4433 = vmatpush1.xpose.msra.mxu0 %v4400
        %4434 = vmatprep.subr.mxu0 0.0
        %4435 = vmatpush2.xpose.msra.mxu0 0.0
        %4436 = vmatprep.subr.mxu0 0.0
        %4437 = vmatpush2.xpose.msra.mxu0 0.0
        %4438 = vmatprep.subr.mxu0 0.0
        %4439 = vmatpush2.xpose.msra.mxu0 0.0
        %4440 = vmatprep.subr.mxu0 0.0
        %4441 = vmatpush2.xpose.msra.mxu0 0.0
        %4442 = vmatprep.subr.mxu0 0.0
        %4443 = vmatpush2.xpose.msra.mxu0 0.0
        %4444 = vmatprep.subr.mxu0 0.0
        %4445 = vmatpush2.xpose.msra.mxu0 0.0
        %4446 = vmatprep.subr.mxu0 0.0
        %4447 = vmatpush2.xpose.msra.mxu0 0.0
        %4448 = vmatprep.subr.mxu0 0.0
        %4449 = vmatpush2.xpose.msra.mxu0 0.0
        %4450 = vmatprep.subr.mxu0 0.0
        %4451 = vmatpush2.xpose.msra.mxu0 0.0
        %4452 = vmatprep.subr.mxu0 0.0
        %4453 = vmatpush2.xpose.msra.mxu0 0.0
        %4454 = vmatprep.subr.mxu0 0.0
        %4455 = vmatpush2.xpose.msra.mxu0 0.0
        %4456 = vmatprep.subr.mxu0 0.0
        %4457 = vmatpush2.xpose.msra.mxu0 0.0
        %4458 = vmatprep.subr.mxu0 0.0
        %4459 = vmatpush2.xpose.msra.mxu0 0.0
        %4460 = vmatprep.subr.mxu0 0.0
        %4461 = vmatpush2.xpose.msra.mxu0 0.0
        %4462 = vmatprep.subr.mxu0 0.0
        %4463 = vmatpush2.xpose.msra.mxu0 0.0
        %4464 = vmatprep.subr.mxu0 0.0
        %4465 = vmatpush2.xpose.msra.mxu0 0.0
        %4466 = vmatprep.mubr.f32.mxu0 0.0
        %4467 = vmatmul.mubr.f32.gmra.mxu0 %v4400
        %v4468 = vpop.f32.mrf.mxu0
        %v4469 = vadd.f32 0.0, %v4468
        %v4470 = vpop.f32.mrf.mxu0
        %4471 = vdwg.mxu0
        %4472 = vmatprep.subr.mxu0 0.0
        %4473 = vmatpush1.xpose.msra.mxu0 0.0
        %4474 = vmatprep.subr.mxu0 0.0
        %4475 = vmatpush1.xpose.msra.mxu0 0.0
        %4476 = vmatprep.subr.mxu0 0.0
        %4477 = vmatpush1.xpose.msra.mxu0 0.0
        %4478 = vmatprep.subr.mxu0 0.0
        %4479 = vmatpush1.xpose.msra.mxu0 0.0
        %4480 = vmatprep.subr.mxu0 0.0
        %4481 = vmatpush1.xpose.msra.mxu0 0.0
        %4482 = vmatprep.subr.mxu0 0.0
        %4483 = vmatpush1.xpose.msra.mxu0 0.0
        %4484 = vmatprep.subr.mxu0 0.0
        %4485 = vmatpush1.xpose.msra.mxu0 0.0
        %4486 = vmatprep.subr.mxu0 0.0
        %4487 = vmatpush1.xpose.msra.mxu0 0.0
        %4488 = vmatprep.subr.mxu0 0.0
        %4489 = vmatpush1.xpose.msra.mxu0 0.0
        %4490 = vmatprep.subr.mxu0 0.0
        %4491 = vmatpush1.xpose.msra.mxu0 0.0
        %4492 = vmatprep.subr.mxu0 0.0
        %4493 = vmatpush1.xpose.msra.mxu0 0.0
        %4494 = vmatprep.subr.mxu0 0.0
        %4495 = vmatpush1.xpose.msra.mxu0 0.0
        %4496 = vmatprep.subr.mxu0 0.0
        %4497 = vmatpush1.xpose.msra.mxu0 0.0
        %4498 = vmatprep.subr.mxu0 0.0
        %4499 = vmatpush1.xpose.msra.mxu0 0.0
        %4500 = vmatprep.subr.mxu0 0.0
        %4501 = vmatpush1.xpose.msra.mxu0 0.0
        %4502 = vmatprep.subr.mxu0 0.0
        %4503 = vmatpush1.xpose.msra.mxu0 %v4401
        %4504 = vmatprep.subr.mxu0 0.0
        %4505 = vmatpush2.xpose.msra.mxu0 0.0
        %4506 = vmatprep.subr.mxu0 0.0
        %4507 = vmatpush2.xpose.msra.mxu0 0.0
        %4508 = vmatprep.subr.mxu0 0.0
        %4509 = vmatpush2.xpose.msra.mxu0 0.0
        %4510 = vmatprep.subr.mxu0 0.0
        %4511 = vmatpush2.xpose.msra.mxu0 0.0
        %4512 = vmatprep.subr.mxu0 0.0
        %4513 = vmatpush2.xpose.msra.mxu0 0.0
        %4514 = vmatprep.subr.mxu0 0.0
        %4515 = vmatpush2.xpose.msra.mxu0 0.0
        %4516 = vmatprep.subr.mxu0 0.0
        %4517 = vmatpush2.xpose.msra.mxu0 0.0
        %4518 = vmatprep.subr.mxu0 0.0
        %4519 = vmatpush2.xpose.msra.mxu0 0.0
        %4520 = vmatprep.subr.mxu0 0.0
        %4521 = vmatpush2.xpose.msra.mxu0 0.0
        %4522 = vmatprep.subr.mxu0 0.0
        %4523 = vmatpush2.xpose.msra.mxu0 0.0
        %4524 = vmatprep.subr.mxu0 0.0
        %4525 = vmatpush2.xpose.msra.mxu0 0.0
        %4526 = vmatprep.subr.mxu0 0.0
        %4527 = vmatpush2.xpose.msra.mxu0 0.0
        %4528 = vmatprep.subr.mxu0 0.0
        %4529 = vmatpush2.xpose.msra.mxu0 0.0
        %4530 = vmatprep.subr.mxu0 0.0
        %4531 = vmatpush2.xpose.msra.mxu0 0.0
        %4532 = vmatprep.subr.mxu0 0.0
        %4533 = vmatpush2.xpose.msra.mxu0 0.0
        %4534 = vmatprep.subr.mxu0 0.0
        %4535 = vmatpush2.xpose.msra.mxu0 0.0
        %4536 = vmatprep.mubr.f32.mxu0 0.0
        %4537 = vmatmul.mubr.f32.gmra.mxu0 %v4401
        %v4538 = vpop.f32.mrf.mxu0
        %v4539 = vadd.f32 0.0, %v4538
        %v4540 = vpop.f32.mrf.mxu0
        %4541 = vdwg.mxu0
        %v4543 = vsel %vm224, %v4469, 0
        %4545 = vmatprep.subr.mxu0 0.0
        %4546 = vmatpush1.msra.mxu0 0.0
        %4547 = vmatprep.subr.mxu0 0.0
        %4548 = vmatpush1.msra.mxu0 0.0
        %4549 = vmatprep.subr.mxu0 0.0
        %4550 = vmatpush1.msra.mxu0 0.0
        %4551 = vmatprep.subr.mxu0 0.0
        %4552 = vmatpush1.msra.mxu0 0.0
        %4553 = vmatprep.subr.mxu0 0.0
        %4554 = vmatpush1.msra.mxu0 0.0
        %4555 = vmatprep.subr.mxu0 0.0
        %4556 = vmatpush1.msra.mxu0 0.0
        %4557 = vmatprep.subr.mxu0 0.0
        %4558 = vmatpush1.msra.mxu0 0.0
        %4559 = vmatprep.subr.mxu0 0.0
        %4560 = vmatpush1.msra.mxu0 0.0
        %4561 = vmatprep.subr.mxu0 0.0
        %4562 = vmatpush1.msra.mxu0 0.0
        %4563 = vmatprep.subr.mxu0 0.0
        %4564 = vmatpush1.msra.mxu0 0.0
        %4565 = vmatprep.subr.mxu0 0.0
        %4566 = vmatpush1.msra.mxu0 0.0
        %4567 = vmatprep.subr.mxu0 0.0
        %4568 = vmatpush1.msra.mxu0 0.0
        %4569 = vmatprep.subr.mxu0 0.0
        %4570 = vmatpush1.msra.mxu0 0.0
        %4571 = vmatprep.subr.mxu0 0.0
        %4572 = vmatpush1.msra.mxu0 0.0
        %4573 = vmatprep.subr.mxu0 0.0
        %4574 = vmatpush1.msra.mxu0 0.0
        %4575 = vmatprep.subr.mxu0 0.0
        %4576 = vmatpush1.msra.mxu0 %v4400
        %4577 = vmatprep.subr.mxu0 0.0
        %4578 = vmatpush2.msra.mxu0 0.0
        %4579 = vmatprep.subr.mxu0 0.0
        %4580 = vmatpush2.msra.mxu0 0.0
        %4581 = vmatprep.subr.mxu0 0.0
        %4582 = vmatpush2.msra.mxu0 0.0
        %4583 = vmatprep.subr.mxu0 0.0
        %4584 = vmatpush2.msra.mxu0 0.0
        %4585 = vmatprep.subr.mxu0 0.0
        %4586 = vmatpush2.msra.mxu0 0.0
        %4587 = vmatprep.subr.mxu0 0.0
        %4588 = vmatpush2.msra.mxu0 0.0
        %4589 = vmatprep.subr.mxu0 0.0
        %4590 = vmatpush2.msra.mxu0 0.0
        %4591 = vmatprep.subr.mxu0 0.0
        %4592 = vmatpush2.msra.mxu0 0.0
        %4593 = vmatprep.subr.mxu0 0.0
        %4594 = vmatpush2.msra.mxu0 0.0
        %4595 = vmatprep.subr.mxu0 0.0
        %4596 = vmatpush2.msra.mxu0 0.0
        %4597 = vmatprep.subr.mxu0 0.0
        %4598 = vmatpush2.msra.mxu0 0.0
        %4599 = vmatprep.subr.mxu0 0.0
        %4600 = vmatpush2.msra.mxu0 0.0
        %4601 = vmatprep.subr.mxu0 0.0
        %4602 = vmatpush2.msra.mxu0 0.0
        %4603 = vmatprep.subr.mxu0 0.0
        %4604 = vmatpush2.msra.mxu0 0.0
        %4605 = vmatprep.subr.mxu0 0.0
        %4606 = vmatpush2.msra.mxu0 0.0
        %4607 = vmatprep.subr.mxu0 0.0
        %4608 = vmatpush2.msra.mxu0 0.0
        %4609 = vmatprep.mubr.f32.mxu0 0.0
        %4610 = vmatmul.mubr.f32.gmra.mxu0 %v4543
        %v4611 = vpop.f32.mrf.mxu0
        %v4612 = vadd.f32 0.0, %v4611
        %v4613 = vpop.f32.mrf.mxu0
        %4614 = vdwg.mxu0
        %v4616 = vsel %vm224, %v4539, 0
        %4618 = vmatprep.subr.mxu0 0.0
        %4619 = vmatpush1.msra.mxu0 0.0
        %4620 = vmatprep.subr.mxu0 0.0
        %4621 = vmatpush1.msra.mxu0 0.0
        %4622 = vmatprep.subr.mxu0 0.0
        %4623 = vmatpush1.msra.mxu0 0.0
        %4624 = vmatprep.subr.mxu0 0.0
        %4625 = vmatpush1.msra.mxu0 0.0
        %4626 = vmatprep.subr.mxu0 0.0
        %4627 = vmatpush1.msra.mxu0 0.0
        %4628 = vmatprep.subr.mxu0 0.0
        %4629 = vmatpush1.msra.mxu0 0.0
        %4630 = vmatprep.subr.mxu0 0.0
        %4631 = vmatpush1.msra.mxu0 0.0
        %4632 = vmatprep.subr.mxu0 0.0
        %4633 = vmatpush1.msra.mxu0 0.0
        %4634 = vmatprep.subr.mxu0 0.0
        %4635 = vmatpush1.msra.mxu0 0.0
        %4636 = vmatprep.subr.mxu0 0.0
        %4637 = vmatpush1.msra.mxu0 0.0
        %4638 = vmatprep.subr.mxu0 0.0
        %4639 = vmatpush1.msra.mxu0 0.0
        %4640 = vmatprep.subr.mxu0 0.0
        %4641 = vmatpush1.msra.mxu0 0.0
        %4642 = vmatprep.subr.mxu0 0.0
        %4643 = vmatpush1.msra.mxu0 0.0
        %4644 = vmatprep.subr.mxu0 0.0
        %4645 = vmatpush1.msra.mxu0 0.0
        %4646 = vmatprep.subr.mxu0 0.0
        %4647 = vmatpush1.msra.mxu0 0.0
        %4648 = vmatprep.subr.mxu0 0.0
        %4649 = vmatpush1.msra.mxu0 %v4401
        %4650 = vmatprep.subr.mxu0 0.0
        %4651 = vmatpush2.msra.mxu0 0.0
        %4652 = vmatprep.subr.mxu0 0.0
        %4653 = vmatpush2.msra.mxu0 0.0
        %4654 = vmatprep.subr.mxu0 0.0
        %4655 = vmatpush2.msra.mxu0 0.0
        %4656 = vmatprep.subr.mxu0 0.0
        %4657 = vmatpush2.msra.mxu0 0.0
        %4658 = vmatprep.subr.mxu0 0.0
        %4659 = vmatpush2.msra.mxu0 0.0
        %4660 = vmatprep.subr.mxu0 0.0
        %4661 = vmatpush2.msra.mxu0 0.0
        %4662 = vmatprep.subr.mxu0 0.0
        %4663 = vmatpush2.msra.mxu0 0.0
        %4664 = vmatprep.subr.mxu0 0.0
        %4665 = vmatpush2.msra.mxu0 0.0
        %4666 = vmatprep.subr.mxu0 0.0
        %4667 = vmatpush2.msra.mxu0 0.0
        %4668 = vmatprep.subr.mxu0 0.0
        %4669 = vmatpush2.msra.mxu0 0.0
        %4670 = vmatprep.subr.mxu0 0.0
        %4671 = vmatpush2.msra.mxu0 0.0
        %4672 = vmatprep.subr.mxu0 0.0
        %4673 = vmatpush2.msra.mxu0 0.0
        %4674 = vmatprep.subr.mxu0 0.0
        %4675 = vmatpush2.msra.mxu0 0.0
        %4676 = vmatprep.subr.mxu0 0.0
        %4677 = vmatpush2.msra.mxu0 0.0
        %4678 = vmatprep.subr.mxu0 0.0
        %4679 = vmatpush2.msra.mxu0 0.0
        %4680 = vmatprep.subr.mxu0 0.0
        %4681 = vmatpush2.msra.mxu0 0.0
        %4682 = vmatprep.mubr.f32.mxu0 0.0
        %4683 = vmatmul.mubr.f32.gmra.mxu0 %v4616
        %v4684 = vpop.f32.mrf.mxu0
        %v4685 = vadd.f32 0.0, %v4684
        %v4686 = vpop.f32.mrf.mxu0
        %4687 = vdwg.mxu0
        %v4688 = vmul.f32 %v4400, 0.16666667
        %v4689 = vmul.f32 %v4401, 0.16666667
        %v4690 = vmul.f32 %v4612, 0.055555556
        %v4691 = vmul.f32 %v4685, 0.055555556
        %v4692 = vsub.f32 %v4688, %v4690
        %v4693 = vsub.f32 %v4689, %v4691
        %4694 = vst [vmem:[%s201] sm:$0xff] %v4692
        %4695 = vst [vmem:[%s201 + $0x8] sm:$0xff] %v4693
        %s4696 = sand.u32 %s82, 1
        %s4697 = scalar_lea.sflag [#allocation4], %s4696
        %s4698 = sand.u32 %s82, 1
        %s4699 = smul.addr %s4698, 16
        %s4700 = scalar_lea.vmem [#allocation7], %s4699
        // Predicated region
        $region37: #{tpu_custom_call.1} parent=27 // pred_check
          %p4701 = pneg %p92
        $region38: #{tpu_custom_call.1} parent=27 // pred_check_branch
          %4703 = sbr.rel (%p4701) target = $region40
        $region39: #{tpu_custom_call.1} parent=27 // pred_region
          %s4704 = smul.u32 2, %s22
          %s4706 = ssub.s32 256, 256
          %4707 = vsyncadd %s4697, %s4706
          %s4708 = smul.addr %s4704, 128
          %s4709 = scalar_lea.hbm %s2, %s4708
          %s4710 = sshll.u32 %s4700, 4
          %s4711 = int_to_ptr.vmem [resolvable:$true] %s4710
          %4716 = dma.vmem_to_hbm [thread:$0]  %s4711, 256, %s4709, %s4697, 128, 128, 8
        $region40: #{tpu_custom_call.1} parent=27 // pred_fallthru
          _
      $region28: #{tpu_custom_call.1} parent=5 // pred_fallthru
        _
      %p4717 = scmp.le.s32.totalorder 2, %s17
      // Predicated region
      $region41: #{tpu_custom_call.1} parent=5 // pred_check
        %p4718 = pneg %p4717
      $region42: #{tpu_custom_call.1} parent=5 // pred_check_branch
        %4720 = sbr.rel (%p4718) target = $region44
      $region43: #{tpu_custom_call.1} parent=5 // pred_region
        %s4721 = ssub.s32 %s17, 2
        // Predicated region
        $region45: #{tpu_custom_call.1} parent=43 // pred_check
          %p4722 = pneg %p98
        $region46: #{tpu_custom_call.1} parent=43 // pred_check_branch
          %4724 = sbr.rel (%p4722) target = $region48
        $region47: #{tpu_custom_call.1} parent=43 // pred_region
          %s4725 = sand.u32 %s83, 1
          %s4726 = scalar_lea.sflag [#allocation4], %s4725
          %s4727 = sand.u32 %s83, 1
          %s4728 = smul.addr %s4727, 16
          %s4729 = scalar_lea.vmem [#allocation7], %s4728
          %4730 = dma.done %s4726, 256
        $region48: #{tpu_custom_call.1} parent=43 // pred_fallthru
          _
      $region44: #{tpu_custom_call.1} parent=5 // pred_fallthru
        _
    $region6: #{tpu_custom_call.1} parent=1 // loop_footer
      %s21 = sadd.s32 1, %s17
    $region7: #{tpu_custom_call.1} parent=1 // loop_footer_branch
      %16 = sbr.rel target = $region3
    $region8: #{tpu_custom_call.1} parent=1 // loop_exit
      _
    %4731 = vsyncpa [#allocation3], 1
    %s4732 = scalar_lea.sflag [#allocation3], 1
    %4733 = vsyncpa %s4732, 1
    %4734 = vsyncpa [#allocation6], 1
    %s4735 = scalar_lea.sflag [#allocation6], 1
    %4736 = vsyncpa %s4735, 1
    %4737 = vsyncpa [#allocation4], 1
    %s4738 = scalar_lea.sflag [#allocation4], 1
    %4739 = vsyncpa %s4738, 1

</llo_original>
